<compile_context>
chip_gen: v5e
topology: v5e:2x2
jax: 0.10.0
libtpu: 0.0.40
codegen_flags: <defaults>
</compile_context>

<pallas_src>
import functools

import jax
import jax.numpy as jnp
from jax import lax
from jax.experimental import pallas as pl
from jax.experimental.pallas import tpu as pltpu


def _upconv_kernel(x_ref, w_ref, b_ref, o_ref, *,
                   K, stride, row_div, row_off, TH, Wout, SRC_SPAN, SRC_STEP):
    """One (batch, output-row-tile) grid step of upsample -> reflection-pad -> conv.

    x_ref : (Cin, Hs, Wp)      bf16  channels-first; W already upsampled + reflect-padded,
                                     H at (near-)source resolution (see wrapper mapping).
    w_ref : (Cout, K*K*Cin)    bf16  conv weights, resident in VMEM across the grid.
    b_ref : (Cout, 1)          f32   bias, resident in VMEM.
    o_ref : (Cout, TH*Wout)    f32   lane-dense flat output tile (row-major (TH, Wout)).
    """
    t = pl.program_id(1)

    # One contiguous source-row band for this tile (single dynamic slice, lane-dense rows).
    lo = t * SRC_STEP
    band = x_ref[:, pl.ds(lo, SRC_SPAN), :]                 # (Cin, SRC_SPAN, Wp) bf16

    # im2col with the nearest-neighbour H-upsample + H reflection folded into *static*
    # row indices: padded-upsampled row (t*TH*stride + r*stride + kh) lives at band row
    # (r*stride + kh + row_off) // row_div  (exact; constants chosen by the wrapper).
    taps = []
    for kh in range(K):
        for kw in range(K):
            pieces = []
            for r in range(TH):
                src = (r * stride + kh + row_off) // row_div        # static Python int
                pieces.append(band[:, src, kw:kw + (Wout - 1) * stride + 1:stride])
            taps.append(jnp.concatenate(pieces, axis=1))            # (Cin, TH*Wout)
    patches = jnp.concatenate(taps, axis=0)                         # (K*K*Cin, TH*Wout)

    # Single MXU matmul with the big spatial dim in lanes; f32 accumulation + bias.
    acc = jnp.dot(w_ref[...], patches, preferred_element_type=jnp.float32)
    acc = acc + b_ref[...]                                          # (Cout, TH*Wout)
    o_ref[...] = acc.astype(o_ref.dtype)


def _vmem_capacity_bytes():
    try:
        return int(pltpu.get_tpu_info().vmem_capacity_bytes)
    except Exception:
        return 64 * 1024 * 1024     # conservative default (v7x per-TensorCore VMEM)


def _pick_row_tile(Hout, Wout, Wp, Hs, Cin, Cout, K, stride, row_div, row_off,
                   byte_budget, max_th=64):
    """Largest output-row tile whose estimated VMEM working set fits the budget.

    Structural constraints:
      * TH divides Hout (single-tile fallback TH == Hout always qualifies),
      * TH*stride % row_div == 0 when multi-tile (keeps the in-kernel row offsets static),
      * TH*Wout % 128 == 0 when multi-tile (lane-dense output block).
    """
    kkc = K * K * Cin

    def structural_ok(th):
        if Hout % th:
            return False
        multi = (Hout // th) > 1
        if multi and (th * stride) % row_div:
            return False
        if multi and (th * Wout) % 128:
            return False
        return True

    def est(th):
        src_span = ((th - 1) * stride + K - 1 + row_off) // row_div + 1
        return (2 * Cin * Hs * Wp * 2              # x block, double-buffered (bf16)
                + 2 * (Cout * kkc * 2 + Cout * 4)  # weights + bias
                + Cin * src_span * Wp * 2          # band value (bf16)
                + 2 * kkc * th * Wout * 2          # im2col taps + patches transients (bf16)
                + 3 * Cout * th * Wout * 4)        # f32 acc + double-buffered output block

    cands = [th for th in range(1, Hout + 1) if structural_ok(th)]
    fitting = [th for th in cands if th <= max_th and est(th) <= byte_budget]
    if fitting:
        return max(fitting)
    return min(cands)   # smallest structurally-valid tile (TH == Hout always exists)


def upsample_conv_layer(x_nchw, weight, bias, *, kernel_size, stride, upsample=None):
    """Forward pass of UpsampleConvLayer.

    x_nchw : (N, Cin, H, W)      float32
    weight : (Cout, Cin, K, K)   torch Conv2d weight layout
    bias   : (Cout,)
    returns: (N, Cout, Hout, Wout) float32
    """
    K = kernel_size
    pad = K // 2
    up = int(upsample) if upsample else 1
    s = stride

    N, Cin, H, W = x_nchw.shape
    Cout = weight.shape[0]

    Hu, Wu = H * up, W * up
    Hp, Wp = Hu + 2 * pad, Wu + 2 * pad
    Hout = (Hp - K) // s + 1
    Wout = (Wp - K) // s + 1

    # ---- wrapper prep: channels-first end to end (no layout transposes) -----------------
    x = x_nchw.astype(jnp.bfloat16)

    # W axis: nearest upsample + reflection pad, materialized once in bf16.
    if up > 1:
        x = jnp.repeat(x, up, axis=3)
    if pad:
        x = jnp.pad(x, ((0, 0), (0, 0), (0, 0), (pad, pad)), mode="reflect")

    # H axis: keep (near-)source resolution; the kernel maps padded-upsampled row q to
    # row (q + row_off) // row_div of the tensor built here, uniformly for every q.
    if up == 1:
        if pad:
            x = jnp.pad(x, ((0, 0), (0, 0), (pad, pad), (0, 0)), mode="reflect")
        row_div, row_off = 1, 0
    elif pad < up:
        # With pad < up, reflection coincides with edge replication in source-row space,
        # so one replicated edge row per side makes the row mapping uniform.
        x = jnp.concatenate([x[:, :, :1], x, x[:, :, -1:]], axis=2)
        row_div, row_off = up, up - pad
    else:
        # Rare shape (K//2 >= upsample): materialize the H upsample + reflect pad too.
        x = jnp.repeat(x, up, axis=2)
        x = jnp.pad(x, ((0, 0), (0, 0), (pad, pad), (0, 0)), mode="reflect")
        row_div, row_off = 1, 0
    Hs = x.shape[2]

    # Weights -> (Cout, K*K*Cin) with columns ordered (kh, kw, ci); bias -> (Cout, 1).
    w2 = jnp.transpose(weight, (0, 2, 3, 1)).reshape(Cout, K * K * Cin).astype(jnp.bfloat16)
    b2 = bias.reshape(Cout, 1).astype(jnp.float32)

    cap = _vmem_capacity_bytes()                 # 128 MiB on v5e/v6e, 64 MiB on v7x
    TH = _pick_row_tile(Hout, Wout, Wp, Hs, Cin, Cout, K, s, row_div, row_off,
                        byte_budget=cap // 8)
    T = Hout // TH
    SRC_SPAN = ((TH - 1) * s + K - 1 + row_off) // row_div + 1
    SRC_STEP = (TH * s) // row_div               # exact when T > 1; unused (t=0) when T == 1

    kernel = functools.partial(
        _upconv_kernel, K=K, stride=s, row_div=row_div, row_off=row_off,
        TH=TH, Wout=Wout, SRC_SPAN=SRC_SPAN, SRC_STEP=SRC_STEP)

    out_flat = pl.pallas_call(
        kernel,
        out_shape=jax.ShapeDtypeStruct((N, Cout, Hout * Wout), jnp.float32),
        grid_spec=pltpu.PrefetchScalarGridSpec(
            num_scalar_prefetch=0,
            grid=(N, T),
            in_specs=[
                # Full per-batch image; constant over t -> DMA'd once per n and revisited.
                pl.BlockSpec((None, Cin, Hs, Wp), lambda n, t: (n, 0, 0, 0)),
                # Weights / bias resident across the whole grid.
                pl.BlockSpec((Cout, K * K * Cin), lambda n, t: (0, 0)),
                pl.BlockSpec((Cout, 1), lambda n, t: (0, 0)),
            ],
            # Lane-dense flat output block (TH*Wout lanes, multiple of 128 when T > 1).
            out_specs=pl.BlockSpec((None, Cout, TH * Wout), lambda n, t: (n, 0, t)),
        ),
        compiler_params=pltpu.CompilerParams(
            # Both axes are independent: lets v7x megacore shard either (incl. N==1 calls);
            # no-op on single-TC v5e/v6e.
            dimension_semantics=("parallel", "parallel"),
            vmem_limit_bytes=cap // 2,       # ~64 MiB on v5e/v6e, ~32 MiB on v7x
        ),
    )(x, w2, b2)

    # Free metadata reshape to NCHW (no transpose, no extra HBM pass).
    return out_flat.reshape(N, Cout, Hout, Wout)


if __name__ == "__main__":
    # Module config (small, consistent with the torch module's __init__):
    in_channels, out_channels = 4, 8
    kernel_size, stride, upsample = 3, 1, 2
    N, H, W = 2, 16, 16

    key = jax.random.PRNGKey(0)
    kx, kw, kb = jax.random.split(key, 3)

    x = jax.random.normal(kx, (N, in_channels, H, W), dtype=jnp.float32)
    weight = 0.1 * jax.random.normal(
        kw, (out_channels, in_channels, kernel_size, kernel_size), dtype=jnp.float32)
    bias = 0.1 * jax.random.normal(kb, (out_channels,), dtype=jnp.float32)

    out = upsample_conv_layer(x, weight, bias,
                              kernel_size=kernel_size, stride=stride,
                              upsample=upsample)
    out = jax.block_until_ready(out)

    # Pure-JAX reference of the same forward pass (same bf16 operands, f32 accumulation).
    pad = kernel_size // 2
    xr = x.astype(jnp.bfloat16)
    xr = jnp.repeat(jnp.repeat(xr, upsample, axis=2), upsample, axis=3)
    xr = jnp.pad(xr, ((0, 0), (0, 0), (pad, pad), (pad, pad)), mode="reflect")
    ref = lax.conv_general_dilated(
        xr, weight.astype(jnp.bfloat16), (stride, stride), "VALID",
        dimension_numbers=("NCHW", "OIHW", "NCHW"),
        preferred_element_type=jnp.float32)
    ref = ref + bias.reshape(1, -1, 1, 1)

    assert out.shape == (N, out_channels, H * upsample, W * upsample), out.shape
    err = float(jnp.max(jnp.abs(out - ref)))
    assert jnp.allclose(out, ref, rtol=1e-2, atol=1e-2), err

    print("KERNEL_OK")
</pallas_src>

<mosaic_0001>
module attributes {stable_mosaic.version = 11 : i64} {
  func.func @_upconv_kernel(%arg0: i32, %arg1: i32, %arg2: memref<1x4x18x34xbf16, #tpu.memory_space<vmem>>, %arg3: memref<8x36xbf16, #tpu.memory_space<vmem>>, %arg4: memref<8x1xf32, #tpu.memory_space<vmem>>, %arg5: memref<1x8x1024xf32, #tpu.memory_space<vmem>>) attributes {dimension_semantics = [#tpu.dimension_semantics<parallel>, #tpu.dimension_semantics<parallel>], iteration_bounds = array<i64: 2, 1>, scalar_prefetch = 0 : i64, scratch_operands = 0 : i64, tpu.core_type = #tpu.core_type<tc>, window_params = [{transform_indices = @transform_0, window_bounds = array<i64: 1, 4, 18, 34>}, {pipeline_mode = #tpu.pipeline_mode<synchronous>, transform_indices = @transform_1, window_bounds = array<i64: 8, 36>}, {pipeline_mode = #tpu.pipeline_mode<synchronous>, transform_indices = @transform_2, window_bounds = array<i64: 8, 1>}, {transform_indices = @transform_3, window_bounds = array<i64: 1, 8, 1024>}]} {
    %c16_i32 = arith.constant 16 : i32
    %0 = arith.muli %arg1, %c16_i32 : i32
    %c0 = arith.constant 0 : index
    %c0_0 = arith.constant 0 : index
    %1 = arith.index_cast %0 : i32 to index
    %c0_1 = arith.constant 0 : index
    %2 = vector.load %arg2[%c0, %c0_0, %1, %c0_1] : memref<1x4x18x34xbf16, #tpu.memory_space<vmem>>, vector<1x4x18x34xbf16>
    %3 = vector.shape_cast %2 : vector<1x4x18x34xbf16> to vector<4x18x34xbf16>
    %4 = vector.extract_strided_slice %3 {offsets = [0, 0, 0], sizes = [4, 1, 32], strides = [1, 1, 1]} : vector<4x18x34xbf16> to vector<4x1x32xbf16>
    %5 = vector.shape_cast %4 : vector<4x1x32xbf16> to vector<4x32xbf16>
    %6 = vector.extract_strided_slice %3 {offsets = [0, 1, 0], sizes = [4, 1, 32], strides = [1, 1, 1]} : vector<4x18x34xbf16> to vector<4x1x32xbf16>
    %7 = vector.shape_cast %6 : vector<4x1x32xbf16> to vector<4x32xbf16>
    %8 = vector.extract_strided_slice %3 {offsets = [0, 1, 0], sizes = [4, 1, 32], strides = [1, 1, 1]} : vector<4x18x34xbf16> to vector<4x1x32xbf16>
    %9 = vector.shape_cast %8 : vector<4x1x32xbf16> to vector<4x32xbf16>
    %10 = vector.extract_strided_slice %3 {offsets = [0, 2, 0], sizes = [4, 1, 32], strides = [1, 1, 1]} : vector<4x18x34xbf16> to vector<4x1x32xbf16>
    %11 = vector.shape_cast %10 : vector<4x1x32xbf16> to vector<4x32xbf16>
    %12 = vector.extract_strided_slice %3 {offsets = [0, 2, 0], sizes = [4, 1, 32], strides = [1, 1, 1]} : vector<4x18x34xbf16> to vector<4x1x32xbf16>
    %13 = vector.shape_cast %12 : vector<4x1x32xbf16> to vector<4x32xbf16>
    %14 = vector.extract_strided_slice %3 {offsets = [0, 3, 0], sizes = [4, 1, 32], strides = [1, 1, 1]} : vector<4x18x34xbf16> to vector<4x1x32xbf16>
    %15 = vector.shape_cast %14 : vector<4x1x32xbf16> to vector<4x32xbf16>
    %16 = vector.extract_strided_slice %3 {offsets = [0, 3, 0], sizes = [4, 1, 32], strides = [1, 1, 1]} : vector<4x18x34xbf16> to vector<4x1x32xbf16>
    %17 = vector.shape_cast %16 : vector<4x1x32xbf16> to vector<4x32xbf16>
    %18 = vector.extract_strided_slice %3 {offsets = [0, 4, 0], sizes = [4, 1, 32], strides = [1, 1, 1]} : vector<4x18x34xbf16> to vector<4x1x32xbf16>
    %19 = vector.shape_cast %18 : vector<4x1x32xbf16> to vector<4x32xbf16>
    %20 = vector.extract_strided_slice %3 {offsets = [0, 4, 0], sizes = [4, 1, 32], strides = [1, 1, 1]} : vector<4x18x34xbf16> to vector<4x1x32xbf16>
    %21 = vector.shape_cast %20 : vector<4x1x32xbf16> to vector<4x32xbf16>
    %22 = vector.extract_strided_slice %3 {offsets = [0, 5, 0], sizes = [4, 1, 32], strides = [1, 1, 1]} : vector<4x18x34xbf16> to vector<4x1x32xbf16>
    %23 = vector.shape_cast %22 : vector<4x1x32xbf16> to vector<4x32xbf16>
    %24 = vector.extract_strided_slice %3 {offsets = [0, 5, 0], sizes = [4, 1, 32], strides = [1, 1, 1]} : vector<4x18x34xbf16> to vector<4x1x32xbf16>
    %25 = vector.shape_cast %24 : vector<4x1x32xbf16> to vector<4x32xbf16>
    %26 = vector.extract_strided_slice %3 {offsets = [0, 6, 0], sizes = [4, 1, 32], strides = [1, 1, 1]} : vector<4x18x34xbf16> to vector<4x1x32xbf16>
    %27 = vector.shape_cast %26 : vector<4x1x32xbf16> to vector<4x32xbf16>
    %28 = vector.extract_strided_slice %3 {offsets = [0, 6, 0], sizes = [4, 1, 32], strides = [1, 1, 1]} : vector<4x18x34xbf16> to vector<4x1x32xbf16>
    %29 = vector.shape_cast %28 : vector<4x1x32xbf16> to vector<4x32xbf16>
    %30 = vector.extract_strided_slice %3 {offsets = [0, 7, 0], sizes = [4, 1, 32], strides = [1, 1, 1]} : vector<4x18x34xbf16> to vector<4x1x32xbf16>
    %31 = vector.shape_cast %30 : vector<4x1x32xbf16> to vector<4x32xbf16>
    %32 = vector.extract_strided_slice %3 {offsets = [0, 7, 0], sizes = [4, 1, 32], strides = [1, 1, 1]} : vector<4x18x34xbf16> to vector<4x1x32xbf16>
    %33 = vector.shape_cast %32 : vector<4x1x32xbf16> to vector<4x32xbf16>
    %34 = vector.extract_strided_slice %3 {offsets = [0, 8, 0], sizes = [4, 1, 32], strides = [1, 1, 1]} : vector<4x18x34xbf16> to vector<4x1x32xbf16>
    %35 = vector.shape_cast %34 : vector<4x1x32xbf16> to vector<4x32xbf16>
    %36 = vector.extract_strided_slice %3 {offsets = [0, 8, 0], sizes = [4, 1, 32], strides = [1, 1, 1]} : vector<4x18x34xbf16> to vector<4x1x32xbf16>
    %37 = vector.shape_cast %36 : vector<4x1x32xbf16> to vector<4x32xbf16>
    %38 = vector.extract_strided_slice %3 {offsets = [0, 9, 0], sizes = [4, 1, 32], strides = [1, 1, 1]} : vector<4x18x34xbf16> to vector<4x1x32xbf16>
    %39 = vector.shape_cast %38 : vector<4x1x32xbf16> to vector<4x32xbf16>
    %40 = vector.extract_strided_slice %3 {offsets = [0, 9, 0], sizes = [4, 1, 32], strides = [1, 1, 1]} : vector<4x18x34xbf16> to vector<4x1x32xbf16>
    %41 = vector.shape_cast %40 : vector<4x1x32xbf16> to vector<4x32xbf16>
    %42 = vector.extract_strided_slice %3 {offsets = [0, 10, 0], sizes = [4, 1, 32], strides = [1, 1, 1]} : vector<4x18x34xbf16> to vector<4x1x32xbf16>
    %43 = vector.shape_cast %42 : vector<4x1x32xbf16> to vector<4x32xbf16>
    %44 = vector.extract_strided_slice %3 {offsets = [0, 10, 0], sizes = [4, 1, 32], strides = [1, 1, 1]} : vector<4x18x34xbf16> to vector<4x1x32xbf16>
    %45 = vector.shape_cast %44 : vector<4x1x32xbf16> to vector<4x32xbf16>
    %46 = vector.extract_strided_slice %3 {offsets = [0, 11, 0], sizes = [4, 1, 32], strides = [1, 1, 1]} : vector<4x18x34xbf16> to vector<4x1x32xbf16>
    %47 = vector.shape_cast %46 : vector<4x1x32xbf16> to vector<4x32xbf16>
    %48 = vector.extract_strided_slice %3 {offsets = [0, 11, 0], sizes = [4, 1, 32], strides = [1, 1, 1]} : vector<4x18x34xbf16> to vector<4x1x32xbf16>
    %49 = vector.shape_cast %48 : vector<4x1x32xbf16> to vector<4x32xbf16>
    %50 = vector.extract_strided_slice %3 {offsets = [0, 12, 0], sizes = [4, 1, 32], strides = [1, 1, 1]} : vector<4x18x34xbf16> to vector<4x1x32xbf16>
    %51 = vector.shape_cast %50 : vector<4x1x32xbf16> to vector<4x32xbf16>
    %52 = vector.extract_strided_slice %3 {offsets = [0, 12, 0], sizes = [4, 1, 32], strides = [1, 1, 1]} : vector<4x18x34xbf16> to vector<4x1x32xbf16>
    %53 = vector.shape_cast %52 : vector<4x1x32xbf16> to vector<4x32xbf16>
    %54 = vector.extract_strided_slice %3 {offsets = [0, 13, 0], sizes = [4, 1, 32], strides = [1, 1, 1]} : vector<4x18x34xbf16> to vector<4x1x32xbf16>
    %55 = vector.shape_cast %54 : vector<4x1x32xbf16> to vector<4x32xbf16>
    %56 = vector.extract_strided_slice %3 {offsets = [0, 13, 0], sizes = [4, 1, 32], strides = [1, 1, 1]} : vector<4x18x34xbf16> to vector<4x1x32xbf16>
    %57 = vector.shape_cast %56 : vector<4x1x32xbf16> to vector<4x32xbf16>
    %58 = vector.extract_strided_slice %3 {offsets = [0, 14, 0], sizes = [4, 1, 32], strides = [1, 1, 1]} : vector<4x18x34xbf16> to vector<4x1x32xbf16>
    %59 = vector.shape_cast %58 : vector<4x1x32xbf16> to vector<4x32xbf16>
    %60 = vector.extract_strided_slice %3 {offsets = [0, 14, 0], sizes = [4, 1, 32], strides = [1, 1, 1]} : vector<4x18x34xbf16> to vector<4x1x32xbf16>
    %61 = vector.shape_cast %60 : vector<4x1x32xbf16> to vector<4x32xbf16>
    %62 = vector.extract_strided_slice %3 {offsets = [0, 15, 0], sizes = [4, 1, 32], strides = [1, 1, 1]} : vector<4x18x34xbf16> to vector<4x1x32xbf16>
    %63 = vector.shape_cast %62 : vector<4x1x32xbf16> to vector<4x32xbf16>
    %64 = vector.extract_strided_slice %3 {offsets = [0, 15, 0], sizes = [4, 1, 32], strides = [1, 1, 1]} : vector<4x18x34xbf16> to vector<4x1x32xbf16>
    %65 = vector.shape_cast %64 : vector<4x1x32xbf16> to vector<4x32xbf16>
    %66 = vector.extract_strided_slice %3 {offsets = [0, 16, 0], sizes = [4, 1, 32], strides = [1, 1, 1]} : vector<4x18x34xbf16> to vector<4x1x32xbf16>
    %67 = vector.shape_cast %66 : vector<4x1x32xbf16> to vector<4x32xbf16>
    %68 = tpu.concatenate %5, %7, %9, %11, %13, %15, %17, %19, %21, %23, %25, %27, %29, %31, %33, %35 in 1 : vector<4x32xbf16>, vector<4x32xbf16>, vector<4x32xbf16>, vector<4x32xbf16>, vector<4x32xbf16>, vector<4x32xbf16>, vector<4x32xbf16>, vector<4x32xbf16>, vector<4x32xbf16>, vector<4x32xbf16>, vector<4x32xbf16>, vector<4x32xbf16>, vector<4x32xbf16>, vector<4x32xbf16>, vector<4x32xbf16>, vector<4x32xbf16> -> vector<4x512xbf16>
    %69 = tpu.concatenate %37, %39, %41, %43, %45, %47, %49, %51, %53, %55, %57, %59, %61, %63, %65, %67 in 1 : vector<4x32xbf16>, vector<4x32xbf16>, vector<4x32xbf16>, vector<4x32xbf16>, vector<4x32xbf16>, vector<4x32xbf16>, vector<4x32xbf16>, vector<4x32xbf16>, vector<4x32xbf16>, vector<4x32xbf16>, vector<4x32xbf16>, vector<4x32xbf16>, vector<4x32xbf16>, vector<4x32xbf16>, vector<4x32xbf16>, vector<4x32xbf16> -> vector<4x512xbf16>
    %70 = tpu.concatenate %68, %69 in 1 : vector<4x512xbf16>, vector<4x512xbf16> -> vector<4x1024xbf16>
    %71 = vector.extract_strided_slice %3 {offsets = [0, 0, 1], sizes = [4, 1, 32], strides = [1, 1, 1]} : vector<4x18x34xbf16> to vector<4x1x32xbf16>
    %72 = vector.shape_cast %71 : vector<4x1x32xbf16> to vector<4x32xbf16>
    %73 = vector.extract_strided_slice %3 {offsets = [0, 1, 1], sizes = [4, 1, 32], strides = [1, 1, 1]} : vector<4x18x34xbf16> to vector<4x1x32xbf16>
    %74 = vector.shape_cast %73 : vector<4x1x32xbf16> to vector<4x32xbf16>
    %75 = vector.extract_strided_slice %3 {offsets = [0, 1, 1], sizes = [4, 1, 32], strides = [1, 1, 1]} : vector<4x18x34xbf16> to vector<4x1x32xbf16>
    %76 = vector.shape_cast %75 : vector<4x1x32xbf16> to vector<4x32xbf16>
    %77 = vector.extract_strided_slice %3 {offsets = [0, 2, 1], sizes = [4, 1, 32], strides = [1, 1, 1]} : vector<4x18x34xbf16> to vector<4x1x32xbf16>
    %78 = vector.shape_cast %77 : vector<4x1x32xbf16> to vector<4x32xbf16>
    %79 = vector.extract_strided_slice %3 {offsets = [0, 2, 1], sizes = [4, 1, 32], strides = [1, 1, 1]} : vector<4x18x34xbf16> to vector<4x1x32xbf16>
    %80 = vector.shape_cast %79 : vector<4x1x32xbf16> to vector<4x32xbf16>
    %81 = vector.extract_strided_slice %3 {offsets = [0, 3, 1], sizes = [4, 1, 32], strides = [1, 1, 1]} : vector<4x18x34xbf16> to vector<4x1x32xbf16>
    %82 = vector.shape_cast %81 : vector<4x1x32xbf16> to vector<4x32xbf16>
    %83 = vector.extract_strided_slice %3 {offsets = [0, 3, 1], sizes = [4, 1, 32], strides = [1, 1, 1]} : vector<4x18x34xbf16> to vector<4x1x32xbf16>
    %84 = vector.shape_cast %83 : vector<4x1x32xbf16> to vector<4x32xbf16>
    %85 = vector.extract_strided_slice %3 {offsets = [0, 4, 1], sizes = [4, 1, 32], strides = [1, 1, 1]} : vector<4x18x34xbf16> to vector<4x1x32xbf16>
    %86 = vector.shape_cast %85 : vector<4x1x32xbf16> to vector<4x32xbf16>
    %87 = vector.extract_strided_slice %3 {offsets = [0, 4, 1], sizes = [4, 1, 32], strides = [1, 1, 1]} : vector<4x18x34xbf16> to vector<4x1x32xbf16>
    %88 = vector.shape_cast %87 : vector<4x1x32xbf16> to vector<4x32xbf16>
    %89 = vector.extract_strided_slice %3 {offsets = [0, 5, 1], sizes = [4, 1, 32], strides = [1, 1, 1]} : vector<4x18x34xbf16> to vector<4x1x32xbf16>
    %90 = vector.shape_cast %89 : vector<4x1x32xbf16> to vector<4x32xbf16>
    %91 = vector.extract_strided_slice %3 {offsets = [0, 5, 1], sizes = [4, 1, 32], strides = [1, 1, 1]} : vector<4x18x34xbf16> to vector<4x1x32xbf16>
    %92 = vector.shape_cast %91 : vector<4x1x32xbf16> to vector<4x32xbf16>
    %93 = vector.extract_strided_slice %3 {offsets = [0, 6, 1], sizes = [4, 1, 32], strides = [1, 1, 1]} : vector<4x18x34xbf16> to vector<4x1x32xbf16>
    %94 = vector.shape_cast %93 : vector<4x1x32xbf16> to vector<4x32xbf16>
    %95 = vector.extract_strided_slice %3 {offsets = [0, 6, 1], sizes = [4, 1, 32], strides = [1, 1, 1]} : vector<4x18x34xbf16> to vector<4x1x32xbf16>
    %96 = vector.shape_cast %95 : vector<4x1x32xbf16> to vector<4x32xbf16>
    %97 = vector.extract_strided_slice %3 {offsets = [0, 7, 1], sizes = [4, 1, 32], strides = [1, 1, 1]} : vector<4x18x34xbf16> to vector<4x1x32xbf16>
    %98 = vector.shape_cast %97 : vector<4x1x32xbf16> to vector<4x32xbf16>
    %99 = vector.extract_strided_slice %3 {offsets = [0, 7, 1], sizes = [4, 1, 32], strides = [1, 1, 1]} : vector<4x18x34xbf16> to vector<4x1x32xbf16>
    %100 = vector.shape_cast %99 : vector<4x1x32xbf16> to vector<4x32xbf16>
    %101 = vector.extract_strided_slice %3 {offsets = [0, 8, 1], sizes = [4, 1, 32], strides = [1, 1, 1]} : vector<4x18x34xbf16> to vector<4x1x32xbf16>
    %102 = vector.shape_cast %101 : vector<4x1x32xbf16> to vector<4x32xbf16>
    %103 = vector.extract_strided_slice %3 {offsets = [0, 8, 1], sizes = [4, 1, 32], strides = [1, 1, 1]} : vector<4x18x34xbf16> to vector<4x1x32xbf16>
    %104 = vector.shape_cast %103 : vector<4x1x32xbf16> to vector<4x32xbf16>
    %105 = vector.extract_strided_slice %3 {offsets = [0, 9, 1], sizes = [4, 1, 32], strides = [1, 1, 1]} : vector<4x18x34xbf16> to vector<4x1x32xbf16>
    %106 = vector.shape_cast %105 : vector<4x1x32xbf16> to vector<4x32xbf16>
    %107 = vector.extract_strided_slice %3 {offsets = [0, 9, 1], sizes = [4, 1, 32], strides = [1, 1, 1]} : vector<4x18x34xbf16> to vector<4x1x32xbf16>
    %108 = vector.shape_cast %107 : vector<4x1x32xbf16> to vector<4x32xbf16>
    %109 = vector.extract_strided_slice %3 {offsets = [0, 10, 1], sizes = [4, 1, 32], strides = [1, 1, 1]} : vector<4x18x34xbf16> to vector<4x1x32xbf16>
    %110 = vector.shape_cast %109 : vector<4x1x32xbf16> to vector<4x32xbf16>
    %111 = vector.extract_strided_slice %3 {offsets = [0, 10, 1], sizes = [4, 1, 32], strides = [1, 1, 1]} : vector<4x18x34xbf16> to vector<4x1x32xbf16>
    %112 = vector.shape_cast %111 : vector<4x1x32xbf16> to vector<4x32xbf16>
    %113 = vector.extract_strided_slice %3 {offsets = [0, 11, 1], sizes = [4, 1, 32], strides = [1, 1, 1]} : vector<4x18x34xbf16> to vector<4x1x32xbf16>
    %114 = vector.shape_cast %113 : vector<4x1x32xbf16> to vector<4x32xbf16>
    %115 = vector.extract_strided_slice %3 {offsets = [0, 11, 1], sizes = [4, 1, 32], strides = [1, 1, 1]} : vector<4x18x34xbf16> to vector<4x1x32xbf16>
    %116 = vector.shape_cast %115 : vector<4x1x32xbf16> to vector<4x32xbf16>
    %117 = vector.extract_strided_slice %3 {offsets = [0, 12, 1], sizes = [4, 1, 32], strides = [1, 1, 1]} : vector<4x18x34xbf16> to vector<4x1x32xbf16>
    %118 = vector.shape_cast %117 : vector<4x1x32xbf16> to vector<4x32xbf16>
    %119 = vector.extract_strided_slice %3 {offsets = [0, 12, 1], sizes = [4, 1, 32], strides = [1, 1, 1]} : vector<4x18x34xbf16> to vector<4x1x32xbf16>
    %120 = vector.shape_cast %119 : vector<4x1x32xbf16> to vector<4x32xbf16>
    %121 = vector.extract_strided_slice %3 {offsets = [0, 13, 1], sizes = [4, 1, 32], strides = [1, 1, 1]} : vector<4x18x34xbf16> to vector<4x1x32xbf16>
    %122 = vector.shape_cast %121 : vector<4x1x32xbf16> to vector<4x32xbf16>
    %123 = vector.extract_strided_slice %3 {offsets = [0, 13, 1], sizes = [4, 1, 32], strides = [1, 1, 1]} : vector<4x18x34xbf16> to vector<4x1x32xbf16>
    %124 = vector.shape_cast %123 : vector<4x1x32xbf16> to vector<4x32xbf16>
    %125 = vector.extract_strided_slice %3 {offsets = [0, 14, 1], sizes = [4, 1, 32], strides = [1, 1, 1]} : vector<4x18x34xbf16> to vector<4x1x32xbf16>
    %126 = vector.shape_cast %125 : vector<4x1x32xbf16> to vector<4x32xbf16>
    %127 = vector.extract_strided_slice %3 {offsets = [0, 14, 1], sizes = [4, 1, 32], strides = [1, 1, 1]} : vector<4x18x34xbf16> to vector<4x1x32xbf16>
    %128 = vector.shape_cast %127 : vector<4x1x32xbf16> to vector<4x32xbf16>
    %129 = vector.extract_strided_slice %3 {offsets = [0, 15, 1], sizes = [4, 1, 32], strides = [1, 1, 1]} : vector<4x18x34xbf16> to vector<4x1x32xbf16>
    %130 = vector.shape_cast %129 : vector<4x1x32xbf16> to vector<4x32xbf16>
    %131 = vector.extract_strided_slice %3 {offsets = [0, 15, 1], sizes = [4, 1, 32], strides = [1, 1, 1]} : vector<4x18x34xbf16> to vector<4x1x32xbf16>
    %132 = vector.shape_cast %131 : vector<4x1x32xbf16> to vector<4x32xbf16>
    %133 = vector.extract_strided_slice %3 {offsets = [0, 16, 1], sizes = [4, 1, 32], strides = [1, 1, 1]} : vector<4x18x34xbf16> to vector<4x1x32xbf16>
    %134 = vector.shape_cast %133 : vector<4x1x32xbf16> to vector<4x32xbf16>
    %135 = tpu.concatenate %72, %74, %76, %78, %80, %82, %84, %86, %88, %90, %92, %94, %96, %98, %100, %102 in 1 : vector<4x32xbf16>, vector<4x32xbf16>, vector<4x32xbf16>, vector<4x32xbf16>, vector<4x32xbf16>, vector<4x32xbf16>, vector<4x32xbf16>, vector<4x32xbf16>, vector<4x32xbf16>, vector<4x32xbf16>, vector<4x32xbf16>, vector<4x32xbf16>, vector<4x32xbf16>, vector<4x32xbf16>, vector<4x32xbf16>, vector<4x32xbf16> -> vector<4x512xbf16>
    %136 = tpu.concatenate %104, %106, %108, %110, %112, %114, %116, %118, %120, %122, %124, %126, %128, %130, %132, %134 in 1 : vector<4x32xbf16>, vector<4x32xbf16>, vector<4x32xbf16>, vector<4x32xbf16>, vector<4x32xbf16>, vector<4x32xbf16>, vector<4x32xbf16>, vector<4x32xbf16>, vector<4x32xbf16>, vector<4x32xbf16>, vector<4x32xbf16>, vector<4x32xbf16>, vector<4x32xbf16>, vector<4x32xbf16>, vector<4x32xbf16>, vector<4x32xbf16> -> vector<4x512xbf16>
    %137 = tpu.concatenate %135, %136 in 1 : vector<4x512xbf16>, vector<4x512xbf16> -> vector<4x1024xbf16>
    %138 = vector.extract_strided_slice %3 {offsets = [0, 0, 2], sizes = [4, 1, 32], strides = [1, 1, 1]} : vector<4x18x34xbf16> to vector<4x1x32xbf16>
    %139 = vector.shape_cast %138 : vector<4x1x32xbf16> to vector<4x32xbf16>
    %140 = vector.extract_strided_slice %3 {offsets = [0, 1, 2], sizes = [4, 1, 32], strides = [1, 1, 1]} : vector<4x18x34xbf16> to vector<4x1x32xbf16>
    %141 = vector.shape_cast %140 : vector<4x1x32xbf16> to vector<4x32xbf16>
    %142 = vector.extract_strided_slice %3 {offsets = [0, 1, 2], sizes = [4, 1, 32], strides = [1, 1, 1]} : vector<4x18x34xbf16> to vector<4x1x32xbf16>
    %143 = vector.shape_cast %142 : vector<4x1x32xbf16> to vector<4x32xbf16>
    %144 = vector.extract_strided_slice %3 {offsets = [0, 2, 2], sizes = [4, 1, 32], strides = [1, 1, 1]} : vector<4x18x34xbf16> to vector<4x1x32xbf16>
    %145 = vector.shape_cast %144 : vector<4x1x32xbf16> to vector<4x32xbf16>
    %146 = vector.extract_strided_slice %3 {offsets = [0, 2, 2], sizes = [4, 1, 32], strides = [1, 1, 1]} : vector<4x18x34xbf16> to vector<4x1x32xbf16>
    %147 = vector.shape_cast %146 : vector<4x1x32xbf16> to vector<4x32xbf16>
    %148 = vector.extract_strided_slice %3 {offsets = [0, 3, 2], sizes = [4, 1, 32], strides = [1, 1, 1]} : vector<4x18x34xbf16> to vector<4x1x32xbf16>
    %149 = vector.shape_cast %148 : vector<4x1x32xbf16> to vector<4x32xbf16>
    %150 = vector.extract_strided_slice %3 {offsets = [0, 3, 2], sizes = [4, 1, 32], strides = [1, 1, 1]} : vector<4x18x34xbf16> to vector<4x1x32xbf16>
    %151 = vector.shape_cast %150 : vector<4x1x32xbf16> to vector<4x32xbf16>
    %152 = vector.extract_strided_slice %3 {offsets = [0, 4, 2], sizes = [4, 1, 32], strides = [1, 1, 1]} : vector<4x18x34xbf16> to vector<4x1x32xbf16>
    %153 = vector.shape_cast %152 : vector<4x1x32xbf16> to vector<4x32xbf16>
    %154 = vector.extract_strided_slice %3 {offsets = [0, 4, 2], sizes = [4, 1, 32], strides = [1, 1, 1]} : vector<4x18x34xbf16> to vector<4x1x32xbf16>
    %155 = vector.shape_cast %154 : vector<4x1x32xbf16> to vector<4x32xbf16>
    %156 = vector.extract_strided_slice %3 {offsets = [0, 5, 2], sizes = [4, 1, 32], strides = [1, 1, 1]} : vector<4x18x34xbf16> to vector<4x1x32xbf16>
    %157 = vector.shape_cast %156 : vector<4x1x32xbf16> to vector<4x32xbf16>
    %158 = vector.extract_strided_slice %3 {offsets = [0, 5, 2], sizes = [4, 1, 32], strides = [1, 1, 1]} : vector<4x18x34xbf16> to vector<4x1x32xbf16>
    %159 = vector.shape_cast %158 : vector<4x1x32xbf16> to vector<4x32xbf16>
    %160 = vector.extract_strided_slice %3 {offsets = [0, 6, 2], sizes = [4, 1, 32], strides = [1, 1, 1]} : vector<4x18x34xbf16> to vector<4x1x32xbf16>
    %161 = vector.shape_cast %160 : vector<4x1x32xbf16> to vector<4x32xbf16>
    %162 = vector.extract_strided_slice %3 {offsets = [0, 6, 2], sizes = [4, 1, 32], strides = [1, 1, 1]} : vector<4x18x34xbf16> to vector<4x1x32xbf16>
    %163 = vector.shape_cast %162 : vector<4x1x32xbf16> to vector<4x32xbf16>
    %164 = vector.extract_strided_slice %3 {offsets = [0, 7, 2], sizes = [4, 1, 32], strides = [1, 1, 1]} : vector<4x18x34xbf16> to vector<4x1x32xbf16>
    %165 = vector.shape_cast %164 : vector<4x1x32xbf16> to vector<4x32xbf16>
    %166 = vector.extract_strided_slice %3 {offsets = [0, 7, 2], sizes = [4, 1, 32], strides = [1, 1, 1]} : vector<4x18x34xbf16> to vector<4x1x32xbf16>
    %167 = vector.shape_cast %166 : vector<4x1x32xbf16> to vector<4x32xbf16>
    %168 = vector.extract_strided_slice %3 {offsets = [0, 8, 2], sizes = [4, 1, 32], strides = [1, 1, 1]} : vector<4x18x34xbf16> to vector<4x1x32xbf16>
    %169 = vector.shape_cast %168 : vector<4x1x32xbf16> to vector<4x32xbf16>
    %170 = vector.extract_strided_slice %3 {offsets = [0, 8, 2], sizes = [4, 1, 32], strides = [1, 1, 1]} : vector<4x18x34xbf16> to vector<4x1x32xbf16>
    %171 = vector.shape_cast %170 : vector<4x1x32xbf16> to vector<4x32xbf16>
    %172 = vector.extract_strided_slice %3 {offsets = [0, 9, 2], sizes = [4, 1, 32], strides = [1, 1, 1]} : vector<4x18x34xbf16> to vector<4x1x32xbf16>
    %173 = vector.shape_cast %172 : vector<4x1x32xbf16> to vector<4x32xbf16>
    %174 = vector.extract_strided_slice %3 {offsets = [0, 9, 2], sizes = [4, 1, 32], strides = [1, 1, 1]} : vector<4x18x34xbf16> to vector<4x1x32xbf16>
    %175 = vector.shape_cast %174 : vector<4x1x32xbf16> to vector<4x32xbf16>
    %176 = vector.extract_strided_slice %3 {offsets = [0, 10, 2], sizes = [4, 1, 32], strides = [1, 1, 1]} : vector<4x18x34xbf16> to vector<4x1x32xbf16>
    %177 = vector.shape_cast %176 : vector<4x1x32xbf16> to vector<4x32xbf16>
    %178 = vector.extract_strided_slice %3 {offsets = [0, 10, 2], sizes = [4, 1, 32], strides = [1, 1, 1]} : vector<4x18x34xbf16> to vector<4x1x32xbf16>
    %179 = vector.shape_cast %178 : vector<4x1x32xbf16> to vector<4x32xbf16>
    %180 = vector.extract_strided_slice %3 {offsets = [0, 11, 2], sizes = [4, 1, 32], strides = [1, 1, 1]} : vector<4x18x34xbf16> to vector<4x1x32xbf16>
    %181 = vector.shape_cast %180 : vector<4x1x32xbf16> to vector<4x32xbf16>
    %182 = vector.extract_strided_slice %3 {offsets = [0, 11, 2], sizes = [4, 1, 32], strides = [1, 1, 1]} : vector<4x18x34xbf16> to vector<4x1x32xbf16>
    %183 = vector.shape_cast %182 : vector<4x1x32xbf16> to vector<4x32xbf16>
    %184 = vector.extract_strided_slice %3 {offsets = [0, 12, 2], sizes = [4, 1, 32], strides = [1, 1, 1]} : vector<4x18x34xbf16> to vector<4x1x32xbf16>
    %185 = vector.shape_cast %184 : vector<4x1x32xbf16> to vector<4x32xbf16>
    %186 = vector.extract_strided_slice %3 {offsets = [0, 12, 2], sizes = [4, 1, 32], strides = [1, 1, 1]} : vector<4x18x34xbf16> to vector<4x1x32xbf16>
    %187 = vector.shape_cast %186 : vector<4x1x32xbf16> to vector<4x32xbf16>
    %188 = vector.extract_strided_slice %3 {offsets = [0, 13, 2], sizes = [4, 1, 32], strides = [1, 1, 1]} : vector<4x18x34xbf16> to vector<4x1x32xbf16>
    %189 = vector.shape_cast %188 : vector<4x1x32xbf16> to vector<4x32xbf16>
    %190 = vector.extract_strided_slice %3 {offsets = [0, 13, 2], sizes = [4, 1, 32], strides = [1, 1, 1]} : vector<4x18x34xbf16> to vector<4x1x32xbf16>
    %191 = vector.shape_cast %190 : vector<4x1x32xbf16> to vector<4x32xbf16>
    %192 = vector.extract_strided_slice %3 {offsets = [0, 14, 2], sizes = [4, 1, 32], strides = [1, 1, 1]} : vector<4x18x34xbf16> to vector<4x1x32xbf16>
    %193 = vector.shape_cast %192 : vector<4x1x32xbf16> to vector<4x32xbf16>
    %194 = vector.extract_strided_slice %3 {offsets = [0, 14, 2], sizes = [4, 1, 32], strides = [1, 1, 1]} : vector<4x18x34xbf16> to vector<4x1x32xbf16>
    %195 = vector.shape_cast %194 : vector<4x1x32xbf16> to vector<4x32xbf16>
    %196 = vector.extract_strided_slice %3 {offsets = [0, 15, 2], sizes = [4, 1, 32], strides = [1, 1, 1]} : vector<4x18x34xbf16> to vector<4x1x32xbf16>
    %197 = vector.shape_cast %196 : vector<4x1x32xbf16> to vector<4x32xbf16>
    %198 = vector.extract_strided_slice %3 {offsets = [0, 15, 2], sizes = [4, 1, 32], strides = [1, 1, 1]} : vector<4x18x34xbf16> to vector<4x1x32xbf16>
    %199 = vector.shape_cast %198 : vector<4x1x32xbf16> to vector<4x32xbf16>
    %200 = vector.extract_strided_slice %3 {offsets = [0, 16, 2], sizes = [4, 1, 32], strides = [1, 1, 1]} : vector<4x18x34xbf16> to vector<4x1x32xbf16>
    %201 = vector.shape_cast %200 : vector<4x1x32xbf16> to vector<4x32xbf16>
    %202 = tpu.concatenate %139, %141, %143, %145, %147, %149, %151, %153, %155, %157, %159, %161, %163, %165, %167, %169 in 1 : vector<4x32xbf16>, vector<4x32xbf16>, vector<4x32xbf16>, vector<4x32xbf16>, vector<4x32xbf16>, vector<4x32xbf16>, vector<4x32xbf16>, vector<4x32xbf16>, vector<4x32xbf16>, vector<4x32xbf16>, vector<4x32xbf16>, vector<4x32xbf16>, vector<4x32xbf16>, vector<4x32xbf16>, vector<4x32xbf16>, vector<4x32xbf16> -> vector<4x512xbf16>
    %203 = tpu.concatenate %171, %173, %175, %177, %179, %181, %183, %185, %187, %189, %191, %193, %195, %197, %199, %201 in 1 : vector<4x32xbf16>, vector<4x32xbf16>, vector<4x32xbf16>, vector<4x32xbf16>, vector<4x32xbf16>, vector<4x32xbf16>, vector<4x32xbf16>, vector<4x32xbf16>, vector<4x32xbf16>, vector<4x32xbf16>, vector<4x32xbf16>, vector<4x32xbf16>, vector<4x32xbf16>, vector<4x32xbf16>, vector<4x32xbf16>, vector<4x32xbf16> -> vector<4x512xbf16>
    %204 = tpu.concatenate %202, %203 in 1 : vector<4x512xbf16>, vector<4x512xbf16> -> vector<4x1024xbf16>
    %205 = vector.extract_strided_slice %3 {offsets = [0, 1, 0], sizes = [4, 1, 32], strides = [1, 1, 1]} : vector<4x18x34xbf16> to vector<4x1x32xbf16>
    %206 = vector.shape_cast %205 : vector<4x1x32xbf16> to vector<4x32xbf16>
    %207 = vector.extract_strided_slice %3 {offsets = [0, 1, 0], sizes = [4, 1, 32], strides = [1, 1, 1]} : vector<4x18x34xbf16> to vector<4x1x32xbf16>
    %208 = vector.shape_cast %207 : vector<4x1x32xbf16> to vector<4x32xbf16>
    %209 = vector.extract_strided_slice %3 {offsets = [0, 2, 0], sizes = [4, 1, 32], strides = [1, 1, 1]} : vector<4x18x34xbf16> to vector<4x1x32xbf16>
    %210 = vector.shape_cast %209 : vector<4x1x32xbf16> to vector<4x32xbf16>
    %211 = vector.extract_strided_slice %3 {offsets = [0, 2, 0], sizes = [4, 1, 32], strides = [1, 1, 1]} : vector<4x18x34xbf16> to vector<4x1x32xbf16>
    %212 = vector.shape_cast %211 : vector<4x1x32xbf16> to vector<4x32xbf16>
    %213 = vector.extract_strided_slice %3 {offsets = [0, 3, 0], sizes = [4, 1, 32], strides = [1, 1, 1]} : vector<4x18x34xbf16> to vector<4x1x32xbf16>
    %214 = vector.shape_cast %213 : vector<4x1x32xbf16> to vector<4x32xbf16>
    %215 = vector.extract_strided_slice %3 {offsets = [0, 3, 0], sizes = [4, 1, 32], strides = [1, 1, 1]} : vector<4x18x34xbf16> to vector<4x1x32xbf16>
    %216 = vector.shape_cast %215 : vector<4x1x32xbf16> to vector<4x32xbf16>
    %217 = vector.extract_strided_slice %3 {offsets = [0, 4, 0], sizes = [4, 1, 32], strides = [1, 1, 1]} : vector<4x18x34xbf16> to vector<4x1x32xbf16>
    %218 = vector.shape_cast %217 : vector<4x1x32xbf16> to vector<4x32xbf16>
    %219 = vector.extract_strided_slice %3 {offsets = [0, 4, 0], sizes = [4, 1, 32], strides = [1, 1, 1]} : vector<4x18x34xbf16> to vector<4x1x32xbf16>
    %220 = vector.shape_cast %219 : vector<4x1x32xbf16> to vector<4x32xbf16>
    %221 = vector.extract_strided_slice %3 {offsets = [0, 5, 0], sizes = [4, 1, 32], strides = [1, 1, 1]} : vector<4x18x34xbf16> to vector<4x1x32xbf16>
    %222 = vector.shape_cast %221 : vector<4x1x32xbf16> to vector<4x32xbf16>
    %223 = vector.extract_strided_slice %3 {offsets = [0, 5, 0], sizes = [4, 1, 32], strides = [1, 1, 1]} : vector<4x18x34xbf16> to vector<4x1x32xbf16>
    %224 = vector.shape_cast %223 : vector<4x1x32xbf16> to vector<4x32xbf16>
    %225 = vector.extract_strided_slice %3 {offsets = [0, 6, 0], sizes = [4, 1, 32], strides = [1, 1, 1]} : vector<4x18x34xbf16> to vector<4x1x32xbf16>
    %226 = vector.shape_cast %225 : vector<4x1x32xbf16> to vector<4x32xbf16>
    %227 = vector.extract_strided_slice %3 {offsets = [0, 6, 0], sizes = [4, 1, 32], strides = [1, 1, 1]} : vector<4x18x34xbf16> to vector<4x1x32xbf16>
    %228 = vector.shape_cast %227 : vector<4x1x32xbf16> to vector<4x32xbf16>
    %229 = vector.extract_strided_slice %3 {offsets = [0, 7, 0], sizes = [4, 1, 32], strides = [1, 1, 1]} : vector<4x18x34xbf16> to vector<4x1x32xbf16>
    %230 = vector.shape_cast %229 : vector<4x1x32xbf16> to vector<4x32xbf16>
    %231 = vector.extract_strided_slice %3 {offsets = [0, 7, 0], sizes = [4, 1, 32], strides = [1, 1, 1]} : vector<4x18x34xbf16> to vector<4x1x32xbf16>
    %232 = vector.shape_cast %231 : vector<4x1x32xbf16> to vector<4x32xbf16>
    %233 = vector.extract_strided_slice %3 {offsets = [0, 8, 0], sizes = [4, 1, 32], strides = [1, 1, 1]} : vector<4x18x34xbf16> to vector<4x1x32xbf16>
    %234 = vector.shape_cast %233 : vector<4x1x32xbf16> to vector<4x32xbf16>
    %235 = vector.extract_strided_slice %3 {offsets = [0, 8, 0], sizes = [4, 1, 32], strides = [1, 1, 1]} : vector<4x18x34xbf16> to vector<4x1x32xbf16>
    %236 = vector.shape_cast %235 : vector<4x1x32xbf16> to vector<4x32xbf16>
    %237 = vector.extract_strided_slice %3 {offsets = [0, 9, 0], sizes = [4, 1, 32], strides = [1, 1, 1]} : vector<4x18x34xbf16> to vector<4x1x32xbf16>
    %238 = vector.shape_cast %237 : vector<4x1x32xbf16> to vector<4x32xbf16>
    %239 = vector.extract_strided_slice %3 {offsets = [0, 9, 0], sizes = [4, 1, 32], strides = [1, 1, 1]} : vector<4x18x34xbf16> to vector<4x1x32xbf16>
    %240 = vector.shape_cast %239 : vector<4x1x32xbf16> to vector<4x32xbf16>
    %241 = vector.extract_strided_slice %3 {offsets = [0, 10, 0], sizes = [4, 1, 32], strides = [1, 1, 1]} : vector<4x18x34xbf16> to vector<4x1x32xbf16>
    %242 = vector.shape_cast %241 : vector<4x1x32xbf16> to vector<4x32xbf16>
    %243 = vector.extract_strided_slice %3 {offsets = [0, 10, 0], sizes = [4, 1, 32], strides = [1, 1, 1]} : vector<4x18x34xbf16> to vector<4x1x32xbf16>
    %244 = vector.shape_cast %243 : vector<4x1x32xbf16> to vector<4x32xbf16>
    %245 = vector.extract_strided_slice %3 {offsets = [0, 11, 0], sizes = [4, 1, 32], strides = [1, 1, 1]} : vector<4x18x34xbf16> to vector<4x1x32xbf16>
    %246 = vector.shape_cast %245 : vector<4x1x32xbf16> to vector<4x32xbf16>
    %247 = vector.extract_strided_slice %3 {offsets = [0, 11, 0], sizes = [4, 1, 32], strides = [1, 1, 1]} : vector<4x18x34xbf16> to vector<4x1x32xbf16>
    %248 = vector.shape_cast %247 : vector<4x1x32xbf16> to vector<4x32xbf16>
    %249 = vector.extract_strided_slice %3 {offsets = [0, 12, 0], sizes = [4, 1, 32], strides = [1, 1, 1]} : vector<4x18x34xbf16> to vector<4x1x32xbf16>
    %250 = vector.shape_cast %249 : vector<4x1x32xbf16> to vector<4x32xbf16>
    %251 = vector.extract_strided_slice %3 {offsets = [0, 12, 0], sizes = [4, 1, 32], strides = [1, 1, 1]} : vector<4x18x34xbf16> to vector<4x1x32xbf16>
    %252 = vector.shape_cast %251 : vector<4x1x32xbf16> to vector<4x32xbf16>
    %253 = vector.extract_strided_slice %3 {offsets = [0, 13, 0], sizes = [4, 1, 32], strides = [1, 1, 1]} : vector<4x18x34xbf16> to vector<4x1x32xbf16>
    %254 = vector.shape_cast %253 : vector<4x1x32xbf16> to vector<4x32xbf16>
    %255 = vector.extract_strided_slice %3 {offsets = [0, 13, 0], sizes = [4, 1, 32], strides = [1, 1, 1]} : vector<4x18x34xbf16> to vector<4x1x32xbf16>
    %256 = vector.shape_cast %255 : vector<4x1x32xbf16> to vector<4x32xbf16>
    %257 = vector.extract_strided_slice %3 {offsets = [0, 14, 0], sizes = [4, 1, 32], strides = [1, 1, 1]} : vector<4x18x34xbf16> to vector<4x1x32xbf16>
    %258 = vector.shape_cast %257 : vector<4x1x32xbf16> to vector<4x32xbf16>
    %259 = vector.extract_strided_slice %3 {offsets = [0, 14, 0], sizes = [4, 1, 32], strides = [1, 1, 1]} : vector<4x18x34xbf16> to vector<4x1x32xbf16>
    %260 = vector.shape_cast %259 : vector<4x1x32xbf16> to vector<4x32xbf16>
    %261 = vector.extract_strided_slice %3 {offsets = [0, 15, 0], sizes = [4, 1, 32], strides = [1, 1, 1]} : vector<4x18x34xbf16> to vector<4x1x32xbf16>
    %262 = vector.shape_cast %261 : vector<4x1x32xbf16> to vector<4x32xbf16>
    %263 = vector.extract_strided_slice %3 {offsets = [0, 15, 0], sizes = [4, 1, 32], strides = [1, 1, 1]} : vector<4x18x34xbf16> to vector<4x1x32xbf16>
    %264 = vector.shape_cast %263 : vector<4x1x32xbf16> to vector<4x32xbf16>
    %265 = vector.extract_strided_slice %3 {offsets = [0, 16, 0], sizes = [4, 1, 32], strides = [1, 1, 1]} : vector<4x18x34xbf16> to vector<4x1x32xbf16>
    %266 = vector.shape_cast %265 : vector<4x1x32xbf16> to vector<4x32xbf16>
    %267 = vector.extract_strided_slice %3 {offsets = [0, 16, 0], sizes = [4, 1, 32], strides = [1, 1, 1]} : vector<4x18x34xbf16> to vector<4x1x32xbf16>
    %268 = vector.shape_cast %267 : vector<4x1x32xbf16> to vector<4x32xbf16>
    %269 = tpu.concatenate %206, %208, %210, %212, %214, %216, %218, %220, %222, %224, %226, %228, %230, %232, %234, %236 in 1 : vector<4x32xbf16>, vector<4x32xbf16>, vector<4x32xbf16>, vector<4x32xbf16>, vector<4x32xbf16>, vector<4x32xbf16>, vector<4x32xbf16>, vector<4x32xbf16>, vector<4x32xbf16>, vector<4x32xbf16>, vector<4x32xbf16>, vector<4x32xbf16>, vector<4x32xbf16>, vector<4x32xbf16>, vector<4x32xbf16>, vector<4x32xbf16> -> vector<4x512xbf16>
    %270 = tpu.concatenate %238, %240, %242, %244, %246, %248, %250, %252, %254, %256, %258, %260, %262, %264, %266, %268 in 1 : vector<4x32xbf16>, vector<4x32xbf16>, vector<4x32xbf16>, vector<4x32xbf16>, vector<4x32xbf16>, vector<4x32xbf16>, vector<4x32xbf16>, vector<4x32xbf16>, vector<4x32xbf16>, vector<4x32xbf16>, vector<4x32xbf16>, vector<4x32xbf16>, vector<4x32xbf16>, vector<4x32xbf16>, vector<4x32xbf16>, vector<4x32xbf16> -> vector<4x512xbf16>
    %271 = tpu.concatenate %269, %270 in 1 : vector<4x512xbf16>, vector<4x512xbf16> -> vector<4x1024xbf16>
    %272 = vector.extract_strided_slice %3 {offsets = [0, 1, 1], sizes = [4, 1, 32], strides = [1, 1, 1]} : vector<4x18x34xbf16> to vector<4x1x32xbf16>
    %273 = vector.shape_cast %272 : vector<4x1x32xbf16> to vector<4x32xbf16>
    %274 = vector.extract_strided_slice %3 {offsets = [0, 1, 1], sizes = [4, 1, 32], strides = [1, 1, 1]} : vector<4x18x34xbf16> to vector<4x1x32xbf16>
    %275 = vector.shape_cast %274 : vector<4x1x32xbf16> to vector<4x32xbf16>
    %276 = vector.extract_strided_slice %3 {offsets = [0, 2, 1], sizes = [4, 1, 32], strides = [1, 1, 1]} : vector<4x18x34xbf16> to vector<4x1x32xbf16>
    %277 = vector.shape_cast %276 : vector<4x1x32xbf16> to vector<4x32xbf16>
    %278 = vector.extract_strided_slice %3 {offsets = [0, 2, 1], sizes = [4, 1, 32], strides = [1, 1, 1]} : vector<4x18x34xbf16> to vector<4x1x32xbf16>
    %279 = vector.shape_cast %278 : vector<4x1x32xbf16> to vector<4x32xbf16>
    %280 = vector.extract_strided_slice %3 {offsets = [0, 3, 1], sizes = [4, 1, 32], strides = [1, 1, 1]} : vector<4x18x34xbf16> to vector<4x1x32xbf16>
    %281 = vector.shape_cast %280 : vector<4x1x32xbf16> to vector<4x32xbf16>
    %282 = vector.extract_strided_slice %3 {offsets = [0, 3, 1], sizes = [4, 1, 32], strides = [1, 1, 1]} : vector<4x18x34xbf16> to vector<4x1x32xbf16>
    %283 = vector.shape_cast %282 : vector<4x1x32xbf16> to vector<4x32xbf16>
    %284 = vector.extract_strided_slice %3 {offsets = [0, 4, 1], sizes = [4, 1, 32], strides = [1, 1, 1]} : vector<4x18x34xbf16> to vector<4x1x32xbf16>
    %285 = vector.shape_cast %284 : vector<4x1x32xbf16> to vector<4x32xbf16>
    %286 = vector.extract_strided_slice %3 {offsets = [0, 4, 1], sizes = [4, 1, 32], strides = [1, 1, 1]} : vector<4x18x34xbf16> to vector<4x1x32xbf16>
    %287 = vector.shape_cast %286 : vector<4x1x32xbf16> to vector<4x32xbf16>
    %288 = vector.extract_strided_slice %3 {offsets = [0, 5, 1], sizes = [4, 1, 32], strides = [1, 1, 1]} : vector<4x18x34xbf16> to vector<4x1x32xbf16>
    %289 = vector.shape_cast %288 : vector<4x1x32xbf16> to vector<4x32xbf16>
    %290 = vector.extract_strided_slice %3 {offsets = [0, 5, 1], sizes = [4, 1, 32], strides = [1, 1, 1]} : vector<4x18x34xbf16> to vector<4x1x32xbf16>
    %291 = vector.shape_cast %290 : vector<4x1x32xbf16> to vector<4x32xbf16>
    %292 = vector.extract_strided_slice %3 {offsets = [0, 6, 1], sizes = [4, 1, 32], strides = [1, 1, 1]} : vector<4x18x34xbf16> to vector<4x1x32xbf16>
    %293 = vector.shape_cast %292 : vector<4x1x32xbf16> to vector<4x32xbf16>
    %294 = vector.extract_strided_slice %3 {offsets = [0, 6, 1], sizes = [4, 1, 32], strides = [1, 1, 1]} : vector<4x18x34xbf16> to vector<4x1x32xbf16>
    %295 = vector.shape_cast %294 : vector<4x1x32xbf16> to vector<4x32xbf16>
    %296 = vector.extract_strided_slice %3 {offsets = [0, 7, 1], sizes = [4, 1, 32], strides = [1, 1, 1]} : vector<4x18x34xbf16> to vector<4x1x32xbf16>
    %297 = vector.shape_cast %296 : vector<4x1x32xbf16> to vector<4x32xbf16>
    %298 = vector.extract_strided_slice %3 {offsets = [0, 7, 1], sizes = [4, 1, 32], strides = [1, 1, 1]} : vector<4x18x34xbf16> to vector<4x1x32xbf16>
    %299 = vector.shape_cast %298 : vector<4x1x32xbf16> to vector<4x32xbf16>
    %300 = vector.extract_strided_slice %3 {offsets = [0, 8, 1], sizes = [4, 1, 32], strides = [1, 1, 1]} : vector<4x18x34xbf16> to vector<4x1x32xbf16>
    %301 = vector.shape_cast %300 : vector<4x1x32xbf16> to vector<4x32xbf16>
    %302 = vector.extract_strided_slice %3 {offsets = [0, 8, 1], sizes = [4, 1, 32], strides = [1, 1, 1]} : vector<4x18x34xbf16> to vector<4x1x32xbf16>
    %303 = vector.shape_cast %302 : vector<4x1x32xbf16> to vector<4x32xbf16>
    %304 = vector.extract_strided_slice %3 {offsets = [0, 9, 1], sizes = [4, 1, 32], strides = [1, 1, 1]} : vector<4x18x34xbf16> to vector<4x1x32xbf16>
    %305 = vector.shape_cast %304 : vector<4x1x32xbf16> to vector<4x32xbf16>
    %306 = vector.extract_strided_slice %3 {offsets = [0, 9, 1], sizes = [4, 1, 32], strides = [1, 1, 1]} : vector<4x18x34xbf16> to vector<4x1x32xbf16>
    %307 = vector.shape_cast %306 : vector<4x1x32xbf16> to vector<4x32xbf16>
    %308 = vector.extract_strided_slice %3 {offsets = [0, 10, 1], sizes = [4, 1, 32], strides = [1, 1, 1]} : vector<4x18x34xbf16> to vector<4x1x32xbf16>
    %309 = vector.shape_cast %308 : vector<4x1x32xbf16> to vector<4x32xbf16>
    %310 = vector.extract_strided_slice %3 {offsets = [0, 10, 1], sizes = [4, 1, 32], strides = [1, 1, 1]} : vector<4x18x34xbf16> to vector<4x1x32xbf16>
    %311 = vector.shape_cast %310 : vector<4x1x32xbf16> to vector<4x32xbf16>
    %312 = vector.extract_strided_slice %3 {offsets = [0, 11, 1], sizes = [4, 1, 32], strides = [1, 1, 1]} : vector<4x18x34xbf16> to vector<4x1x32xbf16>
    %313 = vector.shape_cast %312 : vector<4x1x32xbf16> to vector<4x32xbf16>
    %314 = vector.extract_strided_slice %3 {offsets = [0, 11, 1], sizes = [4, 1, 32], strides = [1, 1, 1]} : vector<4x18x34xbf16> to vector<4x1x32xbf16>
    %315 = vector.shape_cast %314 : vector<4x1x32xbf16> to vector<4x32xbf16>
    %316 = vector.extract_strided_slice %3 {offsets = [0, 12, 1], sizes = [4, 1, 32], strides = [1, 1, 1]} : vector<4x18x34xbf16> to vector<4x1x32xbf16>
    %317 = vector.shape_cast %316 : vector<4x1x32xbf16> to vector<4x32xbf16>
    %318 = vector.extract_strided_slice %3 {offsets = [0, 12, 1], sizes = [4, 1, 32], strides = [1, 1, 1]} : vector<4x18x34xbf16> to vector<4x1x32xbf16>
    %319 = vector.shape_cast %318 : vector<4x1x32xbf16> to vector<4x32xbf16>
    %320 = vector.extract_strided_slice %3 {offsets = [0, 13, 1], sizes = [4, 1, 32], strides = [1, 1, 1]} : vector<4x18x34xbf16> to vector<4x1x32xbf16>
    %321 = vector.shape_cast %320 : vector<4x1x32xbf16> to vector<4x32xbf16>
    %322 = vector.extract_strided_slice %3 {offsets = [0, 13, 1], sizes = [4, 1, 32], strides = [1, 1, 1]} : vector<4x18x34xbf16> to vector<4x1x32xbf16>
    %323 = vector.shape_cast %322 : vector<4x1x32xbf16> to vector<4x32xbf16>
    %324 = vector.extract_strided_slice %3 {offsets = [0, 14, 1], sizes = [4, 1, 32], strides = [1, 1, 1]} : vector<4x18x34xbf16> to vector<4x1x32xbf16>
    %325 = vector.shape_cast %324 : vector<4x1x32xbf16> to vector<4x32xbf16>
    %326 = vector.extract_strided_slice %3 {offsets = [0, 14, 1], sizes = [4, 1, 32], strides = [1, 1, 1]} : vector<4x18x34xbf16> to vector<4x1x32xbf16>
    %327 = vector.shape_cast %326 : vector<4x1x32xbf16> to vector<4x32xbf16>
    %328 = vector.extract_strided_slice %3 {offsets = [0, 15, 1], sizes = [4, 1, 32], strides = [1, 1, 1]} : vector<4x18x34xbf16> to vector<4x1x32xbf16>
    %329 = vector.shape_cast %328 : vector<4x1x32xbf16> to vector<4x32xbf16>
    %330 = vector.extract_strided_slice %3 {offsets = [0, 15, 1], sizes = [4, 1, 32], strides = [1, 1, 1]} : vector<4x18x34xbf16> to vector<4x1x32xbf16>
    %331 = vector.shape_cast %330 : vector<4x1x32xbf16> to vector<4x32xbf16>
    %332 = vector.extract_strided_slice %3 {offsets = [0, 16, 1], sizes = [4, 1, 32], strides = [1, 1, 1]} : vector<4x18x34xbf16> to vector<4x1x32xbf16>
    %333 = vector.shape_cast %332 : vector<4x1x32xbf16> to vector<4x32xbf16>
    %334 = vector.extract_strided_slice %3 {offsets = [0, 16, 1], sizes = [4, 1, 32], strides = [1, 1, 1]} : vector<4x18x34xbf16> to vector<4x1x32xbf16>
    %335 = vector.shape_cast %334 : vector<4x1x32xbf16> to vector<4x32xbf16>
    %336 = tpu.concatenate %273, %275, %277, %279, %281, %283, %285, %287, %289, %291, %293, %295, %297, %299, %301, %303 in 1 : vector<4x32xbf16>, vector<4x32xbf16>, vector<4x32xbf16>, vector<4x32xbf16>, vector<4x32xbf16>, vector<4x32xbf16>, vector<4x32xbf16>, vector<4x32xbf16>, vector<4x32xbf16>, vector<4x32xbf16>, vector<4x32xbf16>, vector<4x32xbf16>, vector<4x32xbf16>, vector<4x32xbf16>, vector<4x32xbf16>, vector<4x32xbf16> -> vector<4x512xbf16>
    %337 = tpu.concatenate %305, %307, %309, %311, %313, %315, %317, %319, %321, %323, %325, %327, %329, %331, %333, %335 in 1 : vector<4x32xbf16>, vector<4x32xbf16>, vector<4x32xbf16>, vector<4x32xbf16>, vector<4x32xbf16>, vector<4x32xbf16>, vector<4x32xbf16>, vector<4x32xbf16>, vector<4x32xbf16>, vector<4x32xbf16>, vector<4x32xbf16>, vector<4x32xbf16>, vector<4x32xbf16>, vector<4x32xbf16>, vector<4x32xbf16>, vector<4x32xbf16> -> vector<4x512xbf16>
    %338 = tpu.concatenate %336, %337 in 1 : vector<4x512xbf16>, vector<4x512xbf16> -> vector<4x1024xbf16>
    %339 = vector.extract_strided_slice %3 {offsets = [0, 1, 2], sizes = [4, 1, 32], strides = [1, 1, 1]} : vector<4x18x34xbf16> to vector<4x1x32xbf16>
    %340 = vector.shape_cast %339 : vector<4x1x32xbf16> to vector<4x32xbf16>
    %341 = vector.extract_strided_slice %3 {offsets = [0, 1, 2], sizes = [4, 1, 32], strides = [1, 1, 1]} : vector<4x18x34xbf16> to vector<4x1x32xbf16>
    %342 = vector.shape_cast %341 : vector<4x1x32xbf16> to vector<4x32xbf16>
    %343 = vector.extract_strided_slice %3 {offsets = [0, 2, 2], sizes = [4, 1, 32], strides = [1, 1, 1]} : vector<4x18x34xbf16> to vector<4x1x32xbf16>
    %344 = vector.shape_cast %343 : vector<4x1x32xbf16> to vector<4x32xbf16>
    %345 = vector.extract_strided_slice %3 {offsets = [0, 2, 2], sizes = [4, 1, 32], strides = [1, 1, 1]} : vector<4x18x34xbf16> to vector<4x1x32xbf16>
    %346 = vector.shape_cast %345 : vector<4x1x32xbf16> to vector<4x32xbf16>
    %347 = vector.extract_strided_slice %3 {offsets = [0, 3, 2], sizes = [4, 1, 32], strides = [1, 1, 1]} : vector<4x18x34xbf16> to vector<4x1x32xbf16>
    %348 = vector.shape_cast %347 : vector<4x1x32xbf16> to vector<4x32xbf16>
    %349 = vector.extract_strided_slice %3 {offsets = [0, 3, 2], sizes = [4, 1, 32], strides = [1, 1, 1]} : vector<4x18x34xbf16> to vector<4x1x32xbf16>
    %350 = vector.shape_cast %349 : vector<4x1x32xbf16> to vector<4x32xbf16>
    %351 = vector.extract_strided_slice %3 {offsets = [0, 4, 2], sizes = [4, 1, 32], strides = [1, 1, 1]} : vector<4x18x34xbf16> to vector<4x1x32xbf16>
    %352 = vector.shape_cast %351 : vector<4x1x32xbf16> to vector<4x32xbf16>
    %353 = vector.extract_strided_slice %3 {offsets = [0, 4, 2], sizes = [4, 1, 32], strides = [1, 1, 1]} : vector<4x18x34xbf16> to vector<4x1x32xbf16>
    %354 = vector.shape_cast %353 : vector<4x1x32xbf16> to vector<4x32xbf16>
    %355 = vector.extract_strided_slice %3 {offsets = [0, 5, 2], sizes = [4, 1, 32], strides = [1, 1, 1]} : vector<4x18x34xbf16> to vector<4x1x32xbf16>
    %356 = vector.shape_cast %355 : vector<4x1x32xbf16> to vector<4x32xbf16>
    %357 = vector.extract_strided_slice %3 {offsets = [0, 5, 2], sizes = [4, 1, 32], strides = [1, 1, 1]} : vector<4x18x34xbf16> to vector<4x1x32xbf16>
    %358 = vector.shape_cast %357 : vector<4x1x32xbf16> to vector<4x32xbf16>
    %359 = vector.extract_strided_slice %3 {offsets = [0, 6, 2], sizes = [4, 1, 32], strides = [1, 1, 1]} : vector<4x18x34xbf16> to vector<4x1x32xbf16>
    %360 = vector.shape_cast %359 : vector<4x1x32xbf16> to vector<4x32xbf16>
    %361 = vector.extract_strided_slice %3 {offsets = [0, 6, 2], sizes = [4, 1, 32], strides = [1, 1, 1]} : vector<4x18x34xbf16> to vector<4x1x32xbf16>
    %362 = vector.shape_cast %361 : vector<4x1x32xbf16> to vector<4x32xbf16>
    %363 = vector.extract_strided_slice %3 {offsets = [0, 7, 2], sizes = [4, 1, 32], strides = [1, 1, 1]} : vector<4x18x34xbf16> to vector<4x1x32xbf16>
    %364 = vector.shape_cast %363 : vector<4x1x32xbf16> to vector<4x32xbf16>
    %365 = vector.extract_strided_slice %3 {offsets = [0, 7, 2], sizes = [4, 1, 32], strides = [1, 1, 1]} : vector<4x18x34xbf16> to vector<4x1x32xbf16>
    %366 = vector.shape_cast %365 : vector<4x1x32xbf16> to vector<4x32xbf16>
    %367 = vector.extract_strided_slice %3 {offsets = [0, 8, 2], sizes = [4, 1, 32], strides = [1, 1, 1]} : vector<4x18x34xbf16> to vector<4x1x32xbf16>
    %368 = vector.shape_cast %367 : vector<4x1x32xbf16> to vector<4x32xbf16>
    %369 = vector.extract_strided_slice %3 {offsets = [0, 8, 2], sizes = [4, 1, 32], strides = [1, 1, 1]} : vector<4x18x34xbf16> to vector<4x1x32xbf16>
    %370 = vector.shape_cast %369 : vector<4x1x32xbf16> to vector<4x32xbf16>
    %371 = vector.extract_strided_slice %3 {offsets = [0, 9, 2], sizes = [4, 1, 32], strides = [1, 1, 1]} : vector<4x18x34xbf16> to vector<4x1x32xbf16>
    %372 = vector.shape_cast %371 : vector<4x1x32xbf16> to vector<4x32xbf16>
    %373 = vector.extract_strided_slice %3 {offsets = [0, 9, 2], sizes = [4, 1, 32], strides = [1, 1, 1]} : vector<4x18x34xbf16> to vector<4x1x32xbf16>
    %374 = vector.shape_cast %373 : vector<4x1x32xbf16> to vector<4x32xbf16>
    %375 = vector.extract_strided_slice %3 {offsets = [0, 10, 2], sizes = [4, 1, 32], strides = [1, 1, 1]} : vector<4x18x34xbf16> to vector<4x1x32xbf16>
    %376 = vector.shape_cast %375 : vector<4x1x32xbf16> to vector<4x32xbf16>
    %377 = vector.extract_strided_slice %3 {offsets = [0, 10, 2], sizes = [4, 1, 32], strides = [1, 1, 1]} : vector<4x18x34xbf16> to vector<4x1x32xbf16>
    %378 = vector.shape_cast %377 : vector<4x1x32xbf16> to vector<4x32xbf16>
    %379 = vector.extract_strided_slice %3 {offsets = [0, 11, 2], sizes = [4, 1, 32], strides = [1, 1, 1]} : vector<4x18x34xbf16> to vector<4x1x32xbf16>
    %380 = vector.shape_cast %379 : vector<4x1x32xbf16> to vector<4x32xbf16>
    %381 = vector.extract_strided_slice %3 {offsets = [0, 11, 2], sizes = [4, 1, 32], strides = [1, 1, 1]} : vector<4x18x34xbf16> to vector<4x1x32xbf16>
    %382 = vector.shape_cast %381 : vector<4x1x32xbf16> to vector<4x32xbf16>
    %383 = vector.extract_strided_slice %3 {offsets = [0, 12, 2], sizes = [4, 1, 32], strides = [1, 1, 1]} : vector<4x18x34xbf16> to vector<4x1x32xbf16>
    %384 = vector.shape_cast %383 : vector<4x1x32xbf16> to vector<4x32xbf16>
    %385 = vector.extract_strided_slice %3 {offsets = [0, 12, 2], sizes = [4, 1, 32], strides = [1, 1, 1]} : vector<4x18x34xbf16> to vector<4x1x32xbf16>
    %386 = vector.shape_cast %385 : vector<4x1x32xbf16> to vector<4x32xbf16>
    %387 = vector.extract_strided_slice %3 {offsets = [0, 13, 2], sizes = [4, 1, 32], strides = [1, 1, 1]} : vector<4x18x34xbf16> to vector<4x1x32xbf16>
    %388 = vector.shape_cast %387 : vector<4x1x32xbf16> to vector<4x32xbf16>
    %389 = vector.extract_strided_slice %3 {offsets = [0, 13, 2], sizes = [4, 1, 32], strides = [1, 1, 1]} : vector<4x18x34xbf16> to vector<4x1x32xbf16>
    %390 = vector.shape_cast %389 : vector<4x1x32xbf16> to vector<4x32xbf16>
    %391 = vector.extract_strided_slice %3 {offsets = [0, 14, 2], sizes = [4, 1, 32], strides = [1, 1, 1]} : vector<4x18x34xbf16> to vector<4x1x32xbf16>
    %392 = vector.shape_cast %391 : vector<4x1x32xbf16> to vector<4x32xbf16>
    %393 = vector.extract_strided_slice %3 {offsets = [0, 14, 2], sizes = [4, 1, 32], strides = [1, 1, 1]} : vector<4x18x34xbf16> to vector<4x1x32xbf16>
    %394 = vector.shape_cast %393 : vector<4x1x32xbf16> to vector<4x32xbf16>
    %395 = vector.extract_strided_slice %3 {offsets = [0, 15, 2], sizes = [4, 1, 32], strides = [1, 1, 1]} : vector<4x18x34xbf16> to vector<4x1x32xbf16>
    %396 = vector.shape_cast %395 : vector<4x1x32xbf16> to vector<4x32xbf16>
    %397 = vector.extract_strided_slice %3 {offsets = [0, 15, 2], sizes = [4, 1, 32], strides = [1, 1, 1]} : vector<4x18x34xbf16> to vector<4x1x32xbf16>
    %398 = vector.shape_cast %397 : vector<4x1x32xbf16> to vector<4x32xbf16>
    %399 = vector.extract_strided_slice %3 {offsets = [0, 16, 2], sizes = [4, 1, 32], strides = [1, 1, 1]} : vector<4x18x34xbf16> to vector<4x1x32xbf16>
    %400 = vector.shape_cast %399 : vector<4x1x32xbf16> to vector<4x32xbf16>
    %401 = vector.extract_strided_slice %3 {offsets = [0, 16, 2], sizes = [4, 1, 32], strides = [1, 1, 1]} : vector<4x18x34xbf16> to vector<4x1x32xbf16>
    %402 = vector.shape_cast %401 : vector<4x1x32xbf16> to vector<4x32xbf16>
    %403 = tpu.concatenate %340, %342, %344, %346, %348, %350, %352, %354, %356, %358, %360, %362, %364, %366, %368, %370 in 1 : vector<4x32xbf16>, vector<4x32xbf16>, vector<4x32xbf16>, vector<4x32xbf16>, vector<4x32xbf16>, vector<4x32xbf16>, vector<4x32xbf16>, vector<4x32xbf16>, vector<4x32xbf16>, vector<4x32xbf16>, vector<4x32xbf16>, vector<4x32xbf16>, vector<4x32xbf16>, vector<4x32xbf16>, vector<4x32xbf16>, vector<4x32xbf16> -> vector<4x512xbf16>
    %404 = tpu.concatenate %372, %374, %376, %378, %380, %382, %384, %386, %388, %390, %392, %394, %396, %398, %400, %402 in 1 : vector<4x32xbf16>, vector<4x32xbf16>, vector<4x32xbf16>, vector<4x32xbf16>, vector<4x32xbf16>, vector<4x32xbf16>, vector<4x32xbf16>, vector<4x32xbf16>, vector<4x32xbf16>, vector<4x32xbf16>, vector<4x32xbf16>, vector<4x32xbf16>, vector<4x32xbf16>, vector<4x32xbf16>, vector<4x32xbf16>, vector<4x32xbf16> -> vector<4x512xbf16>
    %405 = tpu.concatenate %403, %404 in 1 : vector<4x512xbf16>, vector<4x512xbf16> -> vector<4x1024xbf16>
    %406 = vector.extract_strided_slice %3 {offsets = [0, 1, 0], sizes = [4, 1, 32], strides = [1, 1, 1]} : vector<4x18x34xbf16> to vector<4x1x32xbf16>
    %407 = vector.shape_cast %406 : vector<4x1x32xbf16> to vector<4x32xbf16>
    %408 = vector.extract_strided_slice %3 {offsets = [0, 2, 0], sizes = [4, 1, 32], strides = [1, 1, 1]} : vector<4x18x34xbf16> to vector<4x1x32xbf16>
    %409 = vector.shape_cast %408 : vector<4x1x32xbf16> to vector<4x32xbf16>
    %410 = vector.extract_strided_slice %3 {offsets = [0, 2, 0], sizes = [4, 1, 32], strides = [1, 1, 1]} : vector<4x18x34xbf16> to vector<4x1x32xbf16>
    %411 = vector.shape_cast %410 : vector<4x1x32xbf16> to vector<4x32xbf16>
    %412 = vector.extract_strided_slice %3 {offsets = [0, 3, 0], sizes = [4, 1, 32], strides = [1, 1, 1]} : vector<4x18x34xbf16> to vector<4x1x32xbf16>
    %413 = vector.shape_cast %412 : vector<4x1x32xbf16> to vector<4x32xbf16>
    %414 = vector.extract_strided_slice %3 {offsets = [0, 3, 0], sizes = [4, 1, 32], strides = [1, 1, 1]} : vector<4x18x34xbf16> to vector<4x1x32xbf16>
    %415 = vector.shape_cast %414 : vector<4x1x32xbf16> to vector<4x32xbf16>
    %416 = vector.extract_strided_slice %3 {offsets = [0, 4, 0], sizes = [4, 1, 32], strides = [1, 1, 1]} : vector<4x18x34xbf16> to vector<4x1x32xbf16>
    %417 = vector.shape_cast %416 : vector<4x1x32xbf16> to vector<4x32xbf16>
    %418 = vector.extract_strided_slice %3 {offsets = [0, 4, 0], sizes = [4, 1, 32], strides = [1, 1, 1]} : vector<4x18x34xbf16> to vector<4x1x32xbf16>
    %419 = vector.shape_cast %418 : vector<4x1x32xbf16> to vector<4x32xbf16>
    %420 = vector.extract_strided_slice %3 {offsets = [0, 5, 0], sizes = [4, 1, 32], strides = [1, 1, 1]} : vector<4x18x34xbf16> to vector<4x1x32xbf16>
    %421 = vector.shape_cast %420 : vector<4x1x32xbf16> to vector<4x32xbf16>
    %422 = vector.extract_strided_slice %3 {offsets = [0, 5, 0], sizes = [4, 1, 32], strides = [1, 1, 1]} : vector<4x18x34xbf16> to vector<4x1x32xbf16>
    %423 = vector.shape_cast %422 : vector<4x1x32xbf16> to vector<4x32xbf16>
    %424 = vector.extract_strided_slice %3 {offsets = [0, 6, 0], sizes = [4, 1, 32], strides = [1, 1, 1]} : vector<4x18x34xbf16> to vector<4x1x32xbf16>
    %425 = vector.shape_cast %424 : vector<4x1x32xbf16> to vector<4x32xbf16>
    %426 = vector.extract_strided_slice %3 {offsets = [0, 6, 0], sizes = [4, 1, 32], strides = [1, 1, 1]} : vector<4x18x34xbf16> to vector<4x1x32xbf16>
    %427 = vector.shape_cast %426 : vector<4x1x32xbf16> to vector<4x32xbf16>
    %428 = vector.extract_strided_slice %3 {offsets = [0, 7, 0], sizes = [4, 1, 32], strides = [1, 1, 1]} : vector<4x18x34xbf16> to vector<4x1x32xbf16>
    %429 = vector.shape_cast %428 : vector<4x1x32xbf16> to vector<4x32xbf16>
    %430 = vector.extract_strided_slice %3 {offsets = [0, 7, 0], sizes = [4, 1, 32], strides = [1, 1, 1]} : vector<4x18x34xbf16> to vector<4x1x32xbf16>
    %431 = vector.shape_cast %430 : vector<4x1x32xbf16> to vector<4x32xbf16>
    %432 = vector.extract_strided_slice %3 {offsets = [0, 8, 0], sizes = [4, 1, 32], strides = [1, 1, 1]} : vector<4x18x34xbf16> to vector<4x1x32xbf16>
    %433 = vector.shape_cast %432 : vector<4x1x32xbf16> to vector<4x32xbf16>
    %434 = vector.extract_strided_slice %3 {offsets = [0, 8, 0], sizes = [4, 1, 32], strides = [1, 1, 1]} : vector<4x18x34xbf16> to vector<4x1x32xbf16>
    %435 = vector.shape_cast %434 : vector<4x1x32xbf16> to vector<4x32xbf16>
    %436 = vector.extract_strided_slice %3 {offsets = [0, 9, 0], sizes = [4, 1, 32], strides = [1, 1, 1]} : vector<4x18x34xbf16> to vector<4x1x32xbf16>
    %437 = vector.shape_cast %436 : vector<4x1x32xbf16> to vector<4x32xbf16>
    %438 = vector.extract_strided_slice %3 {offsets = [0, 9, 0], sizes = [4, 1, 32], strides = [1, 1, 1]} : vector<4x18x34xbf16> to vector<4x1x32xbf16>
    %439 = vector.shape_cast %438 : vector<4x1x32xbf16> to vector<4x32xbf16>
    %440 = vector.extract_strided_slice %3 {offsets = [0, 10, 0], sizes = [4, 1, 32], strides = [1, 1, 1]} : vector<4x18x34xbf16> to vector<4x1x32xbf16>
    %441 = vector.shape_cast %440 : vector<4x1x32xbf16> to vector<4x32xbf16>
    %442 = vector.extract_strided_slice %3 {offsets = [0, 10, 0], sizes = [4, 1, 32], strides = [1, 1, 1]} : vector<4x18x34xbf16> to vector<4x1x32xbf16>
    %443 = vector.shape_cast %442 : vector<4x1x32xbf16> to vector<4x32xbf16>
    %444 = vector.extract_strided_slice %3 {offsets = [0, 11, 0], sizes = [4, 1, 32], strides = [1, 1, 1]} : vector<4x18x34xbf16> to vector<4x1x32xbf16>
    %445 = vector.shape_cast %444 : vector<4x1x32xbf16> to vector<4x32xbf16>
    %446 = vector.extract_strided_slice %3 {offsets = [0, 11, 0], sizes = [4, 1, 32], strides = [1, 1, 1]} : vector<4x18x34xbf16> to vector<4x1x32xbf16>
    %447 = vector.shape_cast %446 : vector<4x1x32xbf16> to vector<4x32xbf16>
    %448 = vector.extract_strided_slice %3 {offsets = [0, 12, 0], sizes = [4, 1, 32], strides = [1, 1, 1]} : vector<4x18x34xbf16> to vector<4x1x32xbf16>
    %449 = vector.shape_cast %448 : vector<4x1x32xbf16> to vector<4x32xbf16>
    %450 = vector.extract_strided_slice %3 {offsets = [0, 12, 0], sizes = [4, 1, 32], strides = [1, 1, 1]} : vector<4x18x34xbf16> to vector<4x1x32xbf16>
    %451 = vector.shape_cast %450 : vector<4x1x32xbf16> to vector<4x32xbf16>
    %452 = vector.extract_strided_slice %3 {offsets = [0, 13, 0], sizes = [4, 1, 32], strides = [1, 1, 1]} : vector<4x18x34xbf16> to vector<4x1x32xbf16>
    %453 = vector.shape_cast %452 : vector<4x1x32xbf16> to vector<4x32xbf16>
    %454 = vector.extract_strided_slice %3 {offsets = [0, 13, 0], sizes = [4, 1, 32], strides = [1, 1, 1]} : vector<4x18x34xbf16> to vector<4x1x32xbf16>
    %455 = vector.shape_cast %454 : vector<4x1x32xbf16> to vector<4x32xbf16>
    %456 = vector.extract_strided_slice %3 {offsets = [0, 14, 0], sizes = [4, 1, 32], strides = [1, 1, 1]} : vector<4x18x34xbf16> to vector<4x1x32xbf16>
    %457 = vector.shape_cast %456 : vector<4x1x32xbf16> to vector<4x32xbf16>
    %458 = vector.extract_strided_slice %3 {offsets = [0, 14, 0], sizes = [4, 1, 32], strides = [1, 1, 1]} : vector<4x18x34xbf16> to vector<4x1x32xbf16>
    %459 = vector.shape_cast %458 : vector<4x1x32xbf16> to vector<4x32xbf16>
    %460 = vector.extract_strided_slice %3 {offsets = [0, 15, 0], sizes = [4, 1, 32], strides = [1, 1, 1]} : vector<4x18x34xbf16> to vector<4x1x32xbf16>
    %461 = vector.shape_cast %460 : vector<4x1x32xbf16> to vector<4x32xbf16>
    %462 = vector.extract_strided_slice %3 {offsets = [0, 15, 0], sizes = [4, 1, 32], strides = [1, 1, 1]} : vector<4x18x34xbf16> to vector<4x1x32xbf16>
    %463 = vector.shape_cast %462 : vector<4x1x32xbf16> to vector<4x32xbf16>
    %464 = vector.extract_strided_slice %3 {offsets = [0, 16, 0], sizes = [4, 1, 32], strides = [1, 1, 1]} : vector<4x18x34xbf16> to vector<4x1x32xbf16>
    %465 = vector.shape_cast %464 : vector<4x1x32xbf16> to vector<4x32xbf16>
    %466 = vector.extract_strided_slice %3 {offsets = [0, 16, 0], sizes = [4, 1, 32], strides = [1, 1, 1]} : vector<4x18x34xbf16> to vector<4x1x32xbf16>
    %467 = vector.shape_cast %466 : vector<4x1x32xbf16> to vector<4x32xbf16>
    %468 = vector.extract_strided_slice %3 {offsets = [0, 17, 0], sizes = [4, 1, 32], strides = [1, 1, 1]} : vector<4x18x34xbf16> to vector<4x1x32xbf16>
    %469 = vector.shape_cast %468 : vector<4x1x32xbf16> to vector<4x32xbf16>
    %470 = tpu.concatenate %407, %409, %411, %413, %415, %417, %419, %421, %423, %425, %427, %429, %431, %433, %435, %437 in 1 : vector<4x32xbf16>, vector<4x32xbf16>, vector<4x32xbf16>, vector<4x32xbf16>, vector<4x32xbf16>, vector<4x32xbf16>, vector<4x32xbf16>, vector<4x32xbf16>, vector<4x32xbf16>, vector<4x32xbf16>, vector<4x32xbf16>, vector<4x32xbf16>, vector<4x32xbf16>, vector<4x32xbf16>, vector<4x32xbf16>, vector<4x32xbf16> -> vector<4x512xbf16>
    %471 = tpu.concatenate %439, %441, %443, %445, %447, %449, %451, %453, %455, %457, %459, %461, %463, %465, %467, %469 in 1 : vector<4x32xbf16>, vector<4x32xbf16>, vector<4x32xbf16>, vector<4x32xbf16>, vector<4x32xbf16>, vector<4x32xbf16>, vector<4x32xbf16>, vector<4x32xbf16>, vector<4x32xbf16>, vector<4x32xbf16>, vector<4x32xbf16>, vector<4x32xbf16>, vector<4x32xbf16>, vector<4x32xbf16>, vector<4x32xbf16>, vector<4x32xbf16> -> vector<4x512xbf16>
    %472 = tpu.concatenate %470, %471 in 1 : vector<4x512xbf16>, vector<4x512xbf16> -> vector<4x1024xbf16>
    %473 = vector.extract_strided_slice %3 {offsets = [0, 1, 1], sizes = [4, 1, 32], strides = [1, 1, 1]} : vector<4x18x34xbf16> to vector<4x1x32xbf16>
    %474 = vector.shape_cast %473 : vector<4x1x32xbf16> to vector<4x32xbf16>
    %475 = vector.extract_strided_slice %3 {offsets = [0, 2, 1], sizes = [4, 1, 32], strides = [1, 1, 1]} : vector<4x18x34xbf16> to vector<4x1x32xbf16>
    %476 = vector.shape_cast %475 : vector<4x1x32xbf16> to vector<4x32xbf16>
    %477 = vector.extract_strided_slice %3 {offsets = [0, 2, 1], sizes = [4, 1, 32], strides = [1, 1, 1]} : vector<4x18x34xbf16> to vector<4x1x32xbf16>
    %478 = vector.shape_cast %477 : vector<4x1x32xbf16> to vector<4x32xbf16>
    %479 = vector.extract_strided_slice %3 {offsets = [0, 3, 1], sizes = [4, 1, 32], strides = [1, 1, 1]} : vector<4x18x34xbf16> to vector<4x1x32xbf16>
    %480 = vector.shape_cast %479 : vector<4x1x32xbf16> to vector<4x32xbf16>
    %481 = vector.extract_strided_slice %3 {offsets = [0, 3, 1], sizes = [4, 1, 32], strides = [1, 1, 1]} : vector<4x18x34xbf16> to vector<4x1x32xbf16>
    %482 = vector.shape_cast %481 : vector<4x1x32xbf16> to vector<4x32xbf16>
    %483 = vector.extract_strided_slice %3 {offsets = [0, 4, 1], sizes = [4, 1, 32], strides = [1, 1, 1]} : vector<4x18x34xbf16> to vector<4x1x32xbf16>
    %484 = vector.shape_cast %483 : vector<4x1x32xbf16> to vector<4x32xbf16>
    %485 = vector.extract_strided_slice %3 {offsets = [0, 4, 1], sizes = [4, 1, 32], strides = [1, 1, 1]} : vector<4x18x34xbf16> to vector<4x1x32xbf16>
    %486 = vector.shape_cast %485 : vector<4x1x32xbf16> to vector<4x32xbf16>
    %487 = vector.extract_strided_slice %3 {offsets = [0, 5, 1], sizes = [4, 1, 32], strides = [1, 1, 1]} : vector<4x18x34xbf16> to vector<4x1x32xbf16>
    %488 = vector.shape_cast %487 : vector<4x1x32xbf16> to vector<4x32xbf16>
    %489 = vector.extract_strided_slice %3 {offsets = [0, 5, 1], sizes = [4, 1, 32], strides = [1, 1, 1]} : vector<4x18x34xbf16> to vector<4x1x32xbf16>
    %490 = vector.shape_cast %489 : vector<4x1x32xbf16> to vector<4x32xbf16>
    %491 = vector.extract_strided_slice %3 {offsets = [0, 6, 1], sizes = [4, 1, 32], strides = [1, 1, 1]} : vector<4x18x34xbf16> to vector<4x1x32xbf16>
    %492 = vector.shape_cast %491 : vector<4x1x32xbf16> to vector<4x32xbf16>
    %493 = vector.extract_strided_slice %3 {offsets = [0, 6, 1], sizes = [4, 1, 32], strides = [1, 1, 1]} : vector<4x18x34xbf16> to vector<4x1x32xbf16>
    %494 = vector.shape_cast %493 : vector<4x1x32xbf16> to vector<4x32xbf16>
    %495 = vector.extract_strided_slice %3 {offsets = [0, 7, 1], sizes = [4, 1, 32], strides = [1, 1, 1]} : vector<4x18x34xbf16> to vector<4x1x32xbf16>
    %496 = vector.shape_cast %495 : vector<4x1x32xbf16> to vector<4x32xbf16>
    %497 = vector.extract_strided_slice %3 {offsets = [0, 7, 1], sizes = [4, 1, 32], strides = [1, 1, 1]} : vector<4x18x34xbf16> to vector<4x1x32xbf16>
    %498 = vector.shape_cast %497 : vector<4x1x32xbf16> to vector<4x32xbf16>
    %499 = vector.extract_strided_slice %3 {offsets = [0, 8, 1], sizes = [4, 1, 32], strides = [1, 1, 1]} : vector<4x18x34xbf16> to vector<4x1x32xbf16>
    %500 = vector.shape_cast %499 : vector<4x1x32xbf16> to vector<4x32xbf16>
    %501 = vector.extract_strided_slice %3 {offsets = [0, 8, 1], sizes = [4, 1, 32], strides = [1, 1, 1]} : vector<4x18x34xbf16> to vector<4x1x32xbf16>
    %502 = vector.shape_cast %501 : vector<4x1x32xbf16> to vector<4x32xbf16>
    %503 = vector.extract_strided_slice %3 {offsets = [0, 9, 1], sizes = [4, 1, 32], strides = [1, 1, 1]} : vector<4x18x34xbf16> to vector<4x1x32xbf16>
    %504 = vector.shape_cast %503 : vector<4x1x32xbf16> to vector<4x32xbf16>
    %505 = vector.extract_strided_slice %3 {offsets = [0, 9, 1], sizes = [4, 1, 32], strides = [1, 1, 1]} : vector<4x18x34xbf16> to vector<4x1x32xbf16>
    %506 = vector.shape_cast %505 : vector<4x1x32xbf16> to vector<4x32xbf16>
    %507 = vector.extract_strided_slice %3 {offsets = [0, 10, 1], sizes = [4, 1, 32], strides = [1, 1, 1]} : vector<4x18x34xbf16> to vector<4x1x32xbf16>
    %508 = vector.shape_cast %507 : vector<4x1x32xbf16> to vector<4x32xbf16>
    %509 = vector.extract_strided_slice %3 {offsets = [0, 10, 1], sizes = [4, 1, 32], strides = [1, 1, 1]} : vector<4x18x34xbf16> to vector<4x1x32xbf16>
    %510 = vector.shape_cast %509 : vector<4x1x32xbf16> to vector<4x32xbf16>
    %511 = vector.extract_strided_slice %3 {offsets = [0, 11, 1], sizes = [4, 1, 32], strides = [1, 1, 1]} : vector<4x18x34xbf16> to vector<4x1x32xbf16>
    %512 = vector.shape_cast %511 : vector<4x1x32xbf16> to vector<4x32xbf16>
    %513 = vector.extract_strided_slice %3 {offsets = [0, 11, 1], sizes = [4, 1, 32], strides = [1, 1, 1]} : vector<4x18x34xbf16> to vector<4x1x32xbf16>
    %514 = vector.shape_cast %513 : vector<4x1x32xbf16> to vector<4x32xbf16>
    %515 = vector.extract_strided_slice %3 {offsets = [0, 12, 1], sizes = [4, 1, 32], strides = [1, 1, 1]} : vector<4x18x34xbf16> to vector<4x1x32xbf16>
    %516 = vector.shape_cast %515 : vector<4x1x32xbf16> to vector<4x32xbf16>
    %517 = vector.extract_strided_slice %3 {offsets = [0, 12, 1], sizes = [4, 1, 32], strides = [1, 1, 1]} : vector<4x18x34xbf16> to vector<4x1x32xbf16>
    %518 = vector.shape_cast %517 : vector<4x1x32xbf16> to vector<4x32xbf16>
    %519 = vector.extract_strided_slice %3 {offsets = [0, 13, 1], sizes = [4, 1, 32], strides = [1, 1, 1]} : vector<4x18x34xbf16> to vector<4x1x32xbf16>
    %520 = vector.shape_cast %519 : vector<4x1x32xbf16> to vector<4x32xbf16>
    %521 = vector.extract_strided_slice %3 {offsets = [0, 13, 1], sizes = [4, 1, 32], strides = [1, 1, 1]} : vector<4x18x34xbf16> to vector<4x1x32xbf16>
    %522 = vector.shape_cast %521 : vector<4x1x32xbf16> to vector<4x32xbf16>
    %523 = vector.extract_strided_slice %3 {offsets = [0, 14, 1], sizes = [4, 1, 32], strides = [1, 1, 1]} : vector<4x18x34xbf16> to vector<4x1x32xbf16>
    %524 = vector.shape_cast %523 : vector<4x1x32xbf16> to vector<4x32xbf16>
    %525 = vector.extract_strided_slice %3 {offsets = [0, 14, 1], sizes = [4, 1, 32], strides = [1, 1, 1]} : vector<4x18x34xbf16> to vector<4x1x32xbf16>
    %526 = vector.shape_cast %525 : vector<4x1x32xbf16> to vector<4x32xbf16>
    %527 = vector.extract_strided_slice %3 {offsets = [0, 15, 1], sizes = [4, 1, 32], strides = [1, 1, 1]} : vector<4x18x34xbf16> to vector<4x1x32xbf16>
    %528 = vector.shape_cast %527 : vector<4x1x32xbf16> to vector<4x32xbf16>
    %529 = vector.extract_strided_slice %3 {offsets = [0, 15, 1], sizes = [4, 1, 32], strides = [1, 1, 1]} : vector<4x18x34xbf16> to vector<4x1x32xbf16>
    %530 = vector.shape_cast %529 : vector<4x1x32xbf16> to vector<4x32xbf16>
    %531 = vector.extract_strided_slice %3 {offsets = [0, 16, 1], sizes = [4, 1, 32], strides = [1, 1, 1]} : vector<4x18x34xbf16> to vector<4x1x32xbf16>
    %532 = vector.shape_cast %531 : vector<4x1x32xbf16> to vector<4x32xbf16>
    %533 = vector.extract_strided_slice %3 {offsets = [0, 16, 1], sizes = [4, 1, 32], strides = [1, 1, 1]} : vector<4x18x34xbf16> to vector<4x1x32xbf16>
    %534 = vector.shape_cast %533 : vector<4x1x32xbf16> to vector<4x32xbf16>
    %535 = vector.extract_strided_slice %3 {offsets = [0, 17, 1], sizes = [4, 1, 32], strides = [1, 1, 1]} : vector<4x18x34xbf16> to vector<4x1x32xbf16>
    %536 = vector.shape_cast %535 : vector<4x1x32xbf16> to vector<4x32xbf16>
    %537 = tpu.concatenate %474, %476, %478, %480, %482, %484, %486, %488, %490, %492, %494, %496, %498, %500, %502, %504 in 1 : vector<4x32xbf16>, vector<4x32xbf16>, vector<4x32xbf16>, vector<4x32xbf16>, vector<4x32xbf16>, vector<4x32xbf16>, vector<4x32xbf16>, vector<4x32xbf16>, vector<4x32xbf16>, vector<4x32xbf16>, vector<4x32xbf16>, vector<4x32xbf16>, vector<4x32xbf16>, vector<4x32xbf16>, vector<4x32xbf16>, vector<4x32xbf16> -> vector<4x512xbf16>
    %538 = tpu.concatenate %506, %508, %510, %512, %514, %516, %518, %520, %522, %524, %526, %528, %530, %532, %534, %536 in 1 : vector<4x32xbf16>, vector<4x32xbf16>, vector<4x32xbf16>, vector<4x32xbf16>, vector<4x32xbf16>, vector<4x32xbf16>, vector<4x32xbf16>, vector<4x32xbf16>, vector<4x32xbf16>, vector<4x32xbf16>, vector<4x32xbf16>, vector<4x32xbf16>, vector<4x32xbf16>, vector<4x32xbf16>, vector<4x32xbf16>, vector<4x32xbf16> -> vector<4x512xbf16>
    %539 = tpu.concatenate %537, %538 in 1 : vector<4x512xbf16>, vector<4x512xbf16> -> vector<4x1024xbf16>
    %540 = vector.extract_strided_slice %3 {offsets = [0, 1, 2], sizes = [4, 1, 32], strides = [1, 1, 1]} : vector<4x18x34xbf16> to vector<4x1x32xbf16>
    %541 = vector.shape_cast %540 : vector<4x1x32xbf16> to vector<4x32xbf16>
    %542 = vector.extract_strided_slice %3 {offsets = [0, 2, 2], sizes = [4, 1, 32], strides = [1, 1, 1]} : vector<4x18x34xbf16> to vector<4x1x32xbf16>
    %543 = vector.shape_cast %542 : vector<4x1x32xbf16> to vector<4x32xbf16>
    %544 = vector.extract_strided_slice %3 {offsets = [0, 2, 2], sizes = [4, 1, 32], strides = [1, 1, 1]} : vector<4x18x34xbf16> to vector<4x1x32xbf16>
    %545 = vector.shape_cast %544 : vector<4x1x32xbf16> to vector<4x32xbf16>
    %546 = vector.extract_strided_slice %3 {offsets = [0, 3, 2], sizes = [4, 1, 32], strides = [1, 1, 1]} : vector<4x18x34xbf16> to vector<4x1x32xbf16>
    %547 = vector.shape_cast %546 : vector<4x1x32xbf16> to vector<4x32xbf16>
    %548 = vector.extract_strided_slice %3 {offsets = [0, 3, 2], sizes = [4, 1, 32], strides = [1, 1, 1]} : vector<4x18x34xbf16> to vector<4x1x32xbf16>
    %549 = vector.shape_cast %548 : vector<4x1x32xbf16> to vector<4x32xbf16>
    %550 = vector.extract_strided_slice %3 {offsets = [0, 4, 2], sizes = [4, 1, 32], strides = [1, 1, 1]} : vector<4x18x34xbf16> to vector<4x1x32xbf16>
    %551 = vector.shape_cast %550 : vector<4x1x32xbf16> to vector<4x32xbf16>
    %552 = vector.extract_strided_slice %3 {offsets = [0, 4, 2], sizes = [4, 1, 32], strides = [1, 1, 1]} : vector<4x18x34xbf16> to vector<4x1x32xbf16>
    %553 = vector.shape_cast %552 : vector<4x1x32xbf16> to vector<4x32xbf16>
    %554 = vector.extract_strided_slice %3 {offsets = [0, 5, 2], sizes = [4, 1, 32], strides = [1, 1, 1]} : vector<4x18x34xbf16> to vector<4x1x32xbf16>
    %555 = vector.shape_cast %554 : vector<4x1x32xbf16> to vector<4x32xbf16>
    %556 = vector.extract_strided_slice %3 {offsets = [0, 5, 2], sizes = [4, 1, 32], strides = [1, 1, 1]} : vector<4x18x34xbf16> to vector<4x1x32xbf16>
    %557 = vector.shape_cast %556 : vector<4x1x32xbf16> to vector<4x32xbf16>
    %558 = vector.extract_strided_slice %3 {offsets = [0, 6, 2], sizes = [4, 1, 32], strides = [1, 1, 1]} : vector<4x18x34xbf16> to vector<4x1x32xbf16>
    %559 = vector.shape_cast %558 : vector<4x1x32xbf16> to vector<4x32xbf16>
    %560 = vector.extract_strided_slice %3 {offsets = [0, 6, 2], sizes = [4, 1, 32], strides = [1, 1, 1]} : vector<4x18x34xbf16> to vector<4x1x32xbf16>
    %561 = vector.shape_cast %560 : vector<4x1x32xbf16> to vector<4x32xbf16>
    %562 = vector.extract_strided_slice %3 {offsets = [0, 7, 2], sizes = [4, 1, 32], strides = [1, 1, 1]} : vector<4x18x34xbf16> to vector<4x1x32xbf16>
    %563 = vector.shape_cast %562 : vector<4x1x32xbf16> to vector<4x32xbf16>
    %564 = vector.extract_strided_slice %3 {offsets = [0, 7, 2], sizes = [4, 1, 32], strides = [1, 1, 1]} : vector<4x18x34xbf16> to vector<4x1x32xbf16>
    %565 = vector.shape_cast %564 : vector<4x1x32xbf16> to vector<4x32xbf16>
    %566 = vector.extract_strided_slice %3 {offsets = [0, 8, 2], sizes = [4, 1, 32], strides = [1, 1, 1]} : vector<4x18x34xbf16> to vector<4x1x32xbf16>
    %567 = vector.shape_cast %566 : vector<4x1x32xbf16> to vector<4x32xbf16>
    %568 = vector.extract_strided_slice %3 {offsets = [0, 8, 2], sizes = [4, 1, 32], strides = [1, 1, 1]} : vector<4x18x34xbf16> to vector<4x1x32xbf16>
    %569 = vector.shape_cast %568 : vector<4x1x32xbf16> to vector<4x32xbf16>
    %570 = vector.extract_strided_slice %3 {offsets = [0, 9, 2], sizes = [4, 1, 32], strides = [1, 1, 1]} : vector<4x18x34xbf16> to vector<4x1x32xbf16>
    %571 = vector.shape_cast %570 : vector<4x1x32xbf16> to vector<4x32xbf16>
    %572 = vector.extract_strided_slice %3 {offsets = [0, 9, 2], sizes = [4, 1, 32], strides = [1, 1, 1]} : vector<4x18x34xbf16> to vector<4x1x32xbf16>
    %573 = vector.shape_cast %572 : vector<4x1x32xbf16> to vector<4x32xbf16>
    %574 = vector.extract_strided_slice %3 {offsets = [0, 10, 2], sizes = [4, 1, 32], strides = [1, 1, 1]} : vector<4x18x34xbf16> to vector<4x1x32xbf16>
    %575 = vector.shape_cast %574 : vector<4x1x32xbf16> to vector<4x32xbf16>
    %576 = vector.extract_strided_slice %3 {offsets = [0, 10, 2], sizes = [4, 1, 32], strides = [1, 1, 1]} : vector<4x18x34xbf16> to vector<4x1x32xbf16>
    %577 = vector.shape_cast %576 : vector<4x1x32xbf16> to vector<4x32xbf16>
    %578 = vector.extract_strided_slice %3 {offsets = [0, 11, 2], sizes = [4, 1, 32], strides = [1, 1, 1]} : vector<4x18x34xbf16> to vector<4x1x32xbf16>
    %579 = vector.shape_cast %578 : vector<4x1x32xbf16> to vector<4x32xbf16>
    %580 = vector.extract_strided_slice %3 {offsets = [0, 11, 2], sizes = [4, 1, 32], strides = [1, 1, 1]} : vector<4x18x34xbf16> to vector<4x1x32xbf16>
    %581 = vector.shape_cast %580 : vector<4x1x32xbf16> to vector<4x32xbf16>
    %582 = vector.extract_strided_slice %3 {offsets = [0, 12, 2], sizes = [4, 1, 32], strides = [1, 1, 1]} : vector<4x18x34xbf16> to vector<4x1x32xbf16>
    %583 = vector.shape_cast %582 : vector<4x1x32xbf16> to vector<4x32xbf16>
    %584 = vector.extract_strided_slice %3 {offsets = [0, 12, 2], sizes = [4, 1, 32], strides = [1, 1, 1]} : vector<4x18x34xbf16> to vector<4x1x32xbf16>
    %585 = vector.shape_cast %584 : vector<4x1x32xbf16> to vector<4x32xbf16>
    %586 = vector.extract_strided_slice %3 {offsets = [0, 13, 2], sizes = [4, 1, 32], strides = [1, 1, 1]} : vector<4x18x34xbf16> to vector<4x1x32xbf16>
    %587 = vector.shape_cast %586 : vector<4x1x32xbf16> to vector<4x32xbf16>
    %588 = vector.extract_strided_slice %3 {offsets = [0, 13, 2], sizes = [4, 1, 32], strides = [1, 1, 1]} : vector<4x18x34xbf16> to vector<4x1x32xbf16>
    %589 = vector.shape_cast %588 : vector<4x1x32xbf16> to vector<4x32xbf16>
    %590 = vector.extract_strided_slice %3 {offsets = [0, 14, 2], sizes = [4, 1, 32], strides = [1, 1, 1]} : vector<4x18x34xbf16> to vector<4x1x32xbf16>
    %591 = vector.shape_cast %590 : vector<4x1x32xbf16> to vector<4x32xbf16>
    %592 = vector.extract_strided_slice %3 {offsets = [0, 14, 2], sizes = [4, 1, 32], strides = [1, 1, 1]} : vector<4x18x34xbf16> to vector<4x1x32xbf16>
    %593 = vector.shape_cast %592 : vector<4x1x32xbf16> to vector<4x32xbf16>
    %594 = vector.extract_strided_slice %3 {offsets = [0, 15, 2], sizes = [4, 1, 32], strides = [1, 1, 1]} : vector<4x18x34xbf16> to vector<4x1x32xbf16>
    %595 = vector.shape_cast %594 : vector<4x1x32xbf16> to vector<4x32xbf16>
    %596 = vector.extract_strided_slice %3 {offsets = [0, 15, 2], sizes = [4, 1, 32], strides = [1, 1, 1]} : vector<4x18x34xbf16> to vector<4x1x32xbf16>
    %597 = vector.shape_cast %596 : vector<4x1x32xbf16> to vector<4x32xbf16>
    %598 = vector.extract_strided_slice %3 {offsets = [0, 16, 2], sizes = [4, 1, 32], strides = [1, 1, 1]} : vector<4x18x34xbf16> to vector<4x1x32xbf16>
    %599 = vector.shape_cast %598 : vector<4x1x32xbf16> to vector<4x32xbf16>
    %600 = vector.extract_strided_slice %3 {offsets = [0, 16, 2], sizes = [4, 1, 32], strides = [1, 1, 1]} : vector<4x18x34xbf16> to vector<4x1x32xbf16>
    %601 = vector.shape_cast %600 : vector<4x1x32xbf16> to vector<4x32xbf16>
    %602 = vector.extract_strided_slice %3 {offsets = [0, 17, 2], sizes = [4, 1, 32], strides = [1, 1, 1]} : vector<4x18x34xbf16> to vector<4x1x32xbf16>
    %603 = vector.shape_cast %602 : vector<4x1x32xbf16> to vector<4x32xbf16>
    %604 = tpu.concatenate %541, %543, %545, %547, %549, %551, %553, %555, %557, %559, %561, %563, %565, %567, %569, %571 in 1 : vector<4x32xbf16>, vector<4x32xbf16>, vector<4x32xbf16>, vector<4x32xbf16>, vector<4x32xbf16>, vector<4x32xbf16>, vector<4x32xbf16>, vector<4x32xbf16>, vector<4x32xbf16>, vector<4x32xbf16>, vector<4x32xbf16>, vector<4x32xbf16>, vector<4x32xbf16>, vector<4x32xbf16>, vector<4x32xbf16>, vector<4x32xbf16> -> vector<4x512xbf16>
    %605 = tpu.concatenate %573, %575, %577, %579, %581, %583, %585, %587, %589, %591, %593, %595, %597, %599, %601, %603 in 1 : vector<4x32xbf16>, vector<4x32xbf16>, vector<4x32xbf16>, vector<4x32xbf16>, vector<4x32xbf16>, vector<4x32xbf16>, vector<4x32xbf16>, vector<4x32xbf16>, vector<4x32xbf16>, vector<4x32xbf16>, vector<4x32xbf16>, vector<4x32xbf16>, vector<4x32xbf16>, vector<4x32xbf16>, vector<4x32xbf16>, vector<4x32xbf16> -> vector<4x512xbf16>
    %606 = tpu.concatenate %604, %605 in 1 : vector<4x512xbf16>, vector<4x512xbf16> -> vector<4x1024xbf16>
    %607 = tpu.concatenate %70, %137, %204, %271, %338, %405, %472, %539, %606 in 0 : vector<4x1024xbf16>, vector<4x1024xbf16>, vector<4x1024xbf16>, vector<4x1024xbf16>, vector<4x1024xbf16>, vector<4x1024xbf16>, vector<4x1024xbf16>, vector<4x1024xbf16>, vector<4x1024xbf16> -> vector<36x1024xbf16>
    %c0_2 = arith.constant 0 : index
    %c0_3 = arith.constant 0 : index
    %608 = vector.load %arg3[%c0_2, %c0_3] : memref<8x36xbf16, #tpu.memory_space<vmem>>, vector<8x36xbf16>
    %cst = arith.constant dense<0.000000e+00> : vector<8x1024xf32>
    %609 = tpu.matmul %608, %607, %cst {dimension_numbers = #tpu.dot_dimension_numbers<[1], [0], [0], [1], [0, 0, 1, 1], [], []>} : vector<8x36xbf16>, vector<36x1024xbf16>, vector<8x1024xf32> -> vector<8x1024xf32>
    %c0_4 = arith.constant 0 : index
    %c0_5 = arith.constant 0 : index
    %610 = vector.load %arg4[%c0_4, %c0_5] : memref<8x1xf32, #tpu.memory_space<vmem>>, vector<8x1xf32>
    %611 = vector.broadcast %610 : vector<8x1xf32> to vector<8x1024xf32>
    %612 = arith.addf %609, %611 : vector<8x1024xf32>
    %c0_6 = arith.constant 0 : index
    %c0_7 = arith.constant 0 : index
    %c0_8 = arith.constant 0 : index
    %613 = vector.load %arg5[%c0_6, %c0_7, %c0_8] : memref<1x8x1024xf32, #tpu.memory_space<vmem>>, vector<1x8x1024xf32>
    %614 = vector.shape_cast %613 : vector<1x8x1024xf32> to vector<8x1024xf32>
    %615 = vector.shape_cast %612 : vector<8x1024xf32> to vector<1x8x1024xf32>
    tpu.vector_store %arg5[%c0_6, %c0_7, %c0_8], %615 {strides = array<i32>} : memref<1x8x1024xf32, #tpu.memory_space<vmem>>, vector<1x8x1024xf32>,
    return
  }
  func.func @transform_0(%arg0: i32, %arg1: i32) -> (i32, i32, i32, i32) {
    %c0_i32 = arith.constant 0 : i32
    %c0_i32_0 = arith.constant 0 : i32
    %c0_i32_1 = arith.constant 0 : i32
    %c0_i32_2 = arith.constant 0 : i32
    return %arg0, %c0_i32, %c0_i32_0, %c0_i32_1 : i32, i32, i32, i32
  }
  func.func @transform_1(%arg0: i32, %arg1: i32) -> (i32, i32) {
    %c0_i32 = arith.constant 0 : i32
    %c0_i32_0 = arith.constant 0 : i32
    %c0_i32_1 = arith.constant 0 : i32
    return %c0_i32, %c0_i32_0 : i32, i32
  }
  func.func @transform_2(%arg0: i32, %arg1: i32) -> (i32, i32) {
    %c0_i32 = arith.constant 0 : i32
    %c0_i32_0 = arith.constant 0 : i32
    %c0_i32_1 = arith.constant 0 : i32
    return %c0_i32, %c0_i32_0 : i32, i32
  }
  func.func @transform_3(%arg0: i32, %arg1: i32) -> (i32, i32, i32) {
    %c0_i32 = arith.constant 0 : i32
    %c0_i32_0 = arith.constant 0 : i32
    return %arg0, %c0_i32, %arg1 : i32, i32, i32
  }
}

</mosaic_0001>

<llo_original>
// kernel: tpu_custom_call.1
$region0: #{tpu_custom_call.1}
  #allocation0 [shape = 'u32[]', space=smem, size = 0x4, offset = 0x4, fixed_abs, tag = 'smem constant byte address 0x4 - core index']
  #allocation1 [shape = 'u32[72,128]{1,0:T(1,128)}', space=vmem, size = 0x9000, scoped, tag = 'internal scratch']
  %s0 = inlined_call_operand.vmem [shape: bf16[2,4,18,34], index: 0, kind: input, shape index: {}]
  %s1 = inlined_call_operand.vmem [shape: bf16[8,36], index: 1, kind: input, shape index: {}]
  %s2 = inlined_call_operand.vmem [shape: f32[8,1], index: 2, kind: input, shape index: {}]
  %s3 = inlined_call_operand.hbm [shape: f32[2,8,1024], index: 3, kind: output, shape index: {}]
  %s4 = sld [smem:[#allocation0]]
  $region45: #{tpu_custom_call.1} parent=0
    _
  %s6 = ssub.s32 1, %s4
  %s7 = scalar_select 0, %s6, %s4
  $region1: #{tpu_custom_call.1} parent=0
    #allocation2 [shape = 'u8[65536]{0}', space=vmem, size = 0x10000, scoped, tag = 'output window, operand 0']
    #allocation3 [shape = 's32[2]{0}', space=sflag, size = 0x8, scoped, tag = 'scoped memory for tpu_custom_call.1']
    %8 = vsyncpa [#allocation3], 0
    %s9 = scalar_lea.sflag [#allocation3], 1
    %10 = vsyncpa %s9, 0
    loop: start=0, step=1, limit=4
    $region2: #{tpu_custom_call.1} parent=1 // loop_pre_header
      _
    $region3: #{tpu_custom_call.1} parent=1 // loop_header
      %s12 = sphi 0, %s16
      %p13 = scmp.ge.s32.totalorder %s12, 4
      %s19 = sphi 0, %s31
      %s20 = sphi 0, %s27
      %s21 = sphi 0, %s19
      %s22 = sphi 0, %s20
      %s23 = sphi 0, %s21
      %s24 = sphi 0, %s22
      %s34 = sphi 0, %s36
      %s37 = sphi 0, %s34
      %s38 = sphi 0, %s37
      %s54 = sphi 0, %s38
      %s58 = sphi 0, %s58
      %s60 = sphi 0, %s58
      %s61 = sphi 0, %s60
      %s75 = sphi 0, %s61
      %s79 = sphi 0, %s79
      %s81 = sphi 0, %s79
      %s82 = sphi 0, %s81
      %s96 = sphi 0, %s82
      %s104 = sphi 0, %s106
      %s107 = sphi 0, %s104
      %s108 = sphi 0, %s107
      %s124 = sphi 0, %s108
    $region4: #{tpu_custom_call.1} parent=1 // loop_header_branch
      %15 = sbr.rel (%p13) target = $region8
    $region5: #{tpu_custom_call.1} parent=1 // loop_body
      %s17 = ssub.s32 %s12, 1
      %s18 = ssub.s32 %s12, 2
      %s25 = sadd.s32 1, %s20
      %p26 = scmp.ge.s32.totalorder %s25, 1
      %s27 = scalar_select %p26, 0, %s25
      %s28 = sadd.s32 1, %s19
      %s29 = scalar_select %p26, %s28, %s19
      %p30 = scmp.ge.s32.totalorder %s29, 2
      %s31 = scalar_select %p30, 0, %s29
      %s32 = ssub.s32 %s19, %s31
      %p33 = scmp.eq.s32.totalorder %s32, 0
      %s35 = sadd.s32 %s34, 1
      %s36 = scalar_select %p33, %s34, %s35
      %p39 = pneg %p33
      %p40 = scmp.eq.s32.totalorder %s12, 1
      %p41 = por %p39, %p40
      %p42 = scmp.ne.s32.totalorder %s34, %s37
      %p43 = scmp.eq.s32.totalorder %s12, 0
      %p44 = por %p42, %p43
      %p45 = scmp.ne.s32.totalorder %s34, %s37
      %p46 = scmp.eq.s32.totalorder %s17, 1
      %p47 = por %p45, %p46
      %p48 = scmp.ne.s32.totalorder %s37, %s38
      %p49 = scmp.eq.s32.totalorder %s17, 0
      %p50 = por %p48, %p49
      %p51 = scmp.ne.s32.totalorder %s37, %s38
      %p52 = scmp.eq.s32.totalorder %s18, 1
      %p53 = por %p51, %p52
      %p55 = scmp.ne.s32.totalorder %s38, %s54
      %p56 = scmp.eq.s32.totalorder %s18, 0
      %p57 = por %p55, %p56
      %s59 = sadd.s32 %s58, 1
      %p62 = scmp.eq.s32.totalorder %s12, 1
      %p63 = scmp.ne.s32.totalorder %s58, %s60
      %p64 = scmp.eq.s32.totalorder %s12, 0
      %p65 = por %p63, %p64
      %p66 = scmp.ne.s32.totalorder %s58, %s60
      %p67 = scmp.eq.s32.totalorder %s17, 1
      %p68 = por %p66, %p67
      %p69 = scmp.ne.s32.totalorder %s60, %s61
      %p70 = scmp.eq.s32.totalorder %s17, 0
      %p71 = por %p69, %p70
      %p72 = scmp.ne.s32.totalorder %s60, %s61
      %p73 = scmp.eq.s32.totalorder %s18, 1
      %p74 = por %p72, %p73
      %p76 = scmp.ne.s32.totalorder %s61, %s75
      %p77 = scmp.eq.s32.totalorder %s18, 0
      %p78 = por %p76, %p77
      %s80 = sadd.s32 %s79, 1
      %p83 = scmp.eq.s32.totalorder %s12, 1
      %p84 = scmp.ne.s32.totalorder %s79, %s81
      %p85 = scmp.eq.s32.totalorder %s12, 0
      %p86 = por %p84, %p85
      %p87 = scmp.ne.s32.totalorder %s79, %s81
      %p88 = scmp.eq.s32.totalorder %s17, 1
      %p89 = por %p87, %p88
      %p90 = scmp.ne.s32.totalorder %s81, %s82
      %p91 = scmp.eq.s32.totalorder %s17, 0
      %p92 = por %p90, %p91
      %p93 = scmp.ne.s32.totalorder %s81, %s82
      %p94 = scmp.eq.s32.totalorder %s18, 1
      %p95 = por %p93, %p94
      %p97 = scmp.ne.s32.totalorder %s82, %s96
      %p98 = scmp.eq.s32.totalorder %s18, 0
      %p99 = por %p97, %p98
      %s100 = ssub.s32 %s19, %s31
      %s101 = ssub.s32 %s20, %s27
      %s102 = sor.u32 %s100, %s101
      %p103 = scmp.eq.s32.totalorder %s102, 0
      %s105 = sadd.s32 %s104, 1
      %s106 = scalar_select %p103, %s104, %s105
      %p109 = pneg %p103
      %p110 = scmp.eq.s32.totalorder %s12, 1
      %p111 = por %p109, %p110
      %p112 = scmp.ne.s32.totalorder %s104, %s107
      %p113 = scmp.eq.s32.totalorder %s12, 0
      %p114 = por %p112, %p113
      %p115 = scmp.ne.s32.totalorder %s104, %s107
      %p116 = scmp.eq.s32.totalorder %s17, 1
      %p117 = por %p115, %p116
      %p118 = scmp.ne.s32.totalorder %s107, %s108
      %p119 = scmp.eq.s32.totalorder %s17, 0
      %p120 = por %p118, %p119
      %p121 = scmp.ne.s32.totalorder %s107, %s108
      %p122 = scmp.eq.s32.totalorder %s18, 1
      %p123 = por %p121, %p122
      %p125 = scmp.ne.s32.totalorder %s108, %s124
      %p126 = scmp.eq.s32.totalorder %s18, 0
      %p127 = por %p125, %p126
      %p128 = scmp.le.s32.totalorder 1, %s12
      %p129 = scmp.lt.s32.totalorder %s12, 3
      %p130 = pnand %p128, %p129
      %p131 = pneg %p130
      // Predicated region
      $region9: #{tpu_custom_call.1} parent=5 // pred_check
        _
      $region10: #{tpu_custom_call.1} parent=5 // pred_check_branch
        %133 = sbr.rel (%p130) target = $region12
      $region11: #{tpu_custom_call.1} parent=5 // pred_region
        %s134 = ssub.s32 %s12, 1
        // Predicated region
        $region13: #{tpu_custom_call.1} parent=11 // pred_check
          %p135 = pneg %p71
        $region14: #{tpu_custom_call.1} parent=11 // pred_check_branch
          %137 = sbr.rel (%p135) target = $region16
        $region15: #{tpu_custom_call.1} parent=11 // pred_region
          _
        $region16: #{tpu_custom_call.1} parent=11 // pred_fallthru
          _
        // Predicated region
        $region17: #{tpu_custom_call.1} parent=11 // pred_check
          %p138 = pneg %p92
        $region18: #{tpu_custom_call.1} parent=11 // pred_check_branch
          %140 = sbr.rel (%p138) target = $region20
        $region19: #{tpu_custom_call.1} parent=11 // pred_region
          _
        $region20: #{tpu_custom_call.1} parent=11 // pred_fallthru
          _
      $region12: #{tpu_custom_call.1} parent=5 // pred_fallthru
        _
      %p141 = scmp.lt.s32.totalorder %s12, 2
      // Predicated region
      $region21: #{tpu_custom_call.1} parent=5 // pred_check
        %p142 = pneg %p141
      $region22: #{tpu_custom_call.1} parent=5 // pred_check_branch
        %144 = sbr.rel (%p142) target = $region24
      $region23: #{tpu_custom_call.1} parent=5 // pred_region
        // Predicated region
        $region25: #{tpu_custom_call.1} parent=23 // pred_check
          %p145 = pneg %p44
        $region26: #{tpu_custom_call.1} parent=23 // pred_check_branch
          %147 = sbr.rel (%p145) target = $region28
        $region27: #{tpu_custom_call.1} parent=23 // pred_region
          %p148 = scmp.lt.s32.totalorder %s19, 1
          %s149 = scalar_select %p148, %s19, 1
          %s150 = smul.addr %s149, 12
          %s151 = smul.addr %s150, 4
          %s152 = scalar_lea.vmem %s0, %s151
        $region28: #{tpu_custom_call.1} parent=23 // pred_fallthru
          _
      $region24: #{tpu_custom_call.1} parent=5 // pred_fallthru
        _
      %p153 = scmp.le.s32.totalorder 1, %s12
      %p154 = scmp.lt.s32.totalorder %s12, 3
      %p155 = pnand %p153, %p154
      %p156 = pneg %p155
      // Predicated region
      $region29: #{tpu_custom_call.1} parent=5 // pred_check
        _
      $region30: #{tpu_custom_call.1} parent=5 // pred_check_branch
        %158 = sbr.rel (%p155) target = $region32
      $region31: #{tpu_custom_call.1} parent=5 // pred_region
        %s159 = ssub.s32 %s12, 1
        %p160 = scmp.lt.s32.totalorder %s21, 1
        %s161 = scalar_select %p160, %s21, 1
        %s162 = smul.addr %s161, 12
        %s163 = smul.addr %s162, 4
        %s164 = scalar_lea.vmem %s0, %s163
        %p165 = pneg %p50
        %p166 = pneg %p47
        %p167 = pneg %p71
        %p168 = pneg %p68
        %p169 = pneg %p92
        %p170 = pneg %p89
        %p171 = pneg %p120
        %p172 = pneg %p117
        %s173 = sand.u32 %s107, 1
        %s174 = scalar_lea.sflag [#allocation3], %s173
        %s175 = sand.u32 %s107, 1
        %s176 = smul.addr %s175, 64
        %s177 = scalar_lea.vmem [#allocation2], %s176
        %p178 = scmp.lt.s32.totalorder %s21, 1
        %s179 = scalar_select %p178, %s21, 1
        %s180 = smul.addr %s179, 12
        %s181 = smul.addr %s180, 4
        %s182 = scalar_lea.vmem %s0, %s181
        %s183 = smul.u32 8, %s22
        %s185 = smul.u32 %s22, 16
        %s186 = sshra.s32 %s185, 3
        %s187 = sand.u32 %s185, 7
        %s188 = smul.addr %s186, 4
        %s189 = scalar_lea.vmem %s182, %s188
        %v190 = vld [vmem:[%s189] sm:$0xf]
        %v191 = vld [vmem:[%s189 + $0x4] sm:$0xf]
        %v192 = vld [vmem:[%s189 + $0x8] sm:$0x1]
        %v193 = vld [vmem:[%s189 + $0xc] sm:$0xf]
        %v194 = vld [vmem:[%s189 + $0x10] sm:$0xf]
        %v195 = vld [vmem:[%s189 + $0x14] sm:$0x1]
        %v196 = vld [vmem:[%s189 + $0x18] sm:$0xf]
        %v197 = vld [vmem:[%s189 + $0x1c] sm:$0xf]
        %v198 = vld [vmem:[%s189 + $0x20] sm:$0x1]
        %v199 = vld [vmem:[%s189 + $0x24] sm:$0xf]
        %v200 = vld [vmem:[%s189 + $0x28] sm:$0xf]
        %v201 = vld [vmem:[%s189 + $0x2c] sm:$0x1]
        %v206 = vunpack.c.l.b16 %v190
        %v207 = vunpack.c.l.b16 %v193
        %v208 = vunpack.c.l.b16 %v196
        %v209 = vunpack.c.l.b16 %v199
        %v210 = vpack.c.b16 %v206, %v206
        %v211 = vpack.c.b16 %v207, %v207
        %v212 = vpack.c.b16 %v208, %v208
        %v213 = vpack.c.b16 %v209, %v209
        %v214 = vunpack.c.l.b16 %v210
        %v215 = vunpack.c.l.b16 %v211
        %v216 = vunpack.c.l.b16 %v212
        %v217 = vunpack.c.l.b16 %v213
        %v218 = vrot.slane %v215, 7
        %vm219 = vcmask 1041409
        %v220 = vsel %vm219, %v218, %v214
        %v221 = vrot.slane %v216, 6
        %vm222 = vcmask 1042434
        %v223 = vsel %vm222, %v221, %v220
        %v224 = vrot.slane %v217, 5
        %vm225 = vcmask 1043459
        %v226 = vsel %vm225, %v224, %v223
        %v227 = vpack.c.b16 %v226, %v226
        %v228 = vrot.slane %v214, 1
        %v229 = vsel %vm219, %v215, %v228
        %v230 = vrot.slane %v216, 7
        %v231 = vsel %vm222, %v230, %v229
        %v232 = vrot.slane %v217, 6
        %v233 = vsel %vm225, %v232, %v231
        %v234 = vpack.c.b16 %v233, %v233
        %235 = vrot.lane.b32.xlu0 %v234, 32
        %v236 = vpop.permute.xlu0 %235
        %237 = vrot.lane.b32.xlu0 %v234, 64
        %v238 = vpop.permute.xlu0 %237
        %v239 = vrot.slane %v214, 2
        %v240 = vrot.slane %v215, 1
        %v241 = vsel %vm219, %v240, %v239
        %v242 = vsel %vm222, %v216, %v241
        %v243 = vrot.slane %v217, 7
        %v244 = vsel %vm225, %v243, %v242
        %v245 = vpack.c.b16 %v244, %v244
        %246 = vrot.lane.b32.xlu0 %v245, 96
        %v247 = vpop.permute.xlu0 %246
        %v248 = vrot.slane %v214, 3
        %v249 = vrot.slane %v215, 2
        %v250 = vsel %vm219, %v249, %v248
        %v251 = vrot.slane %v216, 1
        %v252 = vsel %vm222, %v251, %v250
        %v253 = vsel %vm225, %v217, %v252
        %v254 = vpack.c.b16 %v253, %v253
        %255 = vrot.lane.b32.xlu0 %v254, 32
        %v256 = vpop.permute.xlu0 %255
        %257 = vrot.lane.b32.xlu0 %v254, 64
        %v258 = vpop.permute.xlu0 %257
        %v259 = vrot.slane %v214, 4
        %v260 = vrot.slane %v215, 3
        %v261 = vsel %vm219, %v260, %v259
        %v262 = vrot.slane %v216, 2
        %v263 = vsel %vm222, %v262, %v261
        %v264 = vrot.slane %v217, 1
        %v265 = vsel %vm225, %v264, %v263
        %v266 = vpack.c.b16 %v265, %v265
        %267 = vrot.lane.b32.xlu0 %v266, 96
        %v268 = vpop.permute.xlu0 %267
        %v269 = vrot.slane %v214, 5
        %v270 = vrot.slane %v215, 4
        %v271 = vsel %vm219, %v270, %v269
        %v272 = vrot.slane %v216, 3
        %v273 = vsel %vm222, %v272, %v271
        %v274 = vrot.slane %v217, 2
        %v275 = vsel %vm225, %v274, %v273
        %v276 = vpack.c.b16 %v275, %v275
        %277 = vrot.lane.b32.xlu0 %v276, 32
        %v278 = vpop.permute.xlu0 %277
        %279 = vrot.lane.b32.xlu0 %v276, 64
        %v280 = vpop.permute.xlu0 %279
        %v281 = vrot.slane %v214, 6
        %v282 = vrot.slane %v215, 5
        %v283 = vsel %vm219, %v282, %v281
        %v284 = vrot.slane %v216, 4
        %v285 = vsel %vm222, %v284, %v283
        %v286 = vrot.slane %v217, 3
        %v287 = vsel %vm225, %v286, %v285
        %v288 = vpack.c.b16 %v287, %v287
        %289 = vrot.lane.b32.xlu0 %v288, 96
        %v290 = vpop.permute.xlu0 %289
        %v291 = vrot.slane %v214, 7
        %v292 = vrot.slane %v215, 6
        %v293 = vsel %vm219, %v292, %v291
        %v294 = vrot.slane %v216, 5
        %v295 = vsel %vm222, %v294, %v293
        %v296 = vrot.slane %v217, 4
        %v297 = vsel %vm225, %v296, %v295
        %v298 = vpack.c.b16 %v297, %v297
        %299 = vrot.lane.b32.xlu0 %v298, 32
        %v300 = vpop.permute.xlu0 %299
        %301 = vrot.lane.b32.xlu0 %v298, 64
        %v302 = vpop.permute.xlu0 %301
        %v307 = vunpack.c.l.b16 %v191
        %v308 = vunpack.c.l.b16 %v194
        %v309 = vunpack.c.l.b16 %v197
        %v310 = vunpack.c.l.b16 %v200
        %v311 = vpack.c.b16 %v307, %v307
        %v312 = vpack.c.b16 %v308, %v308
        %v313 = vpack.c.b16 %v309, %v309
        %v314 = vpack.c.b16 %v310, %v310
        %v315 = vunpack.c.l.b16 %v311
        %v316 = vunpack.c.l.b16 %v312
        %v317 = vunpack.c.l.b16 %v313
        %v318 = vunpack.c.l.b16 %v314
        %v319 = vrot.slane %v316, 7
        %v320 = vsel %vm219, %v319, %v315
        %v321 = vrot.slane %v317, 6
        %v322 = vsel %vm222, %v321, %v320
        %v323 = vrot.slane %v318, 5
        %v324 = vsel %vm225, %v323, %v322
        %v325 = vpack.c.b16 %v324, %v324
        %326 = vrot.lane.b32.xlu0 %v325, 96
        %v327 = vpop.permute.xlu0 %326
        %vm328 = vcmask 261120
        %v331 = vsel %vm328, %v227, %v236
        %vm332 = vcmask 523264
        %v334 = vsel %vm332, %v331, %v238
        %vm335 = vcmask 785408
        %v337 = vsel %vm335, %v334, %v247
        %v340 = vsel %vm328, %v245, %v256
        %v342 = vsel %vm332, %v340, %v258
        %v344 = vsel %vm335, %v342, %v268
        %v347 = vsel %vm328, %v266, %v278
        %v349 = vsel %vm332, %v347, %v280
        %v351 = vsel %vm335, %v349, %v290
        %v354 = vsel %vm328, %v288, %v300
        %v356 = vsel %vm332, %v354, %v302
        %v358 = vsel %vm335, %v356, %v327
        %v359 = vrot.slane %v315, 1
        %v360 = vsel %vm219, %v316, %v359
        %v361 = vrot.slane %v317, 7
        %v362 = vsel %vm222, %v361, %v360
        %v363 = vrot.slane %v318, 6
        %v364 = vsel %vm225, %v363, %v362
        %v365 = vpack.c.b16 %v364, %v364
        %366 = vrot.lane.b32.xlu0 %v365, 32
        %v367 = vpop.permute.xlu0 %366
        %368 = vrot.lane.b32.xlu0 %v365, 64
        %v369 = vpop.permute.xlu0 %368
        %v370 = vrot.slane %v315, 2
        %v371 = vrot.slane %v316, 1
        %v372 = vsel %vm219, %v371, %v370
        %v373 = vsel %vm222, %v317, %v372
        %v374 = vrot.slane %v318, 7
        %v375 = vsel %vm225, %v374, %v373
        %v376 = vpack.c.b16 %v375, %v375
        %377 = vrot.lane.b32.xlu0 %v376, 96
        %v378 = vpop.permute.xlu0 %377
        %v379 = vrot.slane %v315, 3
        %v380 = vrot.slane %v316, 2
        %v381 = vsel %vm219, %v380, %v379
        %v382 = vrot.slane %v317, 1
        %v383 = vsel %vm222, %v382, %v381
        %v384 = vsel %vm225, %v318, %v383
        %v385 = vpack.c.b16 %v384, %v384
        %386 = vrot.lane.b32.xlu0 %v385, 32
        %v387 = vpop.permute.xlu0 %386
        %388 = vrot.lane.b32.xlu0 %v385, 64
        %v389 = vpop.permute.xlu0 %388
        %v390 = vrot.slane %v315, 4
        %v391 = vrot.slane %v316, 3
        %v392 = vsel %vm219, %v391, %v390
        %v393 = vrot.slane %v317, 2
        %v394 = vsel %vm222, %v393, %v392
        %v395 = vrot.slane %v318, 1
        %v396 = vsel %vm225, %v395, %v394
        %v397 = vpack.c.b16 %v396, %v396
        %398 = vrot.lane.b32.xlu0 %v397, 96
        %v399 = vpop.permute.xlu0 %398
        %v400 = vrot.slane %v315, 5
        %v401 = vrot.slane %v316, 4
        %v402 = vsel %vm219, %v401, %v400
        %v403 = vrot.slane %v317, 3
        %v404 = vsel %vm222, %v403, %v402
        %v405 = vrot.slane %v318, 2
        %v406 = vsel %vm225, %v405, %v404
        %v407 = vpack.c.b16 %v406, %v406
        %408 = vrot.lane.b32.xlu0 %v407, 32
        %v409 = vpop.permute.xlu0 %408
        %410 = vrot.lane.b32.xlu0 %v407, 64
        %v411 = vpop.permute.xlu0 %410
        %v412 = vrot.slane %v315, 6
        %v413 = vrot.slane %v316, 5
        %v414 = vsel %vm219, %v413, %v412
        %v415 = vrot.slane %v317, 4
        %v416 = vsel %vm222, %v415, %v414
        %v417 = vrot.slane %v318, 3
        %v418 = vsel %vm225, %v417, %v416
        %v419 = vpack.c.b16 %v418, %v418
        %420 = vrot.lane.b32.xlu0 %v419, 96
        %v421 = vpop.permute.xlu0 %420
        %v422 = vrot.slane %v315, 7
        %v423 = vrot.slane %v316, 6
        %v424 = vsel %vm219, %v423, %v422
        %v425 = vrot.slane %v317, 5
        %v426 = vsel %vm222, %v425, %v424
        %v427 = vrot.slane %v318, 4
        %v428 = vsel %vm225, %v427, %v426
        %v429 = vpack.c.b16 %v428, %v428
        %430 = vrot.lane.b32.xlu0 %v429, 32
        %v431 = vpop.permute.xlu0 %430
        %432 = vrot.lane.b32.xlu0 %v429, 64
        %v433 = vpop.permute.xlu0 %432
        %v438 = vunpack.c.l.b16 %v192
        %v439 = vunpack.c.l.b16 %v195
        %v440 = vunpack.c.l.b16 %v198
        %v441 = vunpack.c.l.b16 %v201
        %v442 = vpack.c.b16 %v438, %v438
        %v443 = vpack.c.b16 %v439, %v439
        %v444 = vpack.c.b16 %v440, %v440
        %v445 = vpack.c.b16 %v441, %v441
        %v446 = vunpack.c.l.b16 %v442
        %v447 = vunpack.c.l.b16 %v443
        %v448 = vunpack.c.l.b16 %v444
        %v449 = vunpack.c.l.b16 %v445
        %v450 = vrot.slane %v447, 7
        %v451 = vsel %vm219, %v450, %v446
        %v452 = vrot.slane %v448, 6
        %v453 = vsel %vm222, %v452, %v451
        %v454 = vrot.slane %v449, 5
        %v455 = vsel %vm225, %v454, %v453
        %v456 = vpack.c.b16 %v455, %v455
        %457 = vrot.lane.b32.xlu0 %v456, 96
        %v458 = vpop.permute.xlu0 %457
        %v461 = vsel %vm328, %v325, %v367
        %v463 = vsel %vm332, %v461, %v369
        %v465 = vsel %vm335, %v463, %v378
        %v468 = vsel %vm328, %v376, %v387
        %v470 = vsel %vm332, %v468, %v389
        %v472 = vsel %vm335, %v470, %v399
        %v475 = vsel %vm328, %v397, %v409
        %v477 = vsel %vm332, %v475, %v411
        %v479 = vsel %vm335, %v477, %v421
        %v482 = vsel %vm328, %v419, %v431
        %v484 = vsel %vm332, %v482, %v433
        %v486 = vsel %vm335, %v484, %v458
        %487 = vrot.lane.b32.xlu0 %v227, 127
        %v488 = vpop.permute.xlu0 %487
        %489 = vrot.lane.b32.xlu0 %v234, 31
        %v490 = vpop.permute.xlu0 %489
        %491 = vrot.lane.b32.xlu0 %v234, 63
        %v492 = vpop.permute.xlu0 %491
        %493 = vrot.lane.b32.xlu0 %v245, 95
        %v494 = vpop.permute.xlu0 %493
        %495 = vrot.lane.b32.xlu0 %v245, 127
        %v496 = vpop.permute.xlu0 %495
        %497 = vrot.lane.b32.xlu0 %v254, 31
        %v498 = vpop.permute.xlu0 %497
        %499 = vrot.lane.b32.xlu0 %v254, 63
        %v500 = vpop.permute.xlu0 %499
        %501 = vrot.lane.b32.xlu0 %v266, 95
        %v502 = vpop.permute.xlu0 %501
        %503 = vrot.lane.b32.xlu0 %v266, 127
        %v504 = vpop.permute.xlu0 %503
        %505 = vrot.lane.b32.xlu0 %v276, 31
        %v506 = vpop.permute.xlu0 %505
        %507 = vrot.lane.b32.xlu0 %v276, 63
        %v508 = vpop.permute.xlu0 %507
        %509 = vrot.lane.b32.xlu0 %v288, 95
        %v510 = vpop.permute.xlu0 %509
        %511 = vrot.lane.b32.xlu0 %v288, 127
        %v512 = vpop.permute.xlu0 %511
        %513 = vrot.lane.b32.xlu0 %v298, 31
        %v514 = vpop.permute.xlu0 %513
        %515 = vrot.lane.b32.xlu0 %v298, 63
        %v516 = vpop.permute.xlu0 %515
        %517 = vrot.lane.b32.xlu0 %v325, 95
        %v518 = vpop.permute.xlu0 %517
        %v521 = vsel %vm328, %v488, %v490
        %v523 = vsel %vm332, %v521, %v492
        %v525 = vsel %vm335, %v523, %v494
        %v528 = vsel %vm328, %v496, %v498
        %v530 = vsel %vm332, %v528, %v500
        %v532 = vsel %vm335, %v530, %v502
        %v535 = vsel %vm328, %v504, %v506
        %v537 = vsel %vm332, %v535, %v508
        %v539 = vsel %vm335, %v537, %v510
        %v542 = vsel %vm328, %v512, %v514
        %v544 = vsel %vm332, %v542, %v516
        %v546 = vsel %vm335, %v544, %v518
        %547 = vrot.lane.b32.xlu0 %v325, 127
        %v548 = vpop.permute.xlu0 %547
        %549 = vrot.lane.b32.xlu0 %v365, 31
        %v550 = vpop.permute.xlu0 %549
        %551 = vrot.lane.b32.xlu0 %v365, 63
        %v552 = vpop.permute.xlu0 %551
        %553 = vrot.lane.b32.xlu0 %v376, 95
        %v554 = vpop.permute.xlu0 %553
        %555 = vrot.lane.b32.xlu0 %v376, 127
        %v556 = vpop.permute.xlu0 %555
        %557 = vrot.lane.b32.xlu0 %v385, 31
        %v558 = vpop.permute.xlu0 %557
        %559 = vrot.lane.b32.xlu0 %v385, 63
        %v560 = vpop.permute.xlu0 %559
        %561 = vrot.lane.b32.xlu0 %v397, 95
        %v562 = vpop.permute.xlu0 %561
        %563 = vrot.lane.b32.xlu0 %v397, 127
        %v564 = vpop.permute.xlu0 %563
        %565 = vrot.lane.b32.xlu0 %v407, 31
        %v566 = vpop.permute.xlu0 %565
        %567 = vrot.lane.b32.xlu0 %v407, 63
        %v568 = vpop.permute.xlu0 %567
        %569 = vrot.lane.b32.xlu0 %v419, 95
        %v570 = vpop.permute.xlu0 %569
        %571 = vrot.lane.b32.xlu0 %v419, 127
        %v572 = vpop.permute.xlu0 %571
        %573 = vrot.lane.b32.xlu0 %v429, 31
        %v574 = vpop.permute.xlu0 %573
        %575 = vrot.lane.b32.xlu0 %v429, 63
        %v576 = vpop.permute.xlu0 %575
        %577 = vrot.lane.b32.xlu0 %v456, 95
        %v578 = vpop.permute.xlu0 %577
        %v581 = vsel %vm328, %v548, %v550
        %v583 = vsel %vm332, %v581, %v552
        %v585 = vsel %vm335, %v583, %v554
        %v588 = vsel %vm328, %v556, %v558
        %v590 = vsel %vm332, %v588, %v560
        %v592 = vsel %vm335, %v590, %v562
        %v595 = vsel %vm328, %v564, %v566
        %v597 = vsel %vm332, %v595, %v568
        %v599 = vsel %vm335, %v597, %v570
        %v602 = vsel %vm328, %v572, %v574
        %v604 = vsel %vm332, %v602, %v576
        %v606 = vsel %vm335, %v604, %v578
        %607 = vrot.lane.b32.xlu0 %v227, 126
        %v608 = vpop.permute.xlu0 %607
        %609 = vrot.lane.b32.xlu0 %v234, 30
        %v610 = vpop.permute.xlu0 %609
        %611 = vrot.lane.b32.xlu0 %v234, 62
        %v612 = vpop.permute.xlu0 %611
        %613 = vrot.lane.b32.xlu0 %v245, 94
        %v614 = vpop.permute.xlu0 %613
        %615 = vrot.lane.b32.xlu0 %v245, 126
        %v616 = vpop.permute.xlu0 %615
        %617 = vrot.lane.b32.xlu0 %v254, 30
        %v618 = vpop.permute.xlu0 %617
        %619 = vrot.lane.b32.xlu0 %v254, 62
        %v620 = vpop.permute.xlu0 %619
        %621 = vrot.lane.b32.xlu0 %v266, 94
        %v622 = vpop.permute.xlu0 %621
        %623 = vrot.lane.b32.xlu0 %v266, 126
        %v624 = vpop.permute.xlu0 %623
        %625 = vrot.lane.b32.xlu0 %v276, 30
        %v626 = vpop.permute.xlu0 %625
        %627 = vrot.lane.b32.xlu0 %v276, 62
        %v628 = vpop.permute.xlu0 %627
        %629 = vrot.lane.b32.xlu0 %v288, 94
        %v630 = vpop.permute.xlu0 %629
        %631 = vrot.lane.b32.xlu0 %v288, 126
        %v632 = vpop.permute.xlu0 %631
        %633 = vrot.lane.b32.xlu0 %v298, 30
        %v634 = vpop.permute.xlu0 %633
        %635 = vrot.lane.b32.xlu0 %v298, 62
        %v636 = vpop.permute.xlu0 %635
        %637 = vrot.lane.b32.xlu0 %v325, 94
        %v638 = vpop.permute.xlu0 %637
        %v641 = vsel %vm328, %v608, %v610
        %v643 = vsel %vm332, %v641, %v612
        %v645 = vsel %vm335, %v643, %v614
        %v648 = vsel %vm328, %v616, %v618
        %v650 = vsel %vm332, %v648, %v620
        %v652 = vsel %vm335, %v650, %v622
        %v655 = vsel %vm328, %v624, %v626
        %v657 = vsel %vm332, %v655, %v628
        %v659 = vsel %vm335, %v657, %v630
        %v662 = vsel %vm328, %v632, %v634
        %v664 = vsel %vm332, %v662, %v636
        %v666 = vsel %vm335, %v664, %v638
        %667 = vrot.lane.b32.xlu0 %v325, 126
        %v668 = vpop.permute.xlu0 %667
        %669 = vrot.lane.b32.xlu0 %v365, 30
        %v670 = vpop.permute.xlu0 %669
        %671 = vrot.lane.b32.xlu0 %v365, 62
        %v672 = vpop.permute.xlu0 %671
        %673 = vrot.lane.b32.xlu0 %v376, 94
        %v674 = vpop.permute.xlu0 %673
        %675 = vrot.lane.b32.xlu0 %v376, 126
        %v676 = vpop.permute.xlu0 %675
        %677 = vrot.lane.b32.xlu0 %v385, 30
        %v678 = vpop.permute.xlu0 %677
        %679 = vrot.lane.b32.xlu0 %v385, 62
        %v680 = vpop.permute.xlu0 %679
        %681 = vrot.lane.b32.xlu0 %v397, 94
        %v682 = vpop.permute.xlu0 %681
        %683 = vrot.lane.b32.xlu0 %v397, 126
        %v684 = vpop.permute.xlu0 %683
        %685 = vrot.lane.b32.xlu0 %v407, 30
        %v686 = vpop.permute.xlu0 %685
        %687 = vrot.lane.b32.xlu0 %v407, 62
        %v688 = vpop.permute.xlu0 %687
        %689 = vrot.lane.b32.xlu0 %v419, 94
        %v690 = vpop.permute.xlu0 %689
        %691 = vrot.lane.b32.xlu0 %v419, 126
        %v692 = vpop.permute.xlu0 %691
        %693 = vrot.lane.b32.xlu0 %v429, 30
        %v694 = vpop.permute.xlu0 %693
        %695 = vrot.lane.b32.xlu0 %v429, 62
        %v696 = vpop.permute.xlu0 %695
        %697 = vrot.lane.b32.xlu0 %v456, 94
        %v698 = vpop.permute.xlu0 %697
        %v701 = vsel %vm328, %v668, %v670
        %v703 = vsel %vm332, %v701, %v672
        %v705 = vsel %vm335, %v703, %v674
        %v708 = vsel %vm328, %v676, %v678
        %v710 = vsel %vm332, %v708, %v680
        %v712 = vsel %vm335, %v710, %v682
        %v715 = vsel %vm328, %v684, %v686
        %v717 = vsel %vm332, %v715, %v688
        %v719 = vsel %vm335, %v717, %v690
        %v722 = vsel %vm328, %v692, %v694
        %v724 = vsel %vm332, %v722, %v696
        %v726 = vsel %vm335, %v724, %v698
        %v727 = vsel %vm222, %v218, %v214
        %v728 = vsel %vm225, %v221, %v727
        %vm729 = vcmask 1044484
        %v730 = vsel %vm729, %v224, %v728
        %v731 = vpack.c.b16 %v730, %v730
        %732 = vrot.lane.b32.xlu0 %v731, 32
        %v733 = vpop.permute.xlu0 %732
        %v734 = vsel %vm222, %v215, %v228
        %v735 = vsel %vm225, %v230, %v734
        %v736 = vsel %vm729, %v232, %v735
        %v737 = vpack.c.b16 %v736, %v736
        %738 = vrot.lane.b32.xlu0 %v737, 64
        %v739 = vpop.permute.xlu0 %738
        %740 = vrot.lane.b32.xlu0 %v737, 96
        %v741 = vpop.permute.xlu0 %740
        %v742 = vsel %vm222, %v240, %v239
        %v743 = vsel %vm225, %v216, %v742
        %v744 = vsel %vm729, %v243, %v743
        %v745 = vpack.c.b16 %v744, %v744
        %746 = vrot.lane.b32.xlu0 %v745, 32
        %v747 = vpop.permute.xlu0 %746
        %v748 = vsel %vm222, %v249, %v248
        %v749 = vsel %vm225, %v251, %v748
        %v750 = vsel %vm729, %v217, %v749
        %v751 = vpack.c.b16 %v750, %v750
        %752 = vrot.lane.b32.xlu0 %v751, 64
        %v753 = vpop.permute.xlu0 %752
        %754 = vrot.lane.b32.xlu0 %v751, 96
        %v755 = vpop.permute.xlu0 %754
        %v756 = vsel %vm222, %v260, %v259
        %v757 = vsel %vm225, %v262, %v756
        %v758 = vsel %vm729, %v264, %v757
        %v759 = vpack.c.b16 %v758, %v758
        %760 = vrot.lane.b32.xlu0 %v759, 32
        %v761 = vpop.permute.xlu0 %760
        %v762 = vsel %vm222, %v270, %v269
        %v763 = vsel %vm225, %v272, %v762
        %v764 = vsel %vm729, %v274, %v763
        %v765 = vpack.c.b16 %v764, %v764
        %766 = vrot.lane.b32.xlu0 %v765, 64
        %v767 = vpop.permute.xlu0 %766
        %768 = vrot.lane.b32.xlu0 %v765, 96
        %v769 = vpop.permute.xlu0 %768
        %v770 = vsel %vm222, %v282, %v281
        %v771 = vsel %vm225, %v284, %v770
        %v772 = vsel %vm729, %v286, %v771
        %v773 = vpack.c.b16 %v772, %v772
        %774 = vrot.lane.b32.xlu0 %v773, 32
        %v775 = vpop.permute.xlu0 %774
        %v776 = vsel %vm222, %v423, %v422
        %v777 = vsel %vm225, %v425, %v776
        %v778 = vsel %vm729, %v427, %v777
        %v779 = vpack.c.b16 %v778, %v778
        %780 = vrot.lane.b32.xlu0 %v779, 64
        %v781 = vpop.permute.xlu0 %780
        %782 = vrot.lane.b32.xlu0 %v779, 96
        %v783 = vpop.permute.xlu0 %782
        %v786 = vsel %vm328, %v731, %v733
        %v788 = vsel %vm332, %v786, %v739
        %v790 = vsel %vm335, %v788, %v741
        %v793 = vsel %vm328, %v745, %v747
        %v795 = vsel %vm332, %v793, %v753
        %v797 = vsel %vm335, %v795, %v755
        %v800 = vsel %vm328, %v759, %v761
        %v802 = vsel %vm332, %v800, %v767
        %v804 = vsel %vm335, %v802, %v769
        %v807 = vsel %vm328, %v773, %v775
        %v809 = vsel %vm332, %v807, %v781
        %v811 = vsel %vm335, %v809, %v783
        %v812 = vsel %vm222, %v319, %v315
        %v813 = vsel %vm225, %v321, %v812
        %v814 = vsel %vm729, %v323, %v813
        %v815 = vpack.c.b16 %v814, %v814
        %816 = vrot.lane.b32.xlu0 %v815, 32
        %v817 = vpop.permute.xlu0 %816
        %v818 = vsel %vm222, %v316, %v359
        %v819 = vsel %vm225, %v361, %v818
        %v820 = vsel %vm729, %v363, %v819
        %v821 = vpack.c.b16 %v820, %v820
        %822 = vrot.lane.b32.xlu0 %v821, 64
        %v823 = vpop.permute.xlu0 %822
        %824 = vrot.lane.b32.xlu0 %v821, 96
        %v825 = vpop.permute.xlu0 %824
        %v826 = vsel %vm222, %v371, %v370
        %v827 = vsel %vm225, %v317, %v826
        %v828 = vsel %vm729, %v374, %v827
        %v829 = vpack.c.b16 %v828, %v828
        %830 = vrot.lane.b32.xlu0 %v829, 32
        %v831 = vpop.permute.xlu0 %830
        %v832 = vsel %vm222, %v380, %v379
        %v833 = vsel %vm225, %v382, %v832
        %v834 = vsel %vm729, %v318, %v833
        %v835 = vpack.c.b16 %v834, %v834
        %836 = vrot.lane.b32.xlu0 %v835, 64
        %v837 = vpop.permute.xlu0 %836
        %838 = vrot.lane.b32.xlu0 %v835, 96
        %v839 = vpop.permute.xlu0 %838
        %v840 = vsel %vm222, %v391, %v390
        %v841 = vsel %vm225, %v393, %v840
        %v842 = vsel %vm729, %v395, %v841
        %v843 = vpack.c.b16 %v842, %v842
        %844 = vrot.lane.b32.xlu0 %v843, 32
        %v845 = vpop.permute.xlu0 %844
        %v846 = vsel %vm222, %v401, %v400
        %v847 = vsel %vm225, %v403, %v846
        %v848 = vsel %vm729, %v405, %v847
        %v849 = vpack.c.b16 %v848, %v848
        %850 = vrot.lane.b32.xlu0 %v849, 64
        %v851 = vpop.permute.xlu0 %850
        %852 = vrot.lane.b32.xlu0 %v849, 96
        %v853 = vpop.permute.xlu0 %852
        %v854 = vsel %vm222, %v413, %v412
        %v855 = vsel %vm225, %v415, %v854
        %v856 = vsel %vm729, %v417, %v855
        %v857 = vpack.c.b16 %v856, %v856
        %858 = vrot.lane.b32.xlu0 %v857, 32
        %v859 = vpop.permute.xlu0 %858
        %v860 = vrot.slane %v446, 7
        %v861 = vrot.slane %v447, 6
        %v862 = vsel %vm222, %v861, %v860
        %v863 = vrot.slane %v448, 5
        %v864 = vsel %vm225, %v863, %v862
        %v865 = vrot.slane %v449, 4
        %v866 = vsel %vm729, %v865, %v864
        %v867 = vpack.c.b16 %v866, %v866
        %868 = vrot.lane.b32.xlu0 %v867, 64
        %v869 = vpop.permute.xlu0 %868
        %870 = vrot.lane.b32.xlu0 %v867, 96
        %v871 = vpop.permute.xlu0 %870
        %v874 = vsel %vm328, %v815, %v817
        %v876 = vsel %vm332, %v874, %v823
        %v878 = vsel %vm335, %v876, %v825
        %v881 = vsel %vm328, %v829, %v831
        %v883 = vsel %vm332, %v881, %v837
        %v885 = vsel %vm335, %v883, %v839
        %v888 = vsel %vm328, %v843, %v845
        %v890 = vsel %vm332, %v888, %v851
        %v892 = vsel %vm335, %v890, %v853
        %v895 = vsel %vm328, %v857, %v859
        %v897 = vsel %vm332, %v895, %v869
        %v899 = vsel %vm335, %v897, %v871
        %900 = vrot.lane.b32.xlu0 %v731, 127
        %v901 = vpop.permute.xlu0 %900
        %902 = vrot.lane.b32.xlu0 %v731, 31
        %v903 = vpop.permute.xlu0 %902
        %904 = vrot.lane.b32.xlu0 %v737, 63
        %v905 = vpop.permute.xlu0 %904
        %906 = vrot.lane.b32.xlu0 %v737, 95
        %v907 = vpop.permute.xlu0 %906
        %908 = vrot.lane.b32.xlu0 %v745, 127
        %v909 = vpop.permute.xlu0 %908
        %910 = vrot.lane.b32.xlu0 %v745, 31
        %v911 = vpop.permute.xlu0 %910
        %912 = vrot.lane.b32.xlu0 %v751, 63
        %v913 = vpop.permute.xlu0 %912
        %914 = vrot.lane.b32.xlu0 %v751, 95
        %v915 = vpop.permute.xlu0 %914
        %916 = vrot.lane.b32.xlu0 %v759, 127
        %v917 = vpop.permute.xlu0 %916
        %918 = vrot.lane.b32.xlu0 %v759, 31
        %v919 = vpop.permute.xlu0 %918
        %920 = vrot.lane.b32.xlu0 %v765, 63
        %v921 = vpop.permute.xlu0 %920
        %922 = vrot.lane.b32.xlu0 %v765, 95
        %v923 = vpop.permute.xlu0 %922
        %924 = vrot.lane.b32.xlu0 %v773, 127
        %v925 = vpop.permute.xlu0 %924
        %926 = vrot.lane.b32.xlu0 %v773, 31
        %v927 = vpop.permute.xlu0 %926
        %928 = vrot.lane.b32.xlu0 %v779, 63
        %v929 = vpop.permute.xlu0 %928
        %930 = vrot.lane.b32.xlu0 %v779, 95
        %v931 = vpop.permute.xlu0 %930
        %v934 = vsel %vm328, %v901, %v903
        %v936 = vsel %vm332, %v934, %v905
        %v938 = vsel %vm335, %v936, %v907
        %v941 = vsel %vm328, %v909, %v911
        %v943 = vsel %vm332, %v941, %v913
        %v945 = vsel %vm335, %v943, %v915
        %v948 = vsel %vm328, %v917, %v919
        %v950 = vsel %vm332, %v948, %v921
        %v952 = vsel %vm335, %v950, %v923
        %v955 = vsel %vm328, %v925, %v927
        %v957 = vsel %vm332, %v955, %v929
        %v959 = vsel %vm335, %v957, %v931
        %960 = vrot.lane.b32.xlu0 %v815, 127
        %v961 = vpop.permute.xlu0 %960
        %962 = vrot.lane.b32.xlu0 %v815, 31
        %v963 = vpop.permute.xlu0 %962
        %964 = vrot.lane.b32.xlu0 %v821, 63
        %v965 = vpop.permute.xlu0 %964
        %966 = vrot.lane.b32.xlu0 %v821, 95
        %v967 = vpop.permute.xlu0 %966
        %968 = vrot.lane.b32.xlu0 %v829, 127
        %v969 = vpop.permute.xlu0 %968
        %970 = vrot.lane.b32.xlu0 %v829, 31
        %v971 = vpop.permute.xlu0 %970
        %972 = vrot.lane.b32.xlu0 %v835, 63
        %v973 = vpop.permute.xlu0 %972
        %974 = vrot.lane.b32.xlu0 %v835, 95
        %v975 = vpop.permute.xlu0 %974
        %976 = vrot.lane.b32.xlu0 %v843, 127
        %v977 = vpop.permute.xlu0 %976
        %978 = vrot.lane.b32.xlu0 %v843, 31
        %v979 = vpop.permute.xlu0 %978
        %980 = vrot.lane.b32.xlu0 %v849, 63
        %v981 = vpop.permute.xlu0 %980
        %982 = vrot.lane.b32.xlu0 %v849, 95
        %v983 = vpop.permute.xlu0 %982
        %984 = vrot.lane.b32.xlu0 %v857, 127
        %v985 = vpop.permute.xlu0 %984
        %986 = vrot.lane.b32.xlu0 %v857, 31
        %v987 = vpop.permute.xlu0 %986
        %988 = vrot.lane.b32.xlu0 %v867, 63
        %v989 = vpop.permute.xlu0 %988
        %990 = vrot.lane.b32.xlu0 %v867, 95
        %v991 = vpop.permute.xlu0 %990
        %v994 = vsel %vm328, %v961, %v963
        %v996 = vsel %vm332, %v994, %v965
        %v998 = vsel %vm335, %v996, %v967
        %v1001 = vsel %vm328, %v969, %v971
        %v1003 = vsel %vm332, %v1001, %v973
        %v1005 = vsel %vm335, %v1003, %v975
        %v1008 = vsel %vm328, %v977, %v979
        %v1010 = vsel %vm332, %v1008, %v981
        %v1012 = vsel %vm335, %v1010, %v983
        %v1015 = vsel %vm328, %v985, %v987
        %v1017 = vsel %vm332, %v1015, %v989
        %v1019 = vsel %vm335, %v1017, %v991
        %1020 = vrot.lane.b32.xlu0 %v731, 126
        %v1021 = vpop.permute.xlu0 %1020
        %1022 = vrot.lane.b32.xlu0 %v731, 30
        %v1023 = vpop.permute.xlu0 %1022
        %1024 = vrot.lane.b32.xlu0 %v737, 62
        %v1025 = vpop.permute.xlu0 %1024
        %1026 = vrot.lane.b32.xlu0 %v737, 94
        %v1027 = vpop.permute.xlu0 %1026
        %1028 = vrot.lane.b32.xlu0 %v745, 126
        %v1029 = vpop.permute.xlu0 %1028
        %1030 = vrot.lane.b32.xlu0 %v745, 30
        %v1031 = vpop.permute.xlu0 %1030
        %1032 = vrot.lane.b32.xlu0 %v751, 62
        %v1033 = vpop.permute.xlu0 %1032
        %1034 = vrot.lane.b32.xlu0 %v751, 94
        %v1035 = vpop.permute.xlu0 %1034
        %1036 = vrot.lane.b32.xlu0 %v759, 126
        %v1037 = vpop.permute.xlu0 %1036
        %1038 = vrot.lane.b32.xlu0 %v759, 30
        %v1039 = vpop.permute.xlu0 %1038
        %1040 = vrot.lane.b32.xlu0 %v765, 62
        %v1041 = vpop.permute.xlu0 %1040
        %1042 = vrot.lane.b32.xlu0 %v765, 94
        %v1043 = vpop.permute.xlu0 %1042
        %1044 = vrot.lane.b32.xlu0 %v773, 126
        %v1045 = vpop.permute.xlu0 %1044
        %1046 = vrot.lane.b32.xlu0 %v773, 30
        %v1047 = vpop.permute.xlu0 %1046
        %1048 = vrot.lane.b32.xlu0 %v779, 62
        %v1049 = vpop.permute.xlu0 %1048
        %1050 = vrot.lane.b32.xlu0 %v779, 94
        %v1051 = vpop.permute.xlu0 %1050
        %v1054 = vsel %vm328, %v1021, %v1023
        %v1056 = vsel %vm332, %v1054, %v1025
        %v1058 = vsel %vm335, %v1056, %v1027
        %v1061 = vsel %vm328, %v1029, %v1031
        %v1063 = vsel %vm332, %v1061, %v1033
        %v1065 = vsel %vm335, %v1063, %v1035
        %v1068 = vsel %vm328, %v1037, %v1039
        %v1070 = vsel %vm332, %v1068, %v1041
        %v1072 = vsel %vm335, %v1070, %v1043
        %v1075 = vsel %vm328, %v1045, %v1047
        %v1077 = vsel %vm332, %v1075, %v1049
        %v1079 = vsel %vm335, %v1077, %v1051
        %1080 = vrot.lane.b32.xlu0 %v815, 126
        %v1081 = vpop.permute.xlu0 %1080
        %1082 = vrot.lane.b32.xlu0 %v815, 30
        %v1083 = vpop.permute.xlu0 %1082
        %1084 = vrot.lane.b32.xlu0 %v821, 62
        %v1085 = vpop.permute.xlu0 %1084
        %1086 = vrot.lane.b32.xlu0 %v821, 94
        %v1087 = vpop.permute.xlu0 %1086
        %1088 = vrot.lane.b32.xlu0 %v829, 126
        %v1089 = vpop.permute.xlu0 %1088
        %1090 = vrot.lane.b32.xlu0 %v829, 30
        %v1091 = vpop.permute.xlu0 %1090
        %1092 = vrot.lane.b32.xlu0 %v835, 62
        %v1093 = vpop.permute.xlu0 %1092
        %1094 = vrot.lane.b32.xlu0 %v835, 94
        %v1095 = vpop.permute.xlu0 %1094
        %1096 = vrot.lane.b32.xlu0 %v843, 126
        %v1097 = vpop.permute.xlu0 %1096
        %1098 = vrot.lane.b32.xlu0 %v843, 30
        %v1099 = vpop.permute.xlu0 %1098
        %1100 = vrot.lane.b32.xlu0 %v849, 62
        %v1101 = vpop.permute.xlu0 %1100
        %1102 = vrot.lane.b32.xlu0 %v849, 94
        %v1103 = vpop.permute.xlu0 %1102
        %1104 = vrot.lane.b32.xlu0 %v857, 126
        %v1105 = vpop.permute.xlu0 %1104
        %1106 = vrot.lane.b32.xlu0 %v857, 30
        %v1107 = vpop.permute.xlu0 %1106
        %1108 = vrot.lane.b32.xlu0 %v867, 62
        %v1109 = vpop.permute.xlu0 %1108
        %1110 = vrot.lane.b32.xlu0 %v867, 94
        %v1111 = vpop.permute.xlu0 %1110
        %v1114 = vsel %vm328, %v1081, %v1083
        %v1116 = vsel %vm332, %v1114, %v1085
        %v1118 = vsel %vm335, %v1116, %v1087
        %v1121 = vsel %vm328, %v1089, %v1091
        %v1123 = vsel %vm332, %v1121, %v1093
        %v1125 = vsel %vm335, %v1123, %v1095
        %v1128 = vsel %vm328, %v1097, %v1099
        %v1130 = vsel %vm332, %v1128, %v1101
        %v1132 = vsel %vm335, %v1130, %v1103
        %v1135 = vsel %vm328, %v1105, %v1107
        %v1137 = vsel %vm332, %v1135, %v1109
        %v1139 = vsel %vm335, %v1137, %v1111
        %1140 = vrot.lane.b32.xlu0 %v737, 32
        %v1141 = vpop.permute.xlu0 %1140
        %1142 = vrot.lane.b32.xlu0 %v745, 96
        %v1143 = vpop.permute.xlu0 %1142
        %1144 = vrot.lane.b32.xlu0 %v751, 32
        %v1145 = vpop.permute.xlu0 %1144
        %1146 = vrot.lane.b32.xlu0 %v759, 96
        %v1147 = vpop.permute.xlu0 %1146
        %1148 = vrot.lane.b32.xlu0 %v765, 32
        %v1149 = vpop.permute.xlu0 %1148
        %1150 = vrot.lane.b32.xlu0 %v773, 96
        %v1151 = vpop.permute.xlu0 %1150
        %1152 = vrot.lane.b32.xlu0 %v779, 32
        %v1153 = vpop.permute.xlu0 %1152
        %1154 = vrot.lane.b32.xlu0 %v815, 96
        %v1155 = vpop.permute.xlu0 %1154
        %v1157 = vsel %vm328, %v731, %v1141
        %v1158 = vsel %vm332, %v1157, %v739
        %v1160 = vsel %vm335, %v1158, %v1143
        %v1162 = vsel %vm328, %v745, %v1145
        %v1163 = vsel %vm332, %v1162, %v753
        %v1165 = vsel %vm335, %v1163, %v1147
        %v1167 = vsel %vm328, %v759, %v1149
        %v1168 = vsel %vm332, %v1167, %v767
        %v1170 = vsel %vm335, %v1168, %v1151
        %v1172 = vsel %vm328, %v773, %v1153
        %v1173 = vsel %vm332, %v1172, %v781
        %v1175 = vsel %vm335, %v1173, %v1155
        %1176 = vrot.lane.b32.xlu0 %v821, 32
        %v1177 = vpop.permute.xlu0 %1176
        %1178 = vrot.lane.b32.xlu0 %v829, 96
        %v1179 = vpop.permute.xlu0 %1178
        %1180 = vrot.lane.b32.xlu0 %v835, 32
        %v1181 = vpop.permute.xlu0 %1180
        %1182 = vrot.lane.b32.xlu0 %v843, 96
        %v1183 = vpop.permute.xlu0 %1182
        %1184 = vrot.lane.b32.xlu0 %v849, 32
        %v1185 = vpop.permute.xlu0 %1184
        %1186 = vrot.lane.b32.xlu0 %v857, 96
        %v1187 = vpop.permute.xlu0 %1186
        %1188 = vrot.lane.b32.xlu0 %v867, 32
        %v1189 = vpop.permute.xlu0 %1188
        %v1190 = vsel %vm222, %v450, %v446
        %v1191 = vsel %vm225, %v452, %v1190
        %v1192 = vsel %vm729, %v454, %v1191
        %v1193 = vpack.c.b16 %v1192, %v1192
        %1194 = vrot.lane.b32.xlu0 %v1193, 96
        %v1195 = vpop.permute.xlu0 %1194
        %v1197 = vsel %vm328, %v815, %v1177
        %v1198 = vsel %vm332, %v1197, %v823
        %v1200 = vsel %vm335, %v1198, %v1179
        %v1202 = vsel %vm328, %v829, %v1181
        %v1203 = vsel %vm332, %v1202, %v837
        %v1205 = vsel %vm335, %v1203, %v1183
        %v1207 = vsel %vm328, %v843, %v1185
        %v1208 = vsel %vm332, %v1207, %v851
        %v1210 = vsel %vm335, %v1208, %v1187
        %v1212 = vsel %vm328, %v857, %v1189
        %v1213 = vsel %vm332, %v1212, %v869
        %v1215 = vsel %vm335, %v1213, %v1195
        %1216 = vrot.lane.b32.xlu0 %v737, 31
        %v1217 = vpop.permute.xlu0 %1216
        %1218 = vrot.lane.b32.xlu0 %v745, 95
        %v1219 = vpop.permute.xlu0 %1218
        %1220 = vrot.lane.b32.xlu0 %v751, 31
        %v1221 = vpop.permute.xlu0 %1220
        %1222 = vrot.lane.b32.xlu0 %v759, 95
        %v1223 = vpop.permute.xlu0 %1222
        %1224 = vrot.lane.b32.xlu0 %v765, 31
        %v1225 = vpop.permute.xlu0 %1224
        %1226 = vrot.lane.b32.xlu0 %v773, 95
        %v1227 = vpop.permute.xlu0 %1226
        %1228 = vrot.lane.b32.xlu0 %v779, 31
        %v1229 = vpop.permute.xlu0 %1228
        %1230 = vrot.lane.b32.xlu0 %v815, 95
        %v1231 = vpop.permute.xlu0 %1230
        %v1233 = vsel %vm328, %v901, %v1217
        %v1234 = vsel %vm332, %v1233, %v905
        %v1236 = vsel %vm335, %v1234, %v1219
        %v1238 = vsel %vm328, %v909, %v1221
        %v1239 = vsel %vm332, %v1238, %v913
        %v1241 = vsel %vm335, %v1239, %v1223
        %v1243 = vsel %vm328, %v917, %v1225
        %v1244 = vsel %vm332, %v1243, %v921
        %v1246 = vsel %vm335, %v1244, %v1227
        %v1248 = vsel %vm328, %v925, %v1229
        %v1249 = vsel %vm332, %v1248, %v929
        %v1251 = vsel %vm335, %v1249, %v1231
        %1252 = vrot.lane.b32.xlu0 %v821, 31
        %v1253 = vpop.permute.xlu0 %1252
        %1254 = vrot.lane.b32.xlu0 %v829, 95
        %v1255 = vpop.permute.xlu0 %1254
        %1256 = vrot.lane.b32.xlu0 %v835, 31
        %v1257 = vpop.permute.xlu0 %1256
        %1258 = vrot.lane.b32.xlu0 %v843, 95
        %v1259 = vpop.permute.xlu0 %1258
        %1260 = vrot.lane.b32.xlu0 %v849, 31
        %v1261 = vpop.permute.xlu0 %1260
        %1262 = vrot.lane.b32.xlu0 %v857, 95
        %v1263 = vpop.permute.xlu0 %1262
        %1264 = vrot.lane.b32.xlu0 %v867, 31
        %v1265 = vpop.permute.xlu0 %1264
        %1266 = vrot.lane.b32.xlu0 %v1193, 95
        %v1267 = vpop.permute.xlu0 %1266
        %v1269 = vsel %vm328, %v961, %v1253
        %v1270 = vsel %vm332, %v1269, %v965
        %v1272 = vsel %vm335, %v1270, %v1255
        %v1274 = vsel %vm328, %v969, %v1257
        %v1275 = vsel %vm332, %v1274, %v973
        %v1277 = vsel %vm335, %v1275, %v1259
        %v1279 = vsel %vm328, %v977, %v1261
        %v1280 = vsel %vm332, %v1279, %v981
        %v1282 = vsel %vm335, %v1280, %v1263
        %v1284 = vsel %vm328, %v985, %v1265
        %v1285 = vsel %vm332, %v1284, %v989
        %v1287 = vsel %vm335, %v1285, %v1267
        %1288 = vrot.lane.b32.xlu0 %v737, 30
        %v1289 = vpop.permute.xlu0 %1288
        %1290 = vrot.lane.b32.xlu0 %v745, 94
        %v1291 = vpop.permute.xlu0 %1290
        %1292 = vrot.lane.b32.xlu0 %v751, 30
        %v1293 = vpop.permute.xlu0 %1292
        %1294 = vrot.lane.b32.xlu0 %v759, 94
        %v1295 = vpop.permute.xlu0 %1294
        %1296 = vrot.lane.b32.xlu0 %v765, 30
        %v1297 = vpop.permute.xlu0 %1296
        %1298 = vrot.lane.b32.xlu0 %v773, 94
        %v1299 = vpop.permute.xlu0 %1298
        %1300 = vrot.lane.b32.xlu0 %v779, 30
        %v1301 = vpop.permute.xlu0 %1300
        %1302 = vrot.lane.b32.xlu0 %v815, 94
        %v1303 = vpop.permute.xlu0 %1302
        %v1305 = vsel %vm328, %v1021, %v1289
        %v1306 = vsel %vm332, %v1305, %v1025
        %v1308 = vsel %vm335, %v1306, %v1291
        %v1310 = vsel %vm328, %v1029, %v1293
        %v1311 = vsel %vm332, %v1310, %v1033
        %v1313 = vsel %vm335, %v1311, %v1295
        %v1315 = vsel %vm328, %v1037, %v1297
        %v1316 = vsel %vm332, %v1315, %v1041
        %v1318 = vsel %vm335, %v1316, %v1299
        %v1320 = vsel %vm328, %v1045, %v1301
        %v1321 = vsel %vm332, %v1320, %v1049
        %v1323 = vsel %vm335, %v1321, %v1303
        %1324 = vrot.lane.b32.xlu0 %v821, 30
        %v1325 = vpop.permute.xlu0 %1324
        %1326 = vrot.lane.b32.xlu0 %v829, 94
        %v1327 = vpop.permute.xlu0 %1326
        %1328 = vrot.lane.b32.xlu0 %v835, 30
        %v1329 = vpop.permute.xlu0 %1328
        %1330 = vrot.lane.b32.xlu0 %v843, 94
        %v1331 = vpop.permute.xlu0 %1330
        %1332 = vrot.lane.b32.xlu0 %v849, 30
        %v1333 = vpop.permute.xlu0 %1332
        %1334 = vrot.lane.b32.xlu0 %v857, 94
        %v1335 = vpop.permute.xlu0 %1334
        %1336 = vrot.lane.b32.xlu0 %v867, 30
        %v1337 = vpop.permute.xlu0 %1336
        %1338 = vrot.lane.b32.xlu0 %v1193, 94
        %v1339 = vpop.permute.xlu0 %1338
        %v1341 = vsel %vm328, %v1081, %v1325
        %v1342 = vsel %vm332, %v1341, %v1085
        %v1344 = vsel %vm335, %v1342, %v1327
        %v1346 = vsel %vm328, %v1089, %v1329
        %v1347 = vsel %vm332, %v1346, %v1093
        %v1349 = vsel %vm335, %v1347, %v1331
        %v1351 = vsel %vm328, %v1097, %v1333
        %v1352 = vsel %vm332, %v1351, %v1101
        %v1354 = vsel %vm335, %v1352, %v1335
        %v1356 = vsel %vm328, %v1105, %v1337
        %v1357 = vsel %vm332, %v1356, %v1109
        %v1359 = vsel %vm335, %v1357, %v1339
        %v1368 = vrot.slane %v525, 6
        %v1369 = vrot.slane %v532, 6
        %v1370 = vrot.slane %v539, 6
        %v1371 = vrot.slane %v546, 6
        %v1372 = vrot.slane %v585, 6
        %v1373 = vrot.slane %v592, 6
        %v1374 = vrot.slane %v599, 6
        %v1375 = vrot.slane %v606, 6
        %v1384 = vrot.slane %v645, 4
        %v1385 = vrot.slane %v652, 4
        %v1386 = vrot.slane %v659, 4
        %v1387 = vrot.slane %v666, 4
        %v1388 = vrot.slane %v705, 4
        %v1389 = vrot.slane %v712, 4
        %v1390 = vrot.slane %v719, 4
        %v1391 = vrot.slane %v726, 4
        %v1392 = vshrl.u32 %v790, 16
        %v1394 = vrot.slane %v1392, 2
        %v1395 = vshll.u32 %v790, 16
        %v1397 = vrot.slane %v1395, 3
        %v1398 = vor.u32 %v1394, %v1397
        %v1399 = vshrl.u32 %v797, 16
        %v1401 = vrot.slane %v1399, 2
        %v1402 = vshll.u32 %v797, 16
        %v1404 = vrot.slane %v1402, 3
        %v1405 = vor.u32 %v1401, %v1404
        %v1406 = vshrl.u32 %v804, 16
        %v1408 = vrot.slane %v1406, 2
        %v1409 = vshll.u32 %v804, 16
        %v1411 = vrot.slane %v1409, 3
        %v1412 = vor.u32 %v1408, %v1411
        %v1413 = vshrl.u32 %v811, 16
        %v1415 = vrot.slane %v1413, 2
        %v1416 = vshll.u32 %v811, 16
        %v1418 = vrot.slane %v1416, 3
        %v1419 = vor.u32 %v1415, %v1418
        %v1420 = vshrl.u32 %v878, 16
        %v1422 = vrot.slane %v1420, 2
        %v1423 = vshll.u32 %v878, 16
        %v1425 = vrot.slane %v1423, 3
        %v1426 = vor.u32 %v1422, %v1425
        %v1427 = vshrl.u32 %v885, 16
        %v1429 = vrot.slane %v1427, 2
        %v1430 = vshll.u32 %v885, 16
        %v1432 = vrot.slane %v1430, 3
        %v1433 = vor.u32 %v1429, %v1432
        %v1434 = vshrl.u32 %v892, 16
        %v1436 = vrot.slane %v1434, 2
        %v1437 = vshll.u32 %v892, 16
        %v1439 = vrot.slane %v1437, 3
        %v1440 = vor.u32 %v1436, %v1439
        %v1441 = vshrl.u32 %v899, 16
        %v1443 = vrot.slane %v1441, 2
        %v1444 = vshll.u32 %v899, 16
        %v1446 = vrot.slane %v1444, 3
        %v1447 = vor.u32 %v1443, %v1446
        %v1448 = vshrl.u32 %v938, 16
        %v1450 = vshll.u32 %v938, 16
        %v1452 = vrot.slane %v1450, 1
        %v1453 = vor.u32 %v1448, %v1452
        %v1454 = vshrl.u32 %v945, 16
        %v1456 = vshll.u32 %v945, 16
        %v1458 = vrot.slane %v1456, 1
        %v1459 = vor.u32 %v1454, %v1458
        %v1460 = vshrl.u32 %v952, 16
        %v1462 = vshll.u32 %v952, 16
        %v1464 = vrot.slane %v1462, 1
        %v1465 = vor.u32 %v1460, %v1464
        %v1466 = vshrl.u32 %v959, 16
        %v1468 = vshll.u32 %v959, 16
        %v1470 = vrot.slane %v1468, 1
        %v1471 = vor.u32 %v1466, %v1470
        %v1472 = vshrl.u32 %v998, 16
        %v1474 = vshll.u32 %v998, 16
        %v1476 = vrot.slane %v1474, 1
        %v1477 = vor.u32 %v1472, %v1476
        %v1478 = vshrl.u32 %v1005, 16
        %v1480 = vshll.u32 %v1005, 16
        %v1482 = vrot.slane %v1480, 1
        %v1483 = vor.u32 %v1478, %v1482
        %v1484 = vshrl.u32 %v1012, 16
        %v1486 = vshll.u32 %v1012, 16
        %v1488 = vrot.slane %v1486, 1
        %v1489 = vor.u32 %v1484, %v1488
        %v1490 = vshrl.u32 %v1019, 16
        %v1492 = vshll.u32 %v1019, 16
        %v1494 = vrot.slane %v1492, 1
        %v1495 = vor.u32 %v1490, %v1494
        %v1496 = vshrl.u32 %v1058, 16
        %v1498 = vrot.slane %v1496, 6
        %v1499 = vshll.u32 %v1058, 16
        %v1501 = vrot.slane %v1499, 7
        %v1502 = vor.u32 %v1498, %v1501
        %v1503 = vshrl.u32 %v1065, 16
        %v1505 = vrot.slane %v1503, 6
        %v1506 = vshll.u32 %v1065, 16
        %v1508 = vrot.slane %v1506, 7
        %v1509 = vor.u32 %v1505, %v1508
        %v1510 = vshrl.u32 %v1072, 16
        %v1512 = vrot.slane %v1510, 6
        %v1513 = vshll.u32 %v1072, 16
        %v1515 = vrot.slane %v1513, 7
        %v1516 = vor.u32 %v1512, %v1515
        %v1517 = vshrl.u32 %v1079, 16
        %v1519 = vrot.slane %v1517, 6
        %v1520 = vshll.u32 %v1079, 16
        %v1522 = vrot.slane %v1520, 7
        %v1523 = vor.u32 %v1519, %v1522
        %v1524 = vshrl.u32 %v1118, 16
        %v1526 = vrot.slane %v1524, 6
        %v1527 = vshll.u32 %v1118, 16
        %v1529 = vrot.slane %v1527, 7
        %v1530 = vor.u32 %v1526, %v1529
        %v1531 = vshrl.u32 %v1125, 16
        %v1533 = vrot.slane %v1531, 6
        %v1534 = vshll.u32 %v1125, 16
        %v1536 = vrot.slane %v1534, 7
        %v1537 = vor.u32 %v1533, %v1536
        %v1538 = vshrl.u32 %v1132, 16
        %v1540 = vrot.slane %v1538, 6
        %v1541 = vshll.u32 %v1132, 16
        %v1543 = vrot.slane %v1541, 7
        %v1544 = vor.u32 %v1540, %v1543
        %v1545 = vshrl.u32 %v1139, 16
        %v1547 = vrot.slane %v1545, 6
        %v1548 = vshll.u32 %v1139, 16
        %v1550 = vrot.slane %v1548, 7
        %v1551 = vor.u32 %v1547, %v1550
        %v1552 = vshrl.u32 %v1160, 16
        %v1554 = vrot.slane %v1552, 4
        %v1555 = vshll.u32 %v1160, 16
        %v1557 = vrot.slane %v1555, 5
        %v1558 = vor.u32 %v1554, %v1557
        %v1559 = vshrl.u32 %v1165, 16
        %v1561 = vrot.slane %v1559, 4
        %v1562 = vshll.u32 %v1165, 16
        %v1564 = vrot.slane %v1562, 5
        %v1565 = vor.u32 %v1561, %v1564
        %v1566 = vshrl.u32 %v1170, 16
        %v1568 = vrot.slane %v1566, 4
        %v1569 = vshll.u32 %v1170, 16
        %v1571 = vrot.slane %v1569, 5
        %v1572 = vor.u32 %v1568, %v1571
        %v1573 = vshrl.u32 %v1175, 16
        %v1575 = vrot.slane %v1573, 4
        %v1576 = vshll.u32 %v1175, 16
        %v1578 = vrot.slane %v1576, 5
        %v1579 = vor.u32 %v1575, %v1578
        %v1580 = vshrl.u32 %v1200, 16
        %v1582 = vrot.slane %v1580, 4
        %v1583 = vshll.u32 %v1200, 16
        %v1585 = vrot.slane %v1583, 5
        %v1586 = vor.u32 %v1582, %v1585
        %v1587 = vshrl.u32 %v1205, 16
        %v1589 = vrot.slane %v1587, 4
        %v1590 = vshll.u32 %v1205, 16
        %v1592 = vrot.slane %v1590, 5
        %v1593 = vor.u32 %v1589, %v1592
        %v1594 = vshrl.u32 %v1210, 16
        %v1596 = vrot.slane %v1594, 4
        %v1597 = vshll.u32 %v1210, 16
        %v1599 = vrot.slane %v1597, 5
        %v1600 = vor.u32 %v1596, %v1599
        %v1601 = vshrl.u32 %v1215, 16
        %v1603 = vrot.slane %v1601, 4
        %v1604 = vshll.u32 %v1215, 16
        %v1606 = vrot.slane %v1604, 5
        %v1607 = vor.u32 %v1603, %v1606
        %v1608 = vshrl.u32 %v1236, 16
        %v1610 = vrot.slane %v1608, 2
        %v1611 = vshll.u32 %v1236, 16
        %v1613 = vrot.slane %v1611, 3
        %v1614 = vor.u32 %v1610, %v1613
        %v1615 = vshrl.u32 %v1241, 16
        %v1617 = vrot.slane %v1615, 2
        %v1618 = vshll.u32 %v1241, 16
        %v1620 = vrot.slane %v1618, 3
        %v1621 = vor.u32 %v1617, %v1620
        %v1622 = vshrl.u32 %v1246, 16
        %v1624 = vrot.slane %v1622, 2
        %v1625 = vshll.u32 %v1246, 16
        %v1627 = vrot.slane %v1625, 3
        %v1628 = vor.u32 %v1624, %v1627
        %v1629 = vshrl.u32 %v1251, 16
        %v1631 = vrot.slane %v1629, 2
        %v1632 = vshll.u32 %v1251, 16
        %v1634 = vrot.slane %v1632, 3
        %v1635 = vor.u32 %v1631, %v1634
        %v1636 = vshrl.u32 %v1272, 16
        %v1638 = vrot.slane %v1636, 2
        %v1639 = vshll.u32 %v1272, 16
        %v1641 = vrot.slane %v1639, 3
        %v1642 = vor.u32 %v1638, %v1641
        %v1643 = vshrl.u32 %v1277, 16
        %v1645 = vrot.slane %v1643, 2
        %v1646 = vshll.u32 %v1277, 16
        %v1648 = vrot.slane %v1646, 3
        %v1649 = vor.u32 %v1645, %v1648
        %v1650 = vshrl.u32 %v1282, 16
        %v1652 = vrot.slane %v1650, 2
        %v1653 = vshll.u32 %v1282, 16
        %v1655 = vrot.slane %v1653, 3
        %v1656 = vor.u32 %v1652, %v1655
        %v1657 = vshrl.u32 %v1287, 16
        %v1659 = vrot.slane %v1657, 2
        %v1660 = vshll.u32 %v1287, 16
        %v1662 = vrot.slane %v1660, 3
        %v1663 = vor.u32 %v1659, %v1662
        %v1664 = vshrl.u32 %v1308, 16
        %v1666 = vshll.u32 %v1308, 16
        %v1668 = vrot.slane %v1666, 1
        %v1669 = vor.u32 %v1664, %v1668
        %v1670 = vshrl.u32 %v1313, 16
        %v1672 = vshll.u32 %v1313, 16
        %v1674 = vrot.slane %v1672, 1
        %v1675 = vor.u32 %v1670, %v1674
        %v1676 = vshrl.u32 %v1318, 16
        %v1678 = vshll.u32 %v1318, 16
        %v1680 = vrot.slane %v1678, 1
        %v1681 = vor.u32 %v1676, %v1680
        %v1682 = vshrl.u32 %v1323, 16
        %v1684 = vshll.u32 %v1323, 16
        %v1686 = vrot.slane %v1684, 1
        %v1687 = vor.u32 %v1682, %v1686
        %v1688 = vshrl.u32 %v1344, 16
        %v1690 = vshll.u32 %v1344, 16
        %v1692 = vrot.slane %v1690, 1
        %v1693 = vor.u32 %v1688, %v1692
        %v1694 = vshrl.u32 %v1349, 16
        %v1696 = vshll.u32 %v1349, 16
        %v1698 = vrot.slane %v1696, 1
        %v1699 = vor.u32 %v1694, %v1698
        %v1700 = vshrl.u32 %v1354, 16
        %v1702 = vshll.u32 %v1354, 16
        %v1704 = vrot.slane %v1702, 1
        %v1705 = vor.u32 %v1700, %v1704
        %v1706 = vshrl.u32 %v1359, 16
        %v1708 = vshll.u32 %v1359, 16
        %v1710 = vrot.slane %v1708, 1
        %v1711 = vor.u32 %v1706, %v1710
        %vm1712 = vcmask 1041408
        %v1714 = vsel %vm1712, %v337, %v1368
        %v1716 = vsel %vm1712, %v344, %v1369
        %v1718 = vsel %vm1712, %v351, %v1370
        %v1720 = vsel %vm1712, %v358, %v1371
        %v1722 = vsel %vm1712, %v465, %v1372
        %v1724 = vsel %vm1712, %v472, %v1373
        %v1726 = vsel %vm1712, %v479, %v1374
        %v1728 = vsel %vm1712, %v486, %v1375
        %vm1729 = vcmask 1043456
        %v1731 = vsel %vm1729, %v1714, %v1384
        %v1733 = vsel %vm1729, %v1716, %v1385
        %v1735 = vsel %vm1729, %v1718, %v1386
        %v1737 = vsel %vm1729, %v1720, %v1387
        %v1739 = vsel %vm1729, %v1722, %v1388
        %v1741 = vsel %vm1729, %v1724, %v1389
        %v1743 = vsel %vm1729, %v1726, %v1390
        %v1745 = vsel %vm1729, %v1728, %v1391
        %vm1746 = vcmask 1045504
        %v1748 = vsel %vm1746, %v1731, %v1398
        %v1751 = vsel %vm1746, %v1733, %v1405
        %v1754 = vsel %vm1746, %v1735, %v1412
        %v1757 = vsel %vm1746, %v1737, %v1419
        %v1760 = vsel %vm1746, %v1739, %v1426
        %v1763 = vsel %vm1746, %v1741, %v1433
        %v1766 = vsel %vm1746, %v1743, %v1440
        %v1769 = vsel %vm1746, %v1745, %v1447
        %v1773 = vsel %vm1712, %v1453, %v1502
        %v1776 = vsel %vm1712, %v1459, %v1509
        %v1779 = vsel %vm1712, %v1465, %v1516
        %v1782 = vsel %vm1712, %v1471, %v1523
        %v1785 = vsel %vm1712, %v1477, %v1530
        %v1788 = vsel %vm1712, %v1483, %v1537
        %v1791 = vsel %vm1712, %v1489, %v1544
        %v1794 = vsel %vm1712, %v1495, %v1551
        %v1796 = vsel %vm1729, %v1773, %v1558
        %v1798 = vsel %vm1729, %v1776, %v1565
        %v1800 = vsel %vm1729, %v1779, %v1572
        %v1802 = vsel %vm1729, %v1782, %v1579
        %v1804 = vsel %vm1729, %v1785, %v1586
        %v1806 = vsel %vm1729, %v1788, %v1593
        %v1808 = vsel %vm1729, %v1791, %v1600
        %v1810 = vsel %vm1729, %v1794, %v1607
        %v1812 = vsel %vm1746, %v1796, %v1614
        %v1815 = vsel %vm1746, %v1798, %v1621
        %v1818 = vsel %vm1746, %v1800, %v1628
        %v1821 = vsel %vm1746, %v1802, %v1635
        %v1824 = vsel %vm1746, %v1804, %v1642
        %v1827 = vsel %vm1746, %v1806, %v1649
        %v1830 = vsel %vm1746, %v1808, %v1656
        %v1833 = vsel %vm1746, %v1810, %v1663
        %v1835 = vld [vmem:[%s1] sm:$0xf]
        %v1836 = vld [vmem:[%s2] sm:$0xff]
        %1838 = vset.pattern.permute.xlu0 0
        %1839 = vperm.xlu0 %1838, %v1836
        %v1840 = vpop.permute.xlu0 %1839
        %vm1842 = vcmask 293888
        %v1844 = vsel %vm1842, %v1835, 0
        %v1847 = vsel %vm1712, %v1669, 0
        %v1850 = vsel %vm1712, %v1675, 0
        %v1853 = vsel %vm1712, %v1681, 0
        %v1856 = vsel %vm1712, %v1687, 0
        %v1859 = vsel %vm1712, %v1693, 0
        %v1862 = vsel %vm1712, %v1699, 0
        %v1865 = vsel %vm1712, %v1705, 0
        %v1868 = vsel %vm1712, %v1711, 0
        %1870 = vmatpush.bf16.msra.mxu0 0
        %1871 = vmatpush.bf16.msra.mxu0 0
        %1872 = vmatpush.bf16.msra.mxu0 0
        %1873 = vmatpush.bf16.msra.mxu0 0
        %1874 = vmatpush.bf16.msra.mxu0 0
        %1875 = vmatpush.bf16.msra.mxu0 %v1847
        %1876 = vmatpush.bf16.msra.mxu0 %v1812
        %1877 = vmatpush.bf16.msra.mxu0 %v1748
        %1878 = vmatmul.bf16.gmra.mxu0 %v1844
        %v1879 = vpop.f32.mrf.mxu0
        %v1880 = vadd.f32 %v1840, %v1879
        %v1881 = vpop.f32.mrf.mxu0
        %1882 = vdwg.mxu0
        %1883 = vmatpush.bf16.msra.mxu0 0
        %1884 = vmatpush.bf16.msra.mxu0 0
        %1885 = vmatpush.bf16.msra.mxu0 0
        %1886 = vmatpush.bf16.msra.mxu0 0
        %1887 = vmatpush.bf16.msra.mxu0 0
        %1888 = vmatpush.bf16.msra.mxu0 %v1850
        %1889 = vmatpush.bf16.msra.mxu0 %v1815
        %1890 = vmatpush.bf16.msra.mxu0 %v1751
        %1891 = vmatmul.bf16.gmra.mxu0 %v1844
        %v1892 = vpop.f32.mrf.mxu0
        %v1893 = vadd.f32 %v1840, %v1892
        %v1894 = vpop.f32.mrf.mxu0
        %1895 = vdwg.mxu0
        %1896 = vmatpush.bf16.msra.mxu0 0
        %1897 = vmatpush.bf16.msra.mxu0 0
        %1898 = vmatpush.bf16.msra.mxu0 0
        %1899 = vmatpush.bf16.msra.mxu0 0
        %1900 = vmatpush.bf16.msra.mxu0 0
        %1901 = vmatpush.bf16.msra.mxu0 %v1853
        %1902 = vmatpush.bf16.msra.mxu0 %v1818
        %1903 = vmatpush.bf16.msra.mxu0 %v1754
        %1904 = vmatmul.bf16.gmra.mxu0 %v1844
        %v1905 = vpop.f32.mrf.mxu0
        %v1906 = vadd.f32 %v1840, %v1905
        %v1907 = vpop.f32.mrf.mxu0
        %1908 = vdwg.mxu0
        %1909 = vmatpush.bf16.msra.mxu0 0
        %1910 = vmatpush.bf16.msra.mxu0 0
        %1911 = vmatpush.bf16.msra.mxu0 0
        %1912 = vmatpush.bf16.msra.mxu0 0
        %1913 = vmatpush.bf16.msra.mxu0 0
        %1914 = vmatpush.bf16.msra.mxu0 %v1856
        %1915 = vmatpush.bf16.msra.mxu0 %v1821
        %1916 = vmatpush.bf16.msra.mxu0 %v1757
        %1917 = vmatmul.bf16.gmra.mxu0 %v1844
        %v1918 = vpop.f32.mrf.mxu0
        %v1919 = vadd.f32 %v1840, %v1918
        %v1920 = vpop.f32.mrf.mxu0
        %1921 = vdwg.mxu0
        %1922 = vmatpush.bf16.msra.mxu0 0
        %1923 = vmatpush.bf16.msra.mxu0 0
        %1924 = vmatpush.bf16.msra.mxu0 0
        %1925 = vmatpush.bf16.msra.mxu0 0
        %1926 = vmatpush.bf16.msra.mxu0 0
        %1927 = vmatpush.bf16.msra.mxu0 %v1859
        %1928 = vmatpush.bf16.msra.mxu0 %v1824
        %1929 = vmatpush.bf16.msra.mxu0 %v1760
        %1930 = vmatmul.bf16.gmra.mxu0 %v1844
        %v1931 = vpop.f32.mrf.mxu0
        %v1932 = vadd.f32 %v1840, %v1931
        %v1933 = vpop.f32.mrf.mxu0
        %1934 = vdwg.mxu0
        %1935 = vmatpush.bf16.msra.mxu0 0
        %1936 = vmatpush.bf16.msra.mxu0 0
        %1937 = vmatpush.bf16.msra.mxu0 0
        %1938 = vmatpush.bf16.msra.mxu0 0
        %1939 = vmatpush.bf16.msra.mxu0 0
        %1940 = vmatpush.bf16.msra.mxu0 %v1862
        %1941 = vmatpush.bf16.msra.mxu0 %v1827
        %1942 = vmatpush.bf16.msra.mxu0 %v1763
        %1943 = vmatmul.bf16.gmra.mxu0 %v1844
        %v1944 = vpop.f32.mrf.mxu0
        %v1945 = vadd.f32 %v1840, %v1944
        %v1946 = vpop.f32.mrf.mxu0
        %1947 = vdwg.mxu0
        %1948 = vmatpush.bf16.msra.mxu0 0
        %1949 = vmatpush.bf16.msra.mxu0 0
        %1950 = vmatpush.bf16.msra.mxu0 0
        %1951 = vmatpush.bf16.msra.mxu0 0
        %1952 = vmatpush.bf16.msra.mxu0 0
        %1953 = vmatpush.bf16.msra.mxu0 %v1865
        %1954 = vmatpush.bf16.msra.mxu0 %v1830
        %1955 = vmatpush.bf16.msra.mxu0 %v1766
        %1956 = vmatmul.bf16.gmra.mxu0 %v1844
        %v1957 = vpop.f32.mrf.mxu0
        %v1958 = vadd.f32 %v1840, %v1957
        %v1959 = vpop.f32.mrf.mxu0
        %1960 = vdwg.mxu0
        %1961 = vmatpush.bf16.msra.mxu0 0
        %1962 = vmatpush.bf16.msra.mxu0 0
        %1963 = vmatpush.bf16.msra.mxu0 0
        %1964 = vmatpush.bf16.msra.mxu0 0
        %1965 = vmatpush.bf16.msra.mxu0 0
        %1966 = vmatpush.bf16.msra.mxu0 %v1868
        %1967 = vmatpush.bf16.msra.mxu0 %v1833
        %1968 = vmatpush.bf16.msra.mxu0 %v1769
        %1969 = vmatmul.bf16.gmra.mxu0 %v1844
        %v1970 = vpop.f32.mrf.mxu0
        %v1971 = vadd.f32 %v1840, %v1970
        %v1972 = vpop.f32.mrf.mxu0
        %1973 = vdwg.mxu0
        %1974 = vst [vmem:[%s177] sm:$0xff] %v1880
        %1975 = vst [vmem:[%s177 + $0x8] sm:$0xff] %v1893
        %1976 = vst [vmem:[%s177 + $0x10] sm:$0xff] %v1906
        %1977 = vst [vmem:[%s177 + $0x18] sm:$0xff] %v1919
        %1978 = vst [vmem:[%s177 + $0x20] sm:$0xff] %v1932
        %1979 = vst [vmem:[%s177 + $0x28] sm:$0xff] %v1945
        %1980 = vst [vmem:[%s177 + $0x30] sm:$0xff] %v1958
        %1981 = vst [vmem:[%s177 + $0x38] sm:$0xff] %v1971
        %s1982 = sand.u32 %s107, 1
        %s1983 = scalar_lea.sflag [#allocation3], %s1982
        %s1984 = sand.u32 %s107, 1
        %s1985 = smul.addr %s1984, 64
        %s1986 = scalar_lea.vmem [#allocation2], %s1985
        // Predicated region
        $region33: #{tpu_custom_call.1} parent=31 // pred_check
          %p1987 = pneg %p117
        $region34: #{tpu_custom_call.1} parent=31 // pred_check_branch
          %1989 = sbr.rel (%p1987) target = $region36
        $region35: #{tpu_custom_call.1} parent=31 // pred_region
          %s1990 = smul.u32 8, %s22
          %1992 = vsyncadd %s1983, 0
          %s1993 = smul.addr %s21, 8
          %s1994 = sadd.s32 %s1990, %s1993
          %s1995 = smul.addr %s1994, 8
          %s1996 = scalar_lea.hbm %s3, %s1995
          %s1998 = sshll.u32 %s1986, 4
          %s1999 = int_to_ptr.vmem [resolvable:$true] %s1998
          %s2000 = sshll.u32 %s1996, 4
          %s2001 = int_to_ptr.hbm [resolvable:$true] %s2000
          %2003 = dma.vmem_to_hbm [thread:$0]  %s1999, 1024, %s2001, %s1983
        $region36: #{tpu_custom_call.1} parent=31 // pred_fallthru
          _
      $region32: #{tpu_custom_call.1} parent=5 // pred_fallthru
        _
      %p2004 = scmp.le.s32.totalorder 2, %s12
      // Predicated region
      $region37: #{tpu_custom_call.1} parent=5 // pred_check
        %p2005 = pneg %p2004
      $region38: #{tpu_custom_call.1} parent=5 // pred_check_branch
        %2007 = sbr.rel (%p2005) target = $region40
      $region39: #{tpu_custom_call.1} parent=5 // pred_region
        %s2008 = ssub.s32 %s12, 2
        // Predicated region
        $region41: #{tpu_custom_call.1} parent=39 // pred_check
          %p2009 = pneg %p123
        $region42: #{tpu_custom_call.1} parent=39 // pred_check_branch
          %2011 = sbr.rel (%p2009) target = $region44
        $region43: #{tpu_custom_call.1} parent=39 // pred_region
          %s2012 = sand.u32 %s108, 1
          %s2013 = scalar_lea.sflag [#allocation3], %s2012
          %s2014 = sand.u32 %s108, 1
          %s2015 = smul.addr %s2014, 64
          %s2016 = scalar_lea.vmem [#allocation2], %s2015
          %2018 = dma.done %s2013, 1024
        $region44: #{tpu_custom_call.1} parent=39 // pred_fallthru
          _
      $region40: #{tpu_custom_call.1} parent=5 // pred_fallthru
        _
    $region6: #{tpu_custom_call.1} parent=1 // loop_footer
      %s16 = sadd.s32 1, %s12
    $region7: #{tpu_custom_call.1} parent=1 // loop_footer_branch
      %11 = sbr.rel target = $region3
    $region8: #{tpu_custom_call.1} parent=1 // loop_exit
      _
    %2019 = vsyncpa [#allocation3], 1
    %s2020 = scalar_lea.sflag [#allocation3], 1
    %2021 = vsyncpa %s2020, 1

</llo_original>
